<compile_context>
chip_gen: v7x
topology: tpu7x:2x2x1
jax: 0.10.0
libtpu: 0.0.40
codegen_flags: <defaults>
</compile_context>

<pallas_src>
import functools

import jax
import jax.numpy as jnp
from jax.experimental import pallas as pl
from jax.experimental.pallas import tpu as pltpu

LANE = 128
SUBLANE_BF16 = 16   # bf16 packs 16 rows per sublane group


def _round_up(x, m):
    return (x + m - 1) // m * m


# --------------------------------------------------------------------------- #
# Kernel
# --------------------------------------------------------------------------- #
def _bottleneck_kernel(x_ref, w1_ref, b1_ref, w2_ref, b2_ref, w3_ref, b3_ref,
                       out_ref, *, th, w_img):
    # x_ref : (H, Wp, Cp)   bf16  persistent padded NHWC activations
    # w1_ref: (Cp, Pp)      bf16  (BN1 scale folded in)   b1_ref: (1, Pp) f32
    # w2_ref: (3, 3*Pp, Pp) bf16  (contraction = kw*Pp+c) b2_ref: (1, Pp) f32
    # w3_ref: (Pp, Cp)      bf16                          b3_ref: (1, Cp) f32
    # out_ref: (TH, Wp, Cp) bf16
    h = x_ref.shape[0]
    wp = x_ref.shape[1]
    cp = x_ref.shape[2]
    pp = w1_ref.shape[1]
    f32, bf16 = jnp.float32, jnp.bfloat16

    row0 = pl.program_id(1) * th                  # first output row of tile

    # ---- build the (TH+2)-row halo slab without any HBM row padding --------
    # Halo rows are read clamped at the border (duplicated data) and zeroed by
    # the row-validity mask after conv1.
    top = x_ref[pl.ds(jnp.maximum(row0 - 1, 0), 1)]
    mid = x_ref[pl.ds(row0, th)]
    bot = x_ref[pl.ds(jnp.minimum(row0 + th, h - 1), 1)]
    slab = jnp.concatenate([top, mid, bot], axis=0)          # (TH+2, Wp, Cp)

    # ---- conv1 (1x1, BN folded) + bias + relu -------------------------------
    o1 = jnp.dot(slab.reshape((th + 2) * wp, cp), w1_ref[...],
                 preferred_element_type=f32)
    o1 = jnp.maximum(o1 + b1_ref[...], 0.0).reshape(th + 2, wp, pp)

    # 2-D validity masks; broadcast along the Pp lane dim in the selects.
    row_ids = jax.lax.broadcasted_iota(jnp.int32, (th + 2, wp, 1), 0) + (row0 - 1)
    col_ids = jax.lax.broadcasted_iota(jnp.int32, (th + 2, wp, 1), 1)
    col_ok = col_ids < w_img                                  # inside real W
    valid = (row_ids >= 0) & (row_ids < h) & col_ok
    o1 = jnp.where(valid, o1, 0.0)

    # ---- conv2 (3x3, pad=1): W taps via XLU roll + boundary masks; the three
    #      kw taps are stacked along the contraction dim (K = 3*Pp), leaving
    #      one matmul per kh tap. ---------------------------------------------
    prev = jnp.where(col_ids == 0, 0.0, pltpu.roll(o1, 1, axis=1))           # in[w-1]
    nxt = jnp.where(col_ids == wp - 1, 0.0, pltpu.roll(o1, wp - 1, axis=1))  # in[w+1]
    o1cat = jnp.concatenate(
        [prev.astype(bf16), o1.astype(bf16), nxt.astype(bf16)], axis=-1)

    acc = jnp.dot(o1cat[0:th].reshape(th * wp, 3 * pp), w2_ref[0],
                  preferred_element_type=f32)
    for kh in (1, 2):                                      # short static loop
        acc = acc + jnp.dot(o1cat[kh:kh + th].reshape(th * wp, 3 * pp),
                            w2_ref[kh], preferred_element_type=f32)
    o2 = jnp.maximum(acc + b2_ref[...], 0.0).astype(bf16)

    # ---- conv3 (1x1) + bias + residual + relu --------------------------------
    o3 = jnp.dot(o2, w3_ref[...], preferred_element_type=f32) + b3_ref[...]
    # Residual re-read late (keeps its live range out of the conv2 region),
    # upcast to f32 for the add.
    resid = x_ref[pl.ds(row0, th)].reshape(th * wp, cp).astype(f32)
    out = jnp.maximum(o3 + resid, 0.0).reshape(th, wp, cp)
    # Keep the persistent layout invariant: padded W columns stay exactly zero
    # (padded channels are zero automatically: zero weights + zero residual).
    out = jnp.where(col_ok[:th], out, 0.0)
    out_ref[...] = out.astype(out_ref.dtype)


# --------------------------------------------------------------------------- #
# Host-side helpers (one-time, outside the per-block hot path)
# --------------------------------------------------------------------------- #
def prepare_bottleneck_params(w1, s1, b1, w2, s2, b2, w3, s3, b3):
    """Fold eval-mode BN scale into conv weights, pad channels, cast to bf16."""
    Cin, P = w1.shape
    Cp = _round_up(Cin, LANE)
    Pp = _round_up(P, LANE)
    f32, bf16 = jnp.float32, jnp.bfloat16

    w1f = jnp.zeros((Cp, Pp), f32).at[:Cin, :P].set(w1 * s1)
    w2f = jnp.zeros((3, 3, Pp, Pp), f32).at[:, :, :P, :P].set(
        w2 * s2.reshape(1, 1, 1, P))
    w3f = jnp.zeros((Pp, Cp), f32).at[:P, :Cin].set(w3 * s3)
    w2f = w2f.reshape(3, 3 * Pp, Pp)               # contraction = kw*Pp + cin
    b1p = jnp.zeros((1, Pp), f32).at[:, :P].set(b1)
    b2p = jnp.zeros((1, Pp), f32).at[:, :P].set(b2)
    b3p = jnp.zeros((1, Cp), f32).at[:, :Cin].set(b3)
    return (w1f.astype(bf16), b1p, w2f.astype(bf16), b2p, w3f.astype(bf16), b3p)


def to_padded_nhwc(x_nchw):
    """One-time NCHW f32 -> persistent padded NHWC bf16 layout (padding zero)."""
    N, C, H, W = x_nchw.shape
    Wp = _round_up(W, SUBLANE_BF16)
    Cp = _round_up(C, LANE)
    x = jnp.transpose(x_nchw, (0, 2, 3, 1))
    x = jnp.pad(x, ((0, 0), (0, 0), (0, Wp - W), (0, Cp - C)))
    return x.astype(jnp.bfloat16)


def from_padded_nhwc(xp, C, W):
    """One-time padded NHWC bf16 -> NCHW f32 (exit of the network only)."""
    return jnp.transpose(xp[:, :, :W, :C].astype(jnp.float32), (0, 3, 1, 2))


def _pick_tile_h(H, Wp, Cp, Pp, n_batch, vmem_budget_bytes):
    """Largest divisor of H whose per-step footprint fits the VMEM budget."""
    def footprint(t):
        x_blk = H * Wp * Cp * 2 * 2                  # bf16, double-buffered
        out_blk = t * Wp * Cp * 2 * 2
        weights = (Cp * Pp + 9 * Pp * Pp + Pp * Cp) * 2 * 2
        slab = (t + 2) * Wp * Cp * 2
        o1 = 3 * (t + 2) * Wp * Pp * 4               # o1 + prev + nxt (f32)
        o1cat = (t + 2) * Wp * 3 * Pp * 2
        acc = t * Wp * Pp * 4 + t * Wp * Cp * 4
        return x_blk + out_blk + weights + slab + o1 + o1cat + acc

    divs = [d for d in range(1, H + 1) if H % d == 0]
    fitting = [d for d in divs if footprint(d) <= vmem_budget_bytes]
    th = max(fitting) if fitting else 1
    # Megacore occupancy: keep at least 2 grid steps when batch == 1.
    if n_batch == 1 and th == H and H > 1:
        th = max(d for d in divs if d < H)
    return th


def bottleneck_padded(xp, params, *, w_img, tile_h=None,
                      vmem_limit_bytes=48 * 1024 * 1024):
    """Fused Bottleneck forward on the persistent padded NHWC bf16 layout.

    xp: (N, H, Wp, Cp) bf16 with Wp % 16 == 0, Cp % 128 == 0 and zeros in the
    padded W columns / channels.  The output has the same shape/dtype and
    preserves that invariant, so successive blocks chain with no relayout.
    """
    N, H, Wp, Cp = xp.shape
    w1b, b1p, w2b, b2p, w3b, b3p = params
    Pp = w1b.shape[1]
    assert w3b.shape == (Pp, Cp), (
        "downsample=None Bottleneck requires inplanes == planes * expansion")
    assert Wp % SUBLANE_BF16 == 0 and Cp % LANE == 0 and w_img <= Wp

    TH = tile_h or _pick_tile_h(H, Wp, Cp, Pp, N, int(vmem_limit_bytes * 0.7))
    assert H % TH == 0
    grid = (N, H // TH)

    def _full(shape):
        return pl.BlockSpec(shape, lambda n, h: (0,) * len(shape))

    flops = 2 * N * H * w_img * (Cp * Pp + 9 * Pp * Pp + Pp * Cp)
    bytes_accessed = 2 * xp.size + 2 * N * H * Wp * Cp + 2 * (
        w1b.size + w2b.size + w3b.size) + 4 * (b1p.size + b2p.size + b3p.size)

    return pl.pallas_call(
        functools.partial(_bottleneck_kernel, th=TH, w_img=w_img),
        out_shape=jax.ShapeDtypeStruct((N, H, Wp, Cp), jnp.bfloat16),
        grid_spec=pltpu.PrefetchScalarGridSpec(
            num_scalar_prefetch=0,
            grid=grid,
            in_specs=[
                # x: whole image per batch index, resident across the h axis.
                pl.BlockSpec((pl.Squeezed(), H, Wp, Cp),
                             lambda n, h: (n, 0, 0, 0)),
                _full((Cp, Pp)), _full((1, Pp)),          # conv1 / bn1
                _full((3, 3 * Pp, Pp)), _full((1, Pp)),   # conv2 / bn2
                _full((Pp, Cp)), _full((1, Cp)),          # conv3 / bn3
            ],
            out_specs=pl.BlockSpec((pl.Squeezed(), TH, Wp, Cp),
                                   lambda n, h: (n, h, 0, 0)),
        ),
        compiler_params=pltpu.CompilerParams(
            dimension_semantics=("parallel", "parallel"),
            vmem_limit_bytes=vmem_limit_bytes),
        cost_estimate=pl.CostEstimate(
            flops=flops, transcendentals=0, bytes_accessed=bytes_accessed),
    )(xp, w1b, b1p, w2b, b2p, w3b, b3p)


# --------------------------------------------------------------------------- #
# Reference & demo
# --------------------------------------------------------------------------- #
def _fold_bn(gamma, beta, mean, var, eps=1e-5):
    scale = gamma / jnp.sqrt(var + eps)
    bias = beta - mean * scale
    return scale[None, :], bias[None, :]


def _ref_forward(x_nhwc, w1, s1, b1, w2, s2, b2, w3, s3, b3):
    """Pure-JAX f32 reference (NHWC, HWIO convs)."""
    dn = ("NHWC", "HWIO", "NHWC")
    hi = jax.lax.Precision.HIGHEST
    o = jax.lax.conv_general_dilated(x_nhwc, w1[None, None], (1, 1), "VALID",
                                     dimension_numbers=dn, precision=hi)
    o = jnp.maximum(o * s1 + b1, 0.0)
    o = jax.lax.conv_general_dilated(o, w2, (1, 1), ((1, 1), (1, 1)),
                                     dimension_numbers=dn, precision=hi)
    o = jnp.maximum(o * s2 + b2, 0.0)
    o = jax.lax.conv_general_dilated(o, w3[None, None], (1, 1), "VALID",
                                     dimension_numbers=dn, precision=hi)
    o = o * s3 + b3
    return jnp.maximum(o + x_nhwc, 0.0)


if __name__ == "__main__":
    # inplanes = planes * expansion so downsample=None residual add is valid.
    N, H, W = 2, 16, 16
    planes = 8
    inplanes = planes * 4

    key = jax.random.PRNGKey(0)
    ks = jax.random.split(key, 8)

    x_nchw = jax.random.normal(ks[0], (N, inplanes, H, W), jnp.float32)

    w1 = 0.2 * jax.random.normal(ks[1], (inplanes, planes), jnp.float32)
    w2 = 0.2 * jax.random.normal(ks[2], (3, 3, planes, planes), jnp.float32)
    w3 = 0.2 * jax.random.normal(ks[3], (planes, inplanes), jnp.float32)

    def bn_params(k, c):
        k1, k2, k3, k4 = jax.random.split(k, 4)
        gamma = 1.0 + 0.1 * jax.random.normal(k1, (c,), jnp.float32)
        beta = 0.1 * jax.random.normal(k2, (c,), jnp.float32)
        mean = 0.1 * jax.random.normal(k3, (c,), jnp.float32)
        var = jnp.abs(1.0 + 0.1 * jax.random.normal(k4, (c,), jnp.float32))
        return gamma, beta, mean, var

    s1, b1 = _fold_bn(*bn_params(ks[4], planes))
    s2, b2 = _fold_bn(*bn_params(ks[5], planes))
    s3, b3 = _fold_bn(*bn_params(ks[6], inplanes))

    # One-time prep (per network, not per block): fold BN + pad + bf16.
    params = prepare_bottleneck_params(w1, s1, b1, w2, s2, b2, w3, s3, b3)
    xp = to_padded_nhwc(x_nchw)

    run = jax.jit(functools.partial(bottleneck_padded, w_img=W))
    outp = jax.block_until_ready(run(xp, params))

    assert outp.shape == xp.shape and outp.dtype == jnp.bfloat16
    Np, Hp, Wp, Cp = outp.shape
    # Persistent-layout invariant: padded region must be exactly zero.
    if Wp > W:
        assert float(jnp.max(jnp.abs(outp[:, :, W:, :].astype(jnp.float32)))) == 0.0
    if Cp > inplanes:
        assert float(jnp.max(jnp.abs(outp[:, :, :, inplanes:].astype(jnp.float32)))) == 0.0

    out_nchw = from_padded_nhwc(outp, inplanes, W)
    assert out_nchw.shape == (N, inplanes, H, W)

    # Reference on bf16-rounded x (the kernel's HBM activation dtype); bf16 MXU
    # operands + bf16 output -> relaxed tolerance vs the f32 reference.
    x_nhwc = jnp.transpose(x_nchw, (0, 2, 3, 1)).astype(jnp.bfloat16).astype(jnp.float32)
    ref = _ref_forward(x_nhwc, w1, s1, b1, w2, s2, b2, w3, s3, b3)
    out_nhwc = outp[:, :, :W, :inplanes].astype(jnp.float32)
    assert jnp.allclose(out_nhwc, ref, rtol=5e-2, atol=5e-2), "mismatch vs reference"

    print("KERNEL_OK")
</pallas_src>

<mosaic_0001>
module attributes {stable_mosaic.version = 11 : i64} {
  func.func @_bottleneck_kernel(%arg0: i32, %arg1: i32, %arg2: memref<1x16x16x128xbf16, #tpu.memory_space<vmem>>, %arg3: memref<128x128xbf16, #tpu.memory_space<vmem>>, %arg4: memref<1x128xf32, #tpu.memory_space<vmem>>, %arg5: memref<3x384x128xbf16, #tpu.memory_space<vmem>>, %arg6: memref<1x128xf32, #tpu.memory_space<vmem>>, %arg7: memref<128x128xbf16, #tpu.memory_space<vmem>>, %arg8: memref<1x128xf32, #tpu.memory_space<vmem>>, %arg9: memref<1x16x16x128xbf16, #tpu.memory_space<vmem>>) attributes {dimension_semantics = [#tpu.dimension_semantics<parallel>, #tpu.dimension_semantics<parallel>], iteration_bounds = array<i64: 2, 1>, scalar_prefetch = 0 : i64, scratch_operands = 0 : i64, tpu.core_type = #tpu.core_type<tc>, window_params = [{transform_indices = @transform_0, window_bounds = array<i64: 1, 16, 16, 128>}, {pipeline_mode = #tpu.pipeline_mode<synchronous>, transform_indices = @transform_1, window_bounds = array<i64: 128, 128>}, {pipeline_mode = #tpu.pipeline_mode<synchronous>, transform_indices = @transform_2, window_bounds = array<i64: 1, 128>}, {pipeline_mode = #tpu.pipeline_mode<synchronous>, transform_indices = @transform_3, window_bounds = array<i64: 3, 384, 128>}, {pipeline_mode = #tpu.pipeline_mode<synchronous>, transform_indices = @transform_4, window_bounds = array<i64: 1, 128>}, {pipeline_mode = #tpu.pipeline_mode<synchronous>, transform_indices = @transform_5, window_bounds = array<i64: 128, 128>}, {pipeline_mode = #tpu.pipeline_mode<synchronous>, transform_indices = @transform_6, window_bounds = array<i64: 1, 128>}, {transform_indices = @transform_7, window_bounds = array<i64: 1, 16, 16, 128>}]} {
    %c16_i32 = arith.constant 16 : i32
    %0 = arith.muli %arg1, %c16_i32 : i32
    %c1_i32 = arith.constant 1 : i32
    %1 = arith.subi %0, %c1_i32 : i32
    %c0_i32 = arith.constant 0 : i32
    %2 = arith.maxsi %1, %c0_i32 : i32
    %c0 = arith.constant 0 : index
    %3 = arith.index_cast %2 : i32 to index
    %c0_0 = arith.constant 0 : index
    %c0_1 = arith.constant 0 : index
    %4 = vector.load %arg2[%c0, %3, %c0_0, %c0_1] : memref<1x16x16x128xbf16, #tpu.memory_space<vmem>>, vector<1x1x16x128xbf16>
    %5 = vector.shape_cast %4 : vector<1x1x16x128xbf16> to vector<1x16x128xbf16>
    %c0_2 = arith.constant 0 : index
    %6 = arith.index_cast %0 : i32 to index
    %c0_3 = arith.constant 0 : index
    %c0_4 = arith.constant 0 : index
    %7 = vector.load %arg2[%c0_2, %6, %c0_3, %c0_4] : memref<1x16x16x128xbf16, #tpu.memory_space<vmem>>, vector<1x16x16x128xbf16>
    %8 = vector.shape_cast %7 : vector<1x16x16x128xbf16> to vector<16x16x128xbf16>
    %c16_i32_5 = arith.constant 16 : i32
    %9 = arith.addi %0, %c16_i32_5 : i32
    %c15_i32 = arith.constant 15 : i32
    %10 = arith.minsi %9, %c15_i32 : i32
    %c0_6 = arith.constant 0 : index
    %11 = arith.index_cast %10 : i32 to index
    %c0_7 = arith.constant 0 : index
    %c0_8 = arith.constant 0 : index
    %12 = vector.load %arg2[%c0_6, %11, %c0_7, %c0_8] : memref<1x16x16x128xbf16, #tpu.memory_space<vmem>>, vector<1x1x16x128xbf16>
    %13 = vector.shape_cast %12 : vector<1x1x16x128xbf16> to vector<1x16x128xbf16>
    %14 = tpu.concatenate %5, %8, %13 in 0 : vector<1x16x128xbf16>, vector<16x16x128xbf16>, vector<1x16x128xbf16> -> vector<18x16x128xbf16>
    %15 = vector.shape_cast %14 : vector<18x16x128xbf16> to vector<288x128xbf16>
    %c0_9 = arith.constant 0 : index
    %c0_10 = arith.constant 0 : index
    %16 = vector.load %arg3[%c0_9, %c0_10] : memref<128x128xbf16, #tpu.memory_space<vmem>>, vector<128x128xbf16>
    %cst = arith.constant dense<0.000000e+00> : vector<288x128xf32>
    %17 = tpu.matmul %15, %16, %cst {dimension_numbers = #tpu.dot_dimension_numbers<[1], [0], [0], [1], [0, 0, 1, 1], [], []>} : vector<288x128xbf16>, vector<128x128xbf16>, vector<288x128xf32> -> vector<288x128xf32>
    %c0_11 = arith.constant 0 : index
    %c0_12 = arith.constant 0 : index
    %18 = vector.load %arg4[%c0_11, %c0_12] : memref<1x128xf32, #tpu.memory_space<vmem>>, vector<1x128xf32>
    %19 = vector.broadcast %18 : vector<1x128xf32> to vector<288x128xf32>
    %20 = arith.addf %17, %19 : vector<288x128xf32>
    %cst_13 = arith.constant 0.000000e+00 : f32
    %21 = vector.broadcast %cst_13 : f32 to vector<288x128xf32>
    %22 = arith.maximumf %20, %21 : vector<288x128xf32>
    %23 = vector.shape_cast %22 : vector<288x128xf32> to vector<18x16x128xf32>
    %24 = tpu.iota {dimensions = array<i32: 0>} : vector<18x16x1xi32>
    %c1_i32_14 = arith.constant 1 : i32
    %25 = arith.subi %0, %c1_i32_14 : i32
    %26 = vector.broadcast %25 : i32 to vector<18x16x1xi32>
    %27 = arith.addi %24, %26 : vector<18x16x1xi32>
    %28 = tpu.iota {dimensions = array<i32: 1>} : vector<18x16x1xi32>
    %c16_i32_15 = arith.constant 16 : i32
    %29 = vector.broadcast %c16_i32_15 : i32 to vector<18x16x1xi32>
    %30 = arith.cmpi slt, %28, %29 : vector<18x16x1xi32>
    %c0_i32_16 = arith.constant 0 : i32
    %31 = vector.broadcast %c0_i32_16 : i32 to vector<18x16x1xi32>
    %32 = arith.cmpi sge, %27, %31 : vector<18x16x1xi32>
    %c16_i32_17 = arith.constant 16 : i32
    %33 = vector.broadcast %c16_i32_17 : i32 to vector<18x16x1xi32>
    %34 = arith.cmpi slt, %27, %33 : vector<18x16x1xi32>
    %35 = arith.andi %32, %34 : vector<18x16x1xi1>
    %36 = arith.andi %35, %30 : vector<18x16x1xi1>
    %cst_18 = arith.constant 0.000000e+00 : f32
    %37 = vector.shape_cast %36 : vector<18x16x1xi1> to vector<18x16x1xi1>
    %38 = vector.broadcast %37 : vector<18x16x1xi1> to vector<18x16x128xi1>
    %39 = vector.broadcast %cst_18 : f32 to vector<18x16x128xf32>
    %40 = arith.select %38, %23, %39 : vector<18x16x128xi1>, vector<18x16x128xf32>
    %c0_i32_19 = arith.constant 0 : i32
    %41 = vector.broadcast %c0_i32_19 : i32 to vector<18x16x1xi32>
    %42 = arith.cmpi eq, %28, %41 : vector<18x16x1xi32>
    %c1_i32_20 = arith.constant 1 : i32
    %43 = tpu.dynamic_rotate %40 by %c1_i32_20 dim 1 : vector<18x16x128xf32>, i32 -> vector<18x16x128xf32>
    %cst_21 = arith.constant 0.000000e+00 : f32
    %44 = vector.shape_cast %42 : vector<18x16x1xi1> to vector<18x16x1xi1>
    %45 = vector.broadcast %44 : vector<18x16x1xi1> to vector<18x16x128xi1>
    %46 = vector.broadcast %cst_21 : f32 to vector<18x16x128xf32>
    %47 = arith.select %45, %46, %43 : vector<18x16x128xi1>, vector<18x16x128xf32>
    %c15_i32_22 = arith.constant 15 : i32
    %48 = vector.broadcast %c15_i32_22 : i32 to vector<18x16x1xi32>
    %49 = arith.cmpi eq, %28, %48 : vector<18x16x1xi32>
    %c15_i32_23 = arith.constant 15 : i32
    %50 = tpu.dynamic_rotate %40 by %c15_i32_23 dim 1 : vector<18x16x128xf32>, i32 -> vector<18x16x128xf32>
    %cst_24 = arith.constant 0.000000e+00 : f32
    %51 = vector.shape_cast %49 : vector<18x16x1xi1> to vector<18x16x1xi1>
    %52 = vector.broadcast %51 : vector<18x16x1xi1> to vector<18x16x128xi1>
    %53 = vector.broadcast %cst_24 : f32 to vector<18x16x128xf32>
    %54 = arith.select %52, %53, %50 : vector<18x16x128xi1>, vector<18x16x128xf32>
    %55 = arith.truncf %47 : vector<18x16x128xf32> to vector<18x16x128xbf16>
    %56 = arith.truncf %40 : vector<18x16x128xf32> to vector<18x16x128xbf16>
    %57 = arith.truncf %54 : vector<18x16x128xf32> to vector<18x16x128xbf16>
    %58 = tpu.concatenate %55, %56, %57 in 2 : vector<18x16x128xbf16>, vector<18x16x128xbf16>, vector<18x16x128xbf16> -> vector<18x16x384xbf16>
    %59 = vector.extract_strided_slice %58 {offsets = [0, 0, 0], sizes = [16, 16, 384], strides = [1, 1, 1]} : vector<18x16x384xbf16> to vector<16x16x384xbf16>
    %60 = vector.shape_cast %59 : vector<16x16x384xbf16> to vector<256x384xbf16>
    %c0_25 = arith.constant 0 : index
    %c0_26 = arith.constant 0 : index
    %c0_27 = arith.constant 0 : index
    %61 = vector.load %arg5[%c0_25, %c0_26, %c0_27] : memref<3x384x128xbf16, #tpu.memory_space<vmem>>, vector<1x384x128xbf16>
    %62 = vector.shape_cast %61 : vector<1x384x128xbf16> to vector<384x128xbf16>
    %cst_28 = arith.constant dense<0.000000e+00> : vector<256x128xf32>
    %63 = tpu.matmul %60, %62, %cst_28 {dimension_numbers = #tpu.dot_dimension_numbers<[1], [0], [0], [1], [0, 0, 1, 1], [], []>} : vector<256x384xbf16>, vector<384x128xbf16>, vector<256x128xf32> -> vector<256x128xf32>
    %64 = vector.extract_strided_slice %58 {offsets = [1, 0, 0], sizes = [16, 16, 384], strides = [1, 1, 1]} : vector<18x16x384xbf16> to vector<16x16x384xbf16>
    %65 = vector.shape_cast %64 : vector<16x16x384xbf16> to vector<256x384xbf16>
    %c1 = arith.constant 1 : index
    %c0_29 = arith.constant 0 : index
    %c0_30 = arith.constant 0 : index
    %66 = vector.load %arg5[%c1, %c0_29, %c0_30] : memref<3x384x128xbf16, #tpu.memory_space<vmem>>, vector<1x384x128xbf16>
    %67 = vector.shape_cast %66 : vector<1x384x128xbf16> to vector<384x128xbf16>
    %cst_31 = arith.constant dense<0.000000e+00> : vector<256x128xf32>
    %68 = tpu.matmul %65, %67, %cst_31 {dimension_numbers = #tpu.dot_dimension_numbers<[1], [0], [0], [1], [0, 0, 1, 1], [], []>} : vector<256x384xbf16>, vector<384x128xbf16>, vector<256x128xf32> -> vector<256x128xf32>
    %69 = arith.addf %63, %68 : vector<256x128xf32>
    %70 = vector.extract_strided_slice %58 {offsets = [2, 0, 0], sizes = [16, 16, 384], strides = [1, 1, 1]} : vector<18x16x384xbf16> to vector<16x16x384xbf16>
    %71 = vector.shape_cast %70 : vector<16x16x384xbf16> to vector<256x384xbf16>
    %c2 = arith.constant 2 : index
    %c0_32 = arith.constant 0 : index
    %c0_33 = arith.constant 0 : index
    %72 = vector.load %arg5[%c2, %c0_32, %c0_33] : memref<3x384x128xbf16, #tpu.memory_space<vmem>>, vector<1x384x128xbf16>
    %73 = vector.shape_cast %72 : vector<1x384x128xbf16> to vector<384x128xbf16>
    %cst_34 = arith.constant dense<0.000000e+00> : vector<256x128xf32>
    %74 = tpu.matmul %71, %73, %cst_34 {dimension_numbers = #tpu.dot_dimension_numbers<[1], [0], [0], [1], [0, 0, 1, 1], [], []>} : vector<256x384xbf16>, vector<384x128xbf16>, vector<256x128xf32> -> vector<256x128xf32>
    %75 = arith.addf %69, %74 : vector<256x128xf32>
    %c0_35 = arith.constant 0 : index
    %c0_36 = arith.constant 0 : index
    %76 = vector.load %arg6[%c0_35, %c0_36] : memref<1x128xf32, #tpu.memory_space<vmem>>, vector<1x128xf32>
    %77 = vector.broadcast %76 : vector<1x128xf32> to vector<256x128xf32>
    %78 = arith.addf %75, %77 : vector<256x128xf32>
    %cst_37 = arith.constant 0.000000e+00 : f32
    %79 = vector.broadcast %cst_37 : f32 to vector<256x128xf32>
    %80 = arith.maximumf %78, %79 : vector<256x128xf32>
    %81 = arith.truncf %80 : vector<256x128xf32> to vector<256x128xbf16>
    %c0_38 = arith.constant 0 : index
    %c0_39 = arith.constant 0 : index
    %82 = vector.load %arg7[%c0_38, %c0_39] : memref<128x128xbf16, #tpu.memory_space<vmem>>, vector<128x128xbf16>
    %cst_40 = arith.constant dense<0.000000e+00> : vector<256x128xf32>
    %83 = tpu.matmul %81, %82, %cst_40 {dimension_numbers = #tpu.dot_dimension_numbers<[1], [0], [0], [1], [0, 0, 1, 1], [], []>} : vector<256x128xbf16>, vector<128x128xbf16>, vector<256x128xf32> -> vector<256x128xf32>
    %c0_41 = arith.constant 0 : index
    %c0_42 = arith.constant 0 : index
    %84 = vector.load %arg8[%c0_41, %c0_42] : memref<1x128xf32, #tpu.memory_space<vmem>>, vector<1x128xf32>
    %85 = vector.broadcast %84 : vector<1x128xf32> to vector<256x128xf32>
    %86 = arith.addf %83, %85 : vector<256x128xf32>
    %c0_43 = arith.constant 0 : index
    %87 = arith.index_cast %0 : i32 to index
    %c0_44 = arith.constant 0 : index
    %c0_45 = arith.constant 0 : index
    %88 = vector.load %arg2[%c0_43, %87, %c0_44, %c0_45] : memref<1x16x16x128xbf16, #tpu.memory_space<vmem>>, vector<1x16x16x128xbf16>
    %89 = vector.shape_cast %88 : vector<1x16x16x128xbf16> to vector<16x16x128xbf16>
    %90 = vector.shape_cast %89 : vector<16x16x128xbf16> to vector<256x128xbf16>
    %91 = arith.extf %90 : vector<256x128xbf16> to vector<256x128xf32>
    %92 = arith.addf %86, %91 : vector<256x128xf32>
    %cst_46 = arith.constant 0.000000e+00 : f32
    %93 = vector.broadcast %cst_46 : f32 to vector<256x128xf32>
    %94 = arith.maximumf %92, %93 : vector<256x128xf32>
    %95 = vector.shape_cast %94 : vector<256x128xf32> to vector<16x16x128xf32>
    %96 = vector.extract_strided_slice %30 {offsets = [0, 0, 0], sizes = [16, 16, 1], strides = [1, 1, 1]} : vector<18x16x1xi1> to vector<16x16x1xi1>
    %cst_47 = arith.constant 0.000000e+00 : f32
    %97 = vector.shape_cast %96 : vector<16x16x1xi1> to vector<16x16x1xi1>
    %98 = vector.broadcast %97 : vector<16x16x1xi1> to vector<16x16x128xi1>
    %99 = vector.broadcast %cst_47 : f32 to vector<16x16x128xf32>
    %100 = arith.select %98, %95, %99 : vector<16x16x128xi1>, vector<16x16x128xf32>
    %101 = arith.truncf %100 : vector<16x16x128xf32> to vector<16x16x128xbf16>
    %c0_48 = arith.constant 0 : index
    %c0_49 = arith.constant 0 : index
    %c0_50 = arith.constant 0 : index
    %c0_51 = arith.constant 0 : index
    %102 = vector.load %arg9[%c0_48, %c0_49, %c0_50, %c0_51] : memref<1x16x16x128xbf16, #tpu.memory_space<vmem>>, vector<1x16x16x128xbf16>
    %103 = vector.shape_cast %102 : vector<1x16x16x128xbf16> to vector<16x16x128xbf16>
    %104 = vector.shape_cast %101 : vector<16x16x128xbf16> to vector<1x16x16x128xbf16>
    tpu.vector_store %arg9[%c0_48, %c0_49, %c0_50, %c0_51], %104 {strides = array<i32>} : memref<1x16x16x128xbf16, #tpu.memory_space<vmem>>, vector<1x16x16x128xbf16>,
    return
  }
  func.func @transform_0(%arg0: i32, %arg1: i32) -> (i32, i32, i32, i32) {
    %c0_i32 = arith.constant 0 : i32
    %c0_i32_0 = arith.constant 0 : i32
    %c0_i32_1 = arith.constant 0 : i32
    %c0_i32_2 = arith.constant 0 : i32
    return %arg0, %c0_i32, %c0_i32_0, %c0_i32_1 : i32, i32, i32, i32
  }
  func.func @transform_1(%arg0: i32, %arg1: i32) -> (i32, i32) {
    %c0_i32 = arith.constant 0 : i32
    %c0_i32_0 = arith.constant 0 : i32
    %c0_i32_1 = arith.constant 0 : i32
    return %c0_i32, %c0_i32_0 : i32, i32
  }
  func.func @transform_2(%arg0: i32, %arg1: i32) -> (i32, i32) {
    %c0_i32 = arith.constant 0 : i32
    %c0_i32_0 = arith.constant 0 : i32
    %c0_i32_1 = arith.constant 0 : i32
    return %c0_i32, %c0_i32_0 : i32, i32
  }
  func.func @transform_3(%arg0: i32, %arg1: i32) -> (i32, i32, i32) {
    %c0_i32 = arith.constant 0 : i32
    %c0_i32_0 = arith.constant 0 : i32
    %c0_i32_1 = arith.constant 0 : i32
    %c0_i32_2 = arith.constant 0 : i32
    return %c0_i32, %c0_i32_0, %c0_i32_1 : i32, i32, i32
  }
  func.func @transform_4(%arg0: i32, %arg1: i32) -> (i32, i32) {
    %c0_i32 = arith.constant 0 : i32
    %c0_i32_0 = arith.constant 0 : i32
    %c0_i32_1 = arith.constant 0 : i32
    return %c0_i32, %c0_i32_0 : i32, i32
  }
  func.func @transform_5(%arg0: i32, %arg1: i32) -> (i32, i32) {
    %c0_i32 = arith.constant 0 : i32
    %c0_i32_0 = arith.constant 0 : i32
    %c0_i32_1 = arith.constant 0 : i32
    return %c0_i32, %c0_i32_0 : i32, i32
  }
  func.func @transform_6(%arg0: i32, %arg1: i32) -> (i32, i32) {
    %c0_i32 = arith.constant 0 : i32
    %c0_i32_0 = arith.constant 0 : i32
    %c0_i32_1 = arith.constant 0 : i32
    return %c0_i32, %c0_i32_0 : i32, i32
  }
  func.func @transform_7(%arg0: i32, %arg1: i32) -> (i32, i32, i32, i32) {
    %c0_i32 = arith.constant 0 : i32
    %c0_i32_0 = arith.constant 0 : i32
    %c0_i32_1 = arith.constant 0 : i32
    return %arg0, %arg1, %c0_i32, %c0_i32_0 : i32, i32, i32, i32
  }
}

</mosaic_0001>

<llo_original>
// kernel: bottleneck_padded.1
$region0: #{bottleneck_padded.1}
  #allocation0 [shape = 'u32[]', space=smem, size = 0x4, offset = 0x4, fixed_abs, tag = 'smem constant byte address 0x4 - core index']
  #allocation1 [shape = 'u32[144,128]{1,0:T(1,128)}', space=vmem, size = 0x12000, scoped, tag = 'internal scratch']
  %s0 = inlined_call_operand.hbm [shape: bf16[2,16,16,128], index: 0, kind: input, shape index: {}]
  %s1 = inlined_call_operand.hbm [shape: bf16[128,128], index: 1, kind: input, shape index: {}]
  %s2 = inlined_call_operand.vmem [shape: f32[1,128], index: 2, kind: input, shape index: {}]
  %s3 = inlined_call_operand.hbm [shape: bf16[3,384,128], index: 3, kind: input, shape index: {}]
  %s4 = inlined_call_operand.vmem [shape: f32[1,128], index: 4, kind: input, shape index: {}]
  %s5 = inlined_call_operand.hbm [shape: bf16[128,128], index: 5, kind: input, shape index: {}]
  %s6 = inlined_call_operand.vmem [shape: f32[1,128], index: 6, kind: input, shape index: {}]
  %s7 = inlined_call_operand.hbm [shape: bf16[2,16,16,128], index: 7, kind: output, shape index: {}]
  %s8 = sld [smem:[#allocation0]]
  $region77: #{bottleneck_padded.1} parent=0
    _
  %s10 = ssub.s32 1, %s8
  %s11 = scalar_select 0, %s10, %s8
  $region1: #{bottleneck_padded.1} parent=0
    #allocation2 [shape = 'u8[131072]{0}', space=vmem, size = 0x20000, scoped, tag = 'input window, operand 0']
    #allocation3 [shape = 's32[2]{0}', space=sflag, size = 0x8, scoped, tag = 'scoped memory for bottleneck_padded.1']
    #allocation4 [shape = 's32[2]{0}', space=sflag, size = 0x8, scoped, tag = 'scoped memory for bottleneck_padded.1']
    #allocation5 [shape = 'u8[32768]{0}', space=vmem, size = 0x8000, scoped, tag = 'input window, operand 1, single buffered']
    #allocation6 [shape = 's32[1]{0}', space=sflag, size = 0x4, scoped, tag = 'scoped memory for bottleneck_padded.1']
    #allocation7 [shape = 'u8[294912]{0}', space=vmem, size = 0x48000, scoped, tag = 'input window, operand 3, single buffered']
    #allocation8 [shape = 'u8[32768]{0}', space=vmem, size = 0x8000, scoped, tag = 'input window, operand 5, single buffered']
    #allocation9 [shape = 's32[1]{0}', space=sflag, size = 0x4, scoped, tag = 'scoped memory for bottleneck_padded.1']
    #allocation10 [shape = 'u8[131072]{0}', space=vmem, size = 0x20000, scoped, tag = 'output window, operand 0']
    %12 = vsyncpa [#allocation3], 0
    %s13 = scalar_lea.sflag [#allocation3], 1
    %14 = vsyncpa %s13, 0
    %15 = vsyncpa [#allocation6], 0
    %16 = vsyncpa [#allocation9], 0
    %17 = vsyncpa [#allocation4], 0
    %s18 = scalar_lea.sflag [#allocation4], 1
    %19 = vsyncpa %s18, 0
    loop: start=0, step=1, limit=4
    $region2: #{bottleneck_padded.1} parent=1 // loop_pre_header
      _
    $region3: #{bottleneck_padded.1} parent=1 // loop_header
      %s21 = sphi 0, %s25
      %p22 = scmp.ge.s32.totalorder %s21, 4
      %s28 = sphi 0, %s40
      %s29 = sphi 0, %s36
      %s30 = sphi 0, %s28
      %s31 = sphi 0, %s29
      %s32 = sphi 0, %s30
      %s33 = sphi 0, %s31
      %s43 = sphi 0, %s45
      %s46 = sphi 0, %s43
      %s47 = sphi 0, %s46
      %s63 = sphi 0, %s47
      %s67 = sphi 0, %s67
      %s69 = sphi 0, %s67
      %s70 = sphi 0, %s69
      %s84 = sphi 0, %s70
      %s88 = sphi 0, %s88
      %s90 = sphi 0, %s88
      %s91 = sphi 0, %s90
      %s105 = sphi 0, %s91
      %s109 = sphi 0, %s109
      %s111 = sphi 0, %s109
      %s112 = sphi 0, %s111
      %s126 = sphi 0, %s112
      %s130 = sphi 0, %s130
      %s132 = sphi 0, %s130
      %s133 = sphi 0, %s132
      %s147 = sphi 0, %s133
      %s151 = sphi 0, %s151
      %s153 = sphi 0, %s151
      %s154 = sphi 0, %s153
      %s168 = sphi 0, %s154
      %s172 = sphi 0, %s172
      %s174 = sphi 0, %s172
      %s175 = sphi 0, %s174
      %s189 = sphi 0, %s175
      %s197 = sphi 0, %s199
      %s200 = sphi 0, %s197
      %s201 = sphi 0, %s200
      %s217 = sphi 0, %s201
    $region4: #{bottleneck_padded.1} parent=1 // loop_header_branch
      %24 = sbr.rel (%p22) target = $region8
    $region5: #{bottleneck_padded.1} parent=1 // loop_body
      %s26 = ssub.s32 %s21, 1
      %s27 = ssub.s32 %s21, 2
      %s34 = sadd.s32 1, %s29
      %p35 = scmp.ge.s32.totalorder %s34, 1
      %s36 = scalar_select %p35, 0, %s34
      %s37 = sadd.s32 1, %s28
      %s38 = scalar_select %p35, %s37, %s28
      %p39 = scmp.ge.s32.totalorder %s38, 2
      %s40 = scalar_select %p39, 0, %s38
      %s41 = ssub.s32 %s28, %s40
      %p42 = scmp.eq.s32.totalorder %s41, 0
      %s44 = sadd.s32 %s43, 1
      %s45 = scalar_select %p42, %s43, %s44
      %p48 = pneg %p42
      %p49 = scmp.eq.s32.totalorder %s21, 1
      %p50 = por %p48, %p49
      %p51 = scmp.ne.s32.totalorder %s43, %s46
      %p52 = scmp.eq.s32.totalorder %s21, 0
      %p53 = por %p51, %p52
      %p54 = scmp.ne.s32.totalorder %s43, %s46
      %p55 = scmp.eq.s32.totalorder %s26, 1
      %p56 = por %p54, %p55
      %p57 = scmp.ne.s32.totalorder %s46, %s47
      %p58 = scmp.eq.s32.totalorder %s26, 0
      %p59 = por %p57, %p58
      %p60 = scmp.ne.s32.totalorder %s46, %s47
      %p61 = scmp.eq.s32.totalorder %s27, 1
      %p62 = por %p60, %p61
      %p64 = scmp.ne.s32.totalorder %s47, %s63
      %p65 = scmp.eq.s32.totalorder %s27, 0
      %p66 = por %p64, %p65
      %s68 = sadd.s32 %s67, 1
      %p71 = scmp.eq.s32.totalorder %s21, 1
      %p72 = scmp.ne.s32.totalorder %s67, %s69
      %p73 = scmp.eq.s32.totalorder %s21, 0
      %p74 = por %p72, %p73
      %p75 = scmp.ne.s32.totalorder %s67, %s69
      %p76 = scmp.eq.s32.totalorder %s26, 1
      %p77 = por %p75, %p76
      %p78 = scmp.ne.s32.totalorder %s69, %s70
      %p79 = scmp.eq.s32.totalorder %s26, 0
      %p80 = por %p78, %p79
      %p81 = scmp.ne.s32.totalorder %s69, %s70
      %p82 = scmp.eq.s32.totalorder %s27, 1
      %p83 = por %p81, %p82
      %p85 = scmp.ne.s32.totalorder %s70, %s84
      %p86 = scmp.eq.s32.totalorder %s27, 0
      %p87 = por %p85, %p86
      %s89 = sadd.s32 %s88, 1
      %p92 = scmp.eq.s32.totalorder %s21, 1
      %p93 = scmp.ne.s32.totalorder %s88, %s90
      %p94 = scmp.eq.s32.totalorder %s21, 0
      %p95 = por %p93, %p94
      %p96 = scmp.ne.s32.totalorder %s88, %s90
      %p97 = scmp.eq.s32.totalorder %s26, 1
      %p98 = por %p96, %p97
      %p99 = scmp.ne.s32.totalorder %s90, %s91
      %p100 = scmp.eq.s32.totalorder %s26, 0
      %p101 = por %p99, %p100
      %p102 = scmp.ne.s32.totalorder %s90, %s91
      %p103 = scmp.eq.s32.totalorder %s27, 1
      %p104 = por %p102, %p103
      %p106 = scmp.ne.s32.totalorder %s91, %s105
      %p107 = scmp.eq.s32.totalorder %s27, 0
      %p108 = por %p106, %p107
      %s110 = sadd.s32 %s109, 1
      %p113 = scmp.eq.s32.totalorder %s21, 1
      %p114 = scmp.ne.s32.totalorder %s109, %s111
      %p115 = scmp.eq.s32.totalorder %s21, 0
      %p116 = por %p114, %p115
      %p117 = scmp.ne.s32.totalorder %s109, %s111
      %p118 = scmp.eq.s32.totalorder %s26, 1
      %p119 = por %p117, %p118
      %p120 = scmp.ne.s32.totalorder %s111, %s112
      %p121 = scmp.eq.s32.totalorder %s26, 0
      %p122 = por %p120, %p121
      %p123 = scmp.ne.s32.totalorder %s111, %s112
      %p124 = scmp.eq.s32.totalorder %s27, 1
      %p125 = por %p123, %p124
      %p127 = scmp.ne.s32.totalorder %s112, %s126
      %p128 = scmp.eq.s32.totalorder %s27, 0
      %p129 = por %p127, %p128
      %s131 = sadd.s32 %s130, 1
      %p134 = scmp.eq.s32.totalorder %s21, 1
      %p135 = scmp.ne.s32.totalorder %s130, %s132
      %p136 = scmp.eq.s32.totalorder %s21, 0
      %p137 = por %p135, %p136
      %p138 = scmp.ne.s32.totalorder %s130, %s132
      %p139 = scmp.eq.s32.totalorder %s26, 1
      %p140 = por %p138, %p139
      %p141 = scmp.ne.s32.totalorder %s132, %s133
      %p142 = scmp.eq.s32.totalorder %s26, 0
      %p143 = por %p141, %p142
      %p144 = scmp.ne.s32.totalorder %s132, %s133
      %p145 = scmp.eq.s32.totalorder %s27, 1
      %p146 = por %p144, %p145
      %p148 = scmp.ne.s32.totalorder %s133, %s147
      %p149 = scmp.eq.s32.totalorder %s27, 0
      %p150 = por %p148, %p149
      %s152 = sadd.s32 %s151, 1
      %p155 = scmp.eq.s32.totalorder %s21, 1
      %p156 = scmp.ne.s32.totalorder %s151, %s153
      %p157 = scmp.eq.s32.totalorder %s21, 0
      %p158 = por %p156, %p157
      %p159 = scmp.ne.s32.totalorder %s151, %s153
      %p160 = scmp.eq.s32.totalorder %s26, 1
      %p161 = por %p159, %p160
      %p162 = scmp.ne.s32.totalorder %s153, %s154
      %p163 = scmp.eq.s32.totalorder %s26, 0
      %p164 = por %p162, %p163
      %p165 = scmp.ne.s32.totalorder %s153, %s154
      %p166 = scmp.eq.s32.totalorder %s27, 1
      %p167 = por %p165, %p166
      %p169 = scmp.ne.s32.totalorder %s154, %s168
      %p170 = scmp.eq.s32.totalorder %s27, 0
      %p171 = por %p169, %p170
      %s173 = sadd.s32 %s172, 1
      %p176 = scmp.eq.s32.totalorder %s21, 1
      %p177 = scmp.ne.s32.totalorder %s172, %s174
      %p178 = scmp.eq.s32.totalorder %s21, 0
      %p179 = por %p177, %p178
      %p180 = scmp.ne.s32.totalorder %s172, %s174
      %p181 = scmp.eq.s32.totalorder %s26, 1
      %p182 = por %p180, %p181
      %p183 = scmp.ne.s32.totalorder %s174, %s175
      %p184 = scmp.eq.s32.totalorder %s26, 0
      %p185 = por %p183, %p184
      %p186 = scmp.ne.s32.totalorder %s174, %s175
      %p187 = scmp.eq.s32.totalorder %s27, 1
      %p188 = por %p186, %p187
      %p190 = scmp.ne.s32.totalorder %s175, %s189
      %p191 = scmp.eq.s32.totalorder %s27, 0
      %p192 = por %p190, %p191
      %s193 = ssub.s32 %s28, %s40
      %s194 = ssub.s32 %s29, %s36
      %s195 = sor.u32 %s193, %s194
      %p196 = scmp.eq.s32.totalorder %s195, 0
      %s198 = sadd.s32 %s197, 1
      %s199 = scalar_select %p196, %s197, %s198
      %p202 = pneg %p196
      %p203 = scmp.eq.s32.totalorder %s21, 1
      %p204 = por %p202, %p203
      %p205 = scmp.ne.s32.totalorder %s197, %s200
      %p206 = scmp.eq.s32.totalorder %s21, 0
      %p207 = por %p205, %p206
      %p208 = scmp.ne.s32.totalorder %s197, %s200
      %p209 = scmp.eq.s32.totalorder %s26, 1
      %p210 = por %p208, %p209
      %p211 = scmp.ne.s32.totalorder %s200, %s201
      %p212 = scmp.eq.s32.totalorder %s26, 0
      %p213 = por %p211, %p212
      %p214 = scmp.ne.s32.totalorder %s200, %s201
      %p215 = scmp.eq.s32.totalorder %s27, 1
      %p216 = por %p214, %p215
      %p218 = scmp.ne.s32.totalorder %s201, %s217
      %p219 = scmp.eq.s32.totalorder %s27, 0
      %p220 = por %p218, %p219
      %p221 = scmp.le.s32.totalorder 1, %s21
      %p222 = scmp.lt.s32.totalorder %s21, 3
      %p223 = pnand %p221, %p222
      %p224 = pneg %p223
      // Predicated region
      $region9: #{bottleneck_padded.1} parent=5 // pred_check
        _
      $region10: #{bottleneck_padded.1} parent=5 // pred_check_branch
        %226 = sbr.rel (%p223) target = $region12
      $region11: #{bottleneck_padded.1} parent=5 // pred_region
        %s227 = ssub.s32 %s21, 1
        // Predicated region
        $region13: #{bottleneck_padded.1} parent=11 // pred_check
          %p228 = pneg %p80
        $region14: #{bottleneck_padded.1} parent=11 // pred_check_branch
          %230 = sbr.rel (%p228) target = $region16
        $region15: #{bottleneck_padded.1} parent=11 // pred_region
          %s232 = ssub.s32 1024, 1024
          %233 = vsyncadd [#allocation6], %s232
          %s234 = sshll.u32 [#allocation5], 4
          %s235 = int_to_ptr.vmem [resolvable:$true] %s234
          %240 = dma.hbm_to_vmem [thread:$0]  %s1, 1024, %s235, [#allocation6], 64, 64, 4
        $region16: #{bottleneck_padded.1} parent=11 // pred_fallthru
          _
        // Predicated region
        $region17: #{bottleneck_padded.1} parent=11 // pred_check
          %p241 = pneg %p101
        $region18: #{bottleneck_padded.1} parent=11 // pred_check_branch
          %243 = sbr.rel (%p241) target = $region20
        $region19: #{bottleneck_padded.1} parent=11 // pred_region
          _
        $region20: #{bottleneck_padded.1} parent=11 // pred_fallthru
          _
        // Predicated region
        $region21: #{bottleneck_padded.1} parent=11 // pred_check
          %p244 = pneg %p122
        $region22: #{bottleneck_padded.1} parent=11 // pred_check_branch
          %246 = sbr.rel (%p244) target = $region24
        $region23: #{bottleneck_padded.1} parent=11 // pred_region
          %s248 = ssub.s32 9216, 9216
          %249 = vsyncadd [#allocation6], %s248
          %s250 = sshll.u32 [#allocation7], 4
          %s251 = int_to_ptr.vmem [resolvable:$true] %s250
          %256 = dma.hbm_to_vmem [thread:$0]  %s3, 9216, %s251, [#allocation6], 64, 64, 4
        $region24: #{bottleneck_padded.1} parent=11 // pred_fallthru
          _
        // Predicated region
        $region25: #{bottleneck_padded.1} parent=11 // pred_check
          %p257 = pneg %p143
        $region26: #{bottleneck_padded.1} parent=11 // pred_check_branch
          %259 = sbr.rel (%p257) target = $region28
        $region27: #{bottleneck_padded.1} parent=11 // pred_region
          _
        $region28: #{bottleneck_padded.1} parent=11 // pred_fallthru
          _
        // Predicated region
        $region29: #{bottleneck_padded.1} parent=11 // pred_check
          %p260 = pneg %p164
        $region30: #{bottleneck_padded.1} parent=11 // pred_check_branch
          %262 = sbr.rel (%p260) target = $region32
        $region31: #{bottleneck_padded.1} parent=11 // pred_region
          %s264 = ssub.s32 1024, 1024
          %265 = vsyncadd [#allocation9], %s264
          %s266 = sshll.u32 [#allocation8], 4
          %s267 = int_to_ptr.vmem [resolvable:$true] %s266
          %272 = dma.hbm_to_vmem [thread:$0]  %s5, 1024, %s267, [#allocation9], 64, 64, 4
        $region32: #{bottleneck_padded.1} parent=11 // pred_fallthru
          _
        // Predicated region
        $region33: #{bottleneck_padded.1} parent=11 // pred_check
          %p273 = pneg %p185
        $region34: #{bottleneck_padded.1} parent=11 // pred_check_branch
          %275 = sbr.rel (%p273) target = $region36
        $region35: #{bottleneck_padded.1} parent=11 // pred_region
          _
        $region36: #{bottleneck_padded.1} parent=11 // pred_fallthru
          _
      $region12: #{bottleneck_padded.1} parent=5 // pred_fallthru
        _
      %p276 = scmp.lt.s32.totalorder %s21, 2
      // Predicated region
      $region37: #{bottleneck_padded.1} parent=5 // pred_check
        %p277 = pneg %p276
      $region38: #{bottleneck_padded.1} parent=5 // pred_check_branch
        %279 = sbr.rel (%p277) target = $region40
      $region39: #{bottleneck_padded.1} parent=5 // pred_region
        // Predicated region
        $region41: #{bottleneck_padded.1} parent=39 // pred_check
          %p280 = pneg %p53
        $region42: #{bottleneck_padded.1} parent=39 // pred_check_branch
          %282 = sbr.rel (%p280) target = $region44
        $region43: #{bottleneck_padded.1} parent=39 // pred_region
          %s283 = sand.u32 %s43, 1
          %s284 = scalar_lea.sflag [#allocation3], %s283
          %s285 = sand.u32 %s43, 1
          %s286 = smul.addr %s285, 128
          %s287 = scalar_lea.vmem [#allocation2], %s286
          %s289 = ssub.s32 2048, 2048
          %290 = vsyncadd %s284, %s289
          %s291 = smul.addr %s28, 32
          %s292 = smul.addr %s291, 64
          %s293 = scalar_lea.hbm %s0, %s292
          %s294 = sshll.u32 %s287, 4
          %s295 = int_to_ptr.vmem [resolvable:$true] %s294
          %300 = dma.hbm_to_vmem [thread:$0]  %s293, 2048, %s295, %s284, 64, 64, 4
        $region44: #{bottleneck_padded.1} parent=39 // pred_fallthru
          _
      $region40: #{bottleneck_padded.1} parent=5 // pred_fallthru
        _
      %p301 = scmp.le.s32.totalorder 1, %s21
      %p302 = scmp.lt.s32.totalorder %s21, 3
      %p303 = pnand %p301, %p302
      %p304 = pneg %p303
      // Predicated region
      $region45: #{bottleneck_padded.1} parent=5 // pred_check
        _
      $region46: #{bottleneck_padded.1} parent=5 // pred_check_branch
        %306 = sbr.rel (%p303) target = $region48
      $region47: #{bottleneck_padded.1} parent=5 // pred_region
        %s307 = ssub.s32 %s21, 1
        %s308 = sand.u32 %s46, 1
        %s309 = scalar_lea.sflag [#allocation3], %s308
        %s310 = sand.u32 %s46, 1
        %s311 = smul.addr %s310, 128
        %s312 = scalar_lea.vmem [#allocation2], %s311
        // Predicated region
        $region49: #{bottleneck_padded.1} parent=47 // pred_check
          %p313 = pneg %p59
        $region50: #{bottleneck_padded.1} parent=47 // pred_check_branch
          %315 = sbr.rel (%p313) target = $region52
        $region51: #{bottleneck_padded.1} parent=47 // pred_region
          %316 = dma.done %s309, 2048
        $region52: #{bottleneck_padded.1} parent=47 // pred_fallthru
          _
        // Predicated region
        $region53: #{bottleneck_padded.1} parent=47 // pred_check
          %p317 = pneg %p80
        $region54: #{bottleneck_padded.1} parent=47 // pred_check_branch
          %319 = sbr.rel (%p317) target = $region56
        $region55: #{bottleneck_padded.1} parent=47 // pred_region
          %320 = dma.done [#allocation6], 1024
        $region56: #{bottleneck_padded.1} parent=47 // pred_fallthru
          _
        // Predicated region
        $region57: #{bottleneck_padded.1} parent=47 // pred_check
          %p321 = pneg %p122
        $region58: #{bottleneck_padded.1} parent=47 // pred_check_branch
          %323 = sbr.rel (%p321) target = $region60
        $region59: #{bottleneck_padded.1} parent=47 // pred_region
          %324 = dma.done [#allocation6], 9216
        $region60: #{bottleneck_padded.1} parent=47 // pred_fallthru
          _
        // Predicated region
        $region61: #{bottleneck_padded.1} parent=47 // pred_check
          %p325 = pneg %p164
        $region62: #{bottleneck_padded.1} parent=47 // pred_check_branch
          %327 = sbr.rel (%p325) target = $region64
        $region63: #{bottleneck_padded.1} parent=47 // pred_region
          %328 = dma.done [#allocation9], 1024
        $region64: #{bottleneck_padded.1} parent=47 // pred_fallthru
          _
        %s329 = sand.u32 %s46, 1
        %s330 = scalar_lea.sflag [#allocation3], %s329
        %s331 = sand.u32 %s46, 1
        %s332 = smul.addr %s331, 128
        %s333 = scalar_lea.vmem [#allocation2], %s332
        %p334 = pneg %p59
        %p335 = pneg %p56
        %p336 = pneg %p80
        %p337 = pneg %p77
        %p338 = pneg %p101
        %p339 = pneg %p98
        %p340 = pneg %p122
        %p341 = pneg %p119
        %p342 = pneg %p143
        %p343 = pneg %p140
        %p344 = pneg %p164
        %p345 = pneg %p161
        %p346 = pneg %p185
        %p347 = pneg %p182
        %p348 = pneg %p213
        %p349 = pneg %p210
        %s350 = sand.u32 %s200, 1
        %s351 = scalar_lea.sflag [#allocation4], %s350
        %s352 = sand.u32 %s200, 1
        %s353 = smul.addr %s352, 128
        %s354 = scalar_lea.vmem [#allocation10], %s353
        %s355 = smul.u32 16, %s31
        %s357 = smul.u32 %s31, 16
        %s358 = ssub.s32 %s357, 1
        %p359 = scmp.gt.s32.totalorder %s358, 0
        %s360 = scalar_select %p359, %s358, 0
        %s361 = smul.u32 %s360, 2
        %s362 = smul.addr %s361, 4
        %s363 = scalar_lea.vmem %s312, %s362 [#allocation2]
        %v364 = vld [vmem:[%s363] sm:$0xf]
        %v365 = vld [vmem:[%s363 + $0x4] sm:$0xf]
        %s366 = smul.u32 %s357, 2
        %s367 = smul.addr %s366, 4
        %s368 = scalar_lea.vmem %s312, %s367 [#allocation2]
        %v369 = vld [vmem:[%s368] sm:$0xf]
        %v370 = vld [vmem:[%s368 + $0x4] sm:$0xf]
        %v371 = vld [vmem:[%s368 + $0x8] sm:$0xf]
        %v372 = vld [vmem:[%s368 + $0xc] sm:$0xf]
        %v373 = vld [vmem:[%s368 + $0x10] sm:$0xf]
        %v374 = vld [vmem:[%s368 + $0x14] sm:$0xf]
        %v375 = vld [vmem:[%s368 + $0x18] sm:$0xf]
        %v376 = vld [vmem:[%s368 + $0x1c] sm:$0xf]
        %v377 = vld [vmem:[%s368 + $0x20] sm:$0xf]
        %v378 = vld [vmem:[%s368 + $0x24] sm:$0xf]
        %v379 = vld [vmem:[%s368 + $0x28] sm:$0xf]
        %v380 = vld [vmem:[%s368 + $0x2c] sm:$0xf]
        %v381 = vld [vmem:[%s368 + $0x30] sm:$0xf]
        %v382 = vld [vmem:[%s368 + $0x34] sm:$0xf]
        %v383 = vld [vmem:[%s368 + $0x38] sm:$0xf]
        %v384 = vld [vmem:[%s368 + $0x3c] sm:$0xf]
        %v385 = vld [vmem:[%s368 + $0x40] sm:$0xf]
        %v386 = vld [vmem:[%s368 + $0x44] sm:$0xf]
        %v387 = vld [vmem:[%s368 + $0x48] sm:$0xf]
        %v388 = vld [vmem:[%s368 + $0x4c] sm:$0xf]
        %v389 = vld [vmem:[%s368 + $0x50] sm:$0xf]
        %v390 = vld [vmem:[%s368 + $0x54] sm:$0xf]
        %v391 = vld [vmem:[%s368 + $0x58] sm:$0xf]
        %v392 = vld [vmem:[%s368 + $0x5c] sm:$0xf]
        %v393 = vld [vmem:[%s368 + $0x60] sm:$0xf]
        %v394 = vld [vmem:[%s368 + $0x64] sm:$0xf]
        %v395 = vld [vmem:[%s368 + $0x68] sm:$0xf]
        %v396 = vld [vmem:[%s368 + $0x6c] sm:$0xf]
        %v397 = vld [vmem:[%s368 + $0x70] sm:$0xf]
        %v398 = vld [vmem:[%s368 + $0x74] sm:$0xf]
        %v399 = vld [vmem:[%s368 + $0x78] sm:$0xf]
        %v400 = vld [vmem:[%s368 + $0x7c] sm:$0xf]
        %s401 = sadd.s32 %s357, 16
        %p402 = scmp.lt.s32.totalorder %s401, 15
        %s403 = scalar_select %p402, %s401, 15
        %s404 = smul.u32 %s403, 2
        %s405 = smul.addr %s404, 4
        %s406 = scalar_lea.vmem %s312, %s405 [#allocation2]
        %v407 = vld [vmem:[%s406] sm:$0xf]
        %v408 = vld [vmem:[%s406 + $0x4] sm:$0xf]
        %v409 = vld [vmem:[#allocation5] sm:$0xf]
        %v410 = vld [vmem:[#allocation5 + $0x4] sm:$0xf]
        %v411 = vld [vmem:[#allocation5 + $0x8] sm:$0xf]
        %v412 = vld [vmem:[#allocation5 + $0xc] sm:$0xf]
        %v413 = vld [vmem:[#allocation5 + $0x10] sm:$0xf]
        %v414 = vld [vmem:[#allocation5 + $0x14] sm:$0xf]
        %v415 = vld [vmem:[#allocation5 + $0x18] sm:$0xf]
        %v416 = vld [vmem:[#allocation5 + $0x1c] sm:$0xf]
        %v417 = vld [vmem:[#allocation5 + $0x20] sm:$0xf]
        %v418 = vld [vmem:[#allocation5 + $0x24] sm:$0xf]
        %v419 = vld [vmem:[#allocation5 + $0x28] sm:$0xf]
        %v420 = vld [vmem:[#allocation5 + $0x2c] sm:$0xf]
        %v421 = vld [vmem:[#allocation5 + $0x30] sm:$0xf]
        %v422 = vld [vmem:[#allocation5 + $0x34] sm:$0xf]
        %v423 = vld [vmem:[#allocation5 + $0x38] sm:$0xf]
        %v424 = vld [vmem:[#allocation5 + $0x3c] sm:$0xf]
        %v425 = vld [vmem:[%s2] sm:$0x1]
        %v427 = vlaneseq
        %v428 = vshrl.u32 %v427, 7
        %v429 = vsub.s32 0, %v428
        %v430 = vrot.slane %v425, %v429
        %v468 = vunpack.c.l.b16 %v364
        %v469 = vunpack.c.l.b16 %v365
        %v470 = vunpack.c.l.b16 %v369
        %v471 = vunpack.c.l.b16 %v370
        %v472 = vunpack.c.l.b16 %v371
        %v473 = vunpack.c.l.b16 %v372
        %v474 = vunpack.c.l.b16 %v373
        %v475 = vunpack.c.l.b16 %v374
        %v476 = vunpack.c.l.b16 %v375
        %v477 = vunpack.c.l.b16 %v376
        %v478 = vunpack.c.l.b16 %v377
        %v479 = vunpack.c.l.b16 %v378
        %v480 = vunpack.c.l.b16 %v379
        %v481 = vunpack.c.l.b16 %v380
        %v482 = vunpack.c.l.b16 %v381
        %v483 = vunpack.c.l.b16 %v382
        %v484 = vunpack.c.l.b16 %v383
        %v485 = vunpack.c.l.b16 %v384
        %v486 = vunpack.c.l.b16 %v385
        %v487 = vunpack.c.l.b16 %v386
        %v488 = vunpack.c.l.b16 %v387
        %v489 = vunpack.c.l.b16 %v388
        %v490 = vunpack.c.l.b16 %v389
        %v491 = vunpack.c.l.b16 %v390
        %v492 = vunpack.c.l.b16 %v391
        %v493 = vunpack.c.l.b16 %v392
        %v494 = vunpack.c.l.b16 %v393
        %v495 = vunpack.c.l.b16 %v394
        %v496 = vunpack.c.l.b16 %v395
        %v497 = vunpack.c.l.b16 %v396
        %v498 = vunpack.c.l.b16 %v397
        %v499 = vunpack.c.l.b16 %v398
        %v500 = vunpack.c.l.b16 %v399
        %v501 = vunpack.c.l.b16 %v400
        %v502 = vunpack.c.l.b16 %v407
        %v503 = vunpack.c.l.b16 %v408
        %v504 = vpack.c.b16 %v469, %v468
        %v505 = vpack.c.b16 %v471, %v470
        %v506 = vpack.c.b16 %v473, %v472
        %v507 = vpack.c.b16 %v475, %v474
        %v508 = vpack.c.b16 %v477, %v476
        %v509 = vpack.c.b16 %v479, %v478
        %v510 = vpack.c.b16 %v481, %v480
        %v511 = vpack.c.b16 %v483, %v482
        %v512 = vpack.c.b16 %v485, %v484
        %v513 = vpack.c.b16 %v487, %v486
        %v514 = vpack.c.b16 %v489, %v488
        %v515 = vpack.c.b16 %v491, %v490
        %v516 = vpack.c.b16 %v493, %v492
        %v517 = vpack.c.b16 %v495, %v494
        %v518 = vpack.c.b16 %v497, %v496
        %v519 = vpack.c.b16 %v499, %v498
        %v520 = vpack.c.b16 %v501, %v500
        %v521 = vpack.c.b16 %v503, %v502
        %v556 = vunpack.c.l.b16 %v409
        %v557 = vunpack.c.l.b16 %v410
        %v558 = vunpack.c.l.b16 %v411
        %v559 = vunpack.c.l.b16 %v412
        %v560 = vunpack.c.l.b16 %v413
        %v561 = vunpack.c.l.b16 %v414
        %v562 = vunpack.c.l.b16 %v415
        %v563 = vunpack.c.l.b16 %v416
        %v564 = vunpack.c.l.b16 %v417
        %v565 = vunpack.c.l.b16 %v418
        %v566 = vunpack.c.l.b16 %v419
        %v567 = vunpack.c.l.b16 %v420
        %v568 = vunpack.c.l.b16 %v421
        %v569 = vunpack.c.l.b16 %v422
        %v570 = vunpack.c.l.b16 %v423
        %v571 = vunpack.c.l.b16 %v424
        %v572 = vpack.c.b16 %v557, %v556
        %v573 = vpack.c.b16 %v559, %v558
        %v574 = vpack.c.b16 %v561, %v560
        %v575 = vpack.c.b16 %v563, %v562
        %v576 = vpack.c.b16 %v565, %v564
        %v577 = vpack.c.b16 %v567, %v566
        %v578 = vpack.c.b16 %v569, %v568
        %v579 = vpack.c.b16 %v571, %v570
        %588 = vmatprep.subr.bf16.mxu0 0
        %589 = vmatpush1.bf16.msra.mxu0 %v572
        %590 = vmatprep.subr.bf16.mxu0 0
        %591 = vmatpush1.bf16.msra.mxu0 %v573
        %592 = vmatprep.subr.bf16.mxu0 0
        %593 = vmatpush1.bf16.msra.mxu0 %v574
        %594 = vmatprep.subr.bf16.mxu0 0
        %595 = vmatpush1.bf16.msra.mxu0 %v575
        %596 = vmatprep.subr.bf16.mxu0 0
        %597 = vmatpush1.bf16.msra.mxu0 %v576
        %598 = vmatprep.subr.bf16.mxu0 0
        %599 = vmatpush1.bf16.msra.mxu0 %v577
        %600 = vmatprep.subr.bf16.mxu0 0
        %601 = vmatpush1.bf16.msra.mxu0 %v578
        %602 = vmatprep.subr.bf16.mxu0 0
        %603 = vmatpush1.bf16.msra.mxu0 %v579
        %604 = vmatprep.subr.bf16.mxu0 0
        %605 = vmatpush1.bf16.msra.mxu0 0
        %606 = vmatprep.subr.bf16.mxu0 0
        %607 = vmatpush1.bf16.msra.mxu0 0
        %608 = vmatprep.subr.bf16.mxu0 0
        %609 = vmatpush1.bf16.msra.mxu0 0
        %610 = vmatprep.subr.bf16.mxu0 0
        %611 = vmatpush1.bf16.msra.mxu0 0
        %612 = vmatprep.subr.bf16.mxu0 0
        %613 = vmatpush1.bf16.msra.mxu0 0
        %614 = vmatprep.subr.bf16.mxu0 0
        %615 = vmatpush1.bf16.msra.mxu0 0
        %616 = vmatprep.subr.bf16.mxu0 0
        %617 = vmatpush1.bf16.msra.mxu0 0
        %618 = vmatprep.subr.bf16.mxu0 0
        %619 = vmatpush1.bf16.msra.mxu0 0
        %620 = vmatprep.mubr.bf16.mxu0 0
        %621 = vmatmul.mubr.bf16.gmra.mrb[0].mxu0 %v504
        %v622 = vpop.f32.mrb[0].mxu0
        %v623 = vadd.f32 %v430, %v622
        %v624 = vpop.f32.mrb[0].mxu0
        %v625 = vpop.f32.mrb[0].mxu0
        %v626 = vadd.f32 %v430, %v625
        %v627 = vpop.f32.mrb[0].mxu0
        %628 = vmatprep.mubr.bf16.mxu0 0
        %629 = vmatmul.mubr.bf16.gmra.mrb[0].mxu0 %v505
        %v630 = vpop.f32.mrb[0].mxu0
        %v631 = vadd.f32 %v430, %v630
        %v632 = vpop.f32.mrb[0].mxu0
        %v633 = vpop.f32.mrb[0].mxu0
        %v634 = vadd.f32 %v430, %v633
        %v635 = vpop.f32.mrb[0].mxu0
        %636 = vmatprep.mubr.bf16.mxu0 0
        %637 = vmatmul.mubr.bf16.gmra.mrb[0].mxu0 %v506
        %v638 = vpop.f32.mrb[0].mxu0
        %v639 = vadd.f32 %v430, %v638
        %v640 = vpop.f32.mrb[0].mxu0
        %v641 = vpop.f32.mrb[0].mxu0
        %v642 = vadd.f32 %v430, %v641
        %v643 = vpop.f32.mrb[0].mxu0
        %644 = vmatprep.mubr.bf16.mxu0 0
        %645 = vmatmul.mubr.bf16.gmra.mrb[0].mxu0 %v507
        %v646 = vpop.f32.mrb[0].mxu0
        %v647 = vadd.f32 %v430, %v646
        %v648 = vpop.f32.mrb[0].mxu0
        %v649 = vpop.f32.mrb[0].mxu0
        %v650 = vadd.f32 %v430, %v649
        %v651 = vpop.f32.mrb[0].mxu0
        %652 = vmatprep.mubr.bf16.mxu0 0
        %653 = vmatmul.mubr.bf16.gmra.mrb[0].mxu0 %v508
        %v654 = vpop.f32.mrb[0].mxu0
        %v655 = vadd.f32 %v430, %v654
        %v656 = vpop.f32.mrb[0].mxu0
        %v657 = vpop.f32.mrb[0].mxu0
        %v658 = vadd.f32 %v430, %v657
        %v659 = vpop.f32.mrb[0].mxu0
        %660 = vmatprep.mubr.bf16.mxu0 0
        %661 = vmatmul.mubr.bf16.gmra.mrb[0].mxu0 %v509
        %v662 = vpop.f32.mrb[0].mxu0
        %v663 = vadd.f32 %v430, %v662
        %v664 = vpop.f32.mrb[0].mxu0
        %v665 = vpop.f32.mrb[0].mxu0
        %v666 = vadd.f32 %v430, %v665
        %v667 = vpop.f32.mrb[0].mxu0
        %668 = vmatprep.mubr.bf16.mxu0 0
        %669 = vmatmul.mubr.bf16.gmra.mrb[0].mxu0 %v510
        %v670 = vpop.f32.mrb[0].mxu0
        %v671 = vadd.f32 %v430, %v670
        %v672 = vpop.f32.mrb[0].mxu0
        %v673 = vpop.f32.mrb[0].mxu0
        %v674 = vadd.f32 %v430, %v673
        %v675 = vpop.f32.mrb[0].mxu0
        %676 = vmatprep.mubr.bf16.mxu0 0
        %677 = vmatmul.mubr.bf16.gmra.mrb[0].mxu0 %v511
        %v678 = vpop.f32.mrb[0].mxu0
        %v679 = vadd.f32 %v430, %v678
        %v680 = vpop.f32.mrb[0].mxu0
        %v681 = vpop.f32.mrb[0].mxu0
        %v682 = vadd.f32 %v430, %v681
        %v683 = vpop.f32.mrb[0].mxu0
        %684 = vmatprep.mubr.bf16.mxu0 0
        %685 = vmatmul.mubr.bf16.gmra.mrb[0].mxu0 %v512
        %v686 = vpop.f32.mrb[0].mxu0
        %v687 = vadd.f32 %v430, %v686
        %v688 = vpop.f32.mrb[0].mxu0
        %v689 = vpop.f32.mrb[0].mxu0
        %v690 = vadd.f32 %v430, %v689
        %v691 = vpop.f32.mrb[0].mxu0
        %692 = vmatprep.mubr.bf16.mxu0 0
        %693 = vmatmul.mubr.bf16.gmra.mrb[0].mxu0 %v513
        %v694 = vpop.f32.mrb[0].mxu0
        %v695 = vadd.f32 %v430, %v694
        %v696 = vpop.f32.mrb[0].mxu0
        %v697 = vpop.f32.mrb[0].mxu0
        %v698 = vadd.f32 %v430, %v697
        %v699 = vpop.f32.mrb[0].mxu0
        %700 = vmatprep.mubr.bf16.mxu0 0
        %701 = vmatmul.mubr.bf16.gmra.mrb[0].mxu0 %v514
        %v702 = vpop.f32.mrb[0].mxu0
        %v703 = vadd.f32 %v430, %v702
        %v704 = vpop.f32.mrb[0].mxu0
        %v705 = vpop.f32.mrb[0].mxu0
        %v706 = vadd.f32 %v430, %v705
        %v707 = vpop.f32.mrb[0].mxu0
        %708 = vmatprep.mubr.bf16.mxu0 0
        %709 = vmatmul.mubr.bf16.gmra.mrb[0].mxu0 %v515
        %v710 = vpop.f32.mrb[0].mxu0
        %v711 = vadd.f32 %v430, %v710
        %v712 = vpop.f32.mrb[0].mxu0
        %v713 = vpop.f32.mrb[0].mxu0
        %v714 = vadd.f32 %v430, %v713
        %v715 = vpop.f32.mrb[0].mxu0
        %716 = vmatprep.mubr.bf16.mxu0 0
        %717 = vmatmul.mubr.bf16.gmra.mrb[0].mxu0 %v516
        %v718 = vpop.f32.mrb[0].mxu0
        %v719 = vadd.f32 %v430, %v718
        %v720 = vpop.f32.mrb[0].mxu0
        %v721 = vpop.f32.mrb[0].mxu0
        %v722 = vadd.f32 %v430, %v721
        %v723 = vpop.f32.mrb[0].mxu0
        %724 = vmatprep.mubr.bf16.mxu0 0
        %725 = vmatmul.mubr.bf16.gmra.mrb[0].mxu0 %v517
        %v726 = vpop.f32.mrb[0].mxu0
        %v727 = vadd.f32 %v430, %v726
        %v728 = vpop.f32.mrb[0].mxu0
        %v729 = vpop.f32.mrb[0].mxu0
        %v730 = vadd.f32 %v430, %v729
        %v731 = vpop.f32.mrb[0].mxu0
        %732 = vmatprep.mubr.bf16.mxu0 0
        %733 = vmatmul.mubr.bf16.gmra.mrb[0].mxu0 %v518
        %v734 = vpop.f32.mrb[0].mxu0
        %v735 = vadd.f32 %v430, %v734
        %v736 = vpop.f32.mrb[0].mxu0
        %v737 = vpop.f32.mrb[0].mxu0
        %v738 = vadd.f32 %v430, %v737
        %v739 = vpop.f32.mrb[0].mxu0
        %740 = vmatprep.mubr.bf16.mxu0 0
        %741 = vmatmul.mubr.bf16.gmra.mrb[0].mxu0 %v519
        %v742 = vpop.f32.mrb[0].mxu0
        %v743 = vadd.f32 %v430, %v742
        %v744 = vpop.f32.mrb[0].mxu0
        %v745 = vpop.f32.mrb[0].mxu0
        %v746 = vadd.f32 %v430, %v745
        %v747 = vpop.f32.mrb[0].mxu0
        %748 = vmatprep.mubr.bf16.mxu0 0
        %749 = vmatmul.mubr.bf16.gmra.mrb[0].mxu0 %v520
        %v750 = vpop.f32.mrb[0].mxu0
        %v751 = vadd.f32 %v430, %v750
        %v752 = vpop.f32.mrb[0].mxu0
        %v753 = vpop.f32.mrb[0].mxu0
        %v754 = vadd.f32 %v430, %v753
        %v755 = vpop.f32.mrb[0].mxu0
        %756 = vmatprep.mubr.bf16.mxu0 0
        %757 = vmatmul.mubr.bf16.gmra.mrb[0].mxu0 %v521
        %v758 = vpop.f32.mrb[0].mxu0
        %v759 = vadd.f32 %v430, %v758
        %v760 = vpop.f32.mrb[0].mxu0
        %v761 = vpop.f32.mrb[0].mxu0
        %v762 = vadd.f32 %v430, %v761
        %v763 = vpop.f32.mrb[0].mxu0
        %764 = vdwg.mxu0
        %v765 = vmax.f32 %v623, 0.0
        %v766 = vmax.f32 %v626, 0.0
        %v767 = vmax.f32 %v631, 0.0
        %v768 = vmax.f32 %v634, 0.0
        %v769 = vmax.f32 %v639, 0.0
        %v770 = vmax.f32 %v642, 0.0
        %v771 = vmax.f32 %v647, 0.0
        %v772 = vmax.f32 %v650, 0.0
        %v773 = vmax.f32 %v655, 0.0
        %v774 = vmax.f32 %v658, 0.0
        %v775 = vmax.f32 %v663, 0.0
        %v776 = vmax.f32 %v666, 0.0
        %v777 = vmax.f32 %v671, 0.0
        %v778 = vmax.f32 %v674, 0.0
        %v779 = vmax.f32 %v679, 0.0
        %v780 = vmax.f32 %v682, 0.0
        %v781 = vmax.f32 %v687, 0.0
        %v782 = vmax.f32 %v690, 0.0
        %v783 = vmax.f32 %v695, 0.0
        %v784 = vmax.f32 %v698, 0.0
        %v785 = vmax.f32 %v703, 0.0
        %v786 = vmax.f32 %v706, 0.0
        %v787 = vmax.f32 %v711, 0.0
        %v788 = vmax.f32 %v714, 0.0
        %v789 = vmax.f32 %v719, 0.0
        %v790 = vmax.f32 %v722, 0.0
        %v791 = vmax.f32 %v727, 0.0
        %v792 = vmax.f32 %v730, 0.0
        %v793 = vmax.f32 %v735, 0.0
        %v794 = vmax.f32 %v738, 0.0
        %v795 = vmax.f32 %v743, 0.0
        %v796 = vmax.f32 %v746, 0.0
        %v797 = vmax.f32 %v751, 0.0
        %v798 = vmax.f32 %v754, 0.0
        %v799 = vmax.f32 %v759, 0.0
        %v800 = vmax.f32 %v762, 0.0
        %v801 = vstv %s358
        %v802 = vadd.s32 %v801, 1
        %v803 = vadd.s32 %v801, 2
        %v804 = vadd.s32 %v801, 3
        %v805 = vadd.s32 %v801, 4
        %v806 = vadd.s32 %v801, 5
        %v807 = vadd.s32 %v801, 6
        %v808 = vadd.s32 %v801, 7
        %v809 = vadd.s32 %v801, 8
        %v810 = vadd.s32 %v801, 9
        %v811 = vadd.s32 %v801, 10
        %v812 = vadd.s32 %v801, 11
        %v813 = vadd.s32 %v801, 12
        %v814 = vadd.s32 %v801, 13
        %v815 = vadd.s32 %v801, 14
        %v816 = vadd.s32 %v801, 15
        %v817 = vadd.s32 %v801, 16
        %v818 = vadd.s32 %v801, 17
        %v819 = vlaneseq
        %v820 = vshrl.u32 %v819, 7
        %v821 = vadd.s32 %v820, 8
        %vm822 = vcmp.lt.s32.totalorder %v820, 16
        %vm823 = vcmp.lt.s32.totalorder %v821, 16
        %vm824 = vcmp.ge.s32.totalorder %v801, 0
        %vm825 = vcmp.ge.s32.totalorder %v802, 0
        %vm826 = vcmp.ge.s32.totalorder %v803, 0
        %vm827 = vcmp.ge.s32.totalorder %v804, 0
        %vm828 = vcmp.ge.s32.totalorder %v805, 0
        %vm829 = vcmp.ge.s32.totalorder %v806, 0
        %vm830 = vcmp.ge.s32.totalorder %v807, 0
        %vm831 = vcmp.ge.s32.totalorder %v808, 0
        %vm832 = vcmp.ge.s32.totalorder %v809, 0
        %vm833 = vcmp.ge.s32.totalorder %v810, 0
        %vm834 = vcmp.ge.s32.totalorder %v811, 0
        %vm835 = vcmp.ge.s32.totalorder %v812, 0
        %vm836 = vcmp.ge.s32.totalorder %v813, 0
        %vm837 = vcmp.ge.s32.totalorder %v814, 0
        %vm838 = vcmp.ge.s32.totalorder %v815, 0
        %vm839 = vcmp.ge.s32.totalorder %v816, 0
        %vm840 = vcmp.ge.s32.totalorder %v817, 0
        %vm841 = vcmp.ge.s32.totalorder %v818, 0
        %vm842 = vcmp.lt.s32.totalorder %v801, 16
        %vm843 = vcmp.lt.s32.totalorder %v802, 16
        %vm844 = vcmp.lt.s32.totalorder %v803, 16
        %vm845 = vcmp.lt.s32.totalorder %v804, 16
        %vm846 = vcmp.lt.s32.totalorder %v805, 16
        %vm847 = vcmp.lt.s32.totalorder %v806, 16
        %vm848 = vcmp.lt.s32.totalorder %v807, 16
        %vm849 = vcmp.lt.s32.totalorder %v808, 16
        %vm850 = vcmp.lt.s32.totalorder %v809, 16
        %vm851 = vcmp.lt.s32.totalorder %v810, 16
        %vm852 = vcmp.lt.s32.totalorder %v811, 16
        %vm853 = vcmp.lt.s32.totalorder %v812, 16
        %vm854 = vcmp.lt.s32.totalorder %v813, 16
        %vm855 = vcmp.lt.s32.totalorder %v814, 16
        %vm856 = vcmp.lt.s32.totalorder %v815, 16
        %vm857 = vcmp.lt.s32.totalorder %v816, 16
        %vm858 = vcmp.lt.s32.totalorder %v817, 16
        %vm859 = vcmp.lt.s32.totalorder %v818, 16
        %vm860 = vmand %vm824, %vm842
        %vm861 = vmand %vm825, %vm843
        %vm862 = vmand %vm826, %vm844
        %vm863 = vmand %vm827, %vm845
        %vm864 = vmand %vm828, %vm846
        %vm865 = vmand %vm829, %vm847
        %vm866 = vmand %vm830, %vm848
        %vm867 = vmand %vm831, %vm849
        %vm868 = vmand %vm832, %vm850
        %vm869 = vmand %vm833, %vm851
        %vm870 = vmand %vm834, %vm852
        %vm871 = vmand %vm835, %vm853
        %vm872 = vmand %vm836, %vm854
        %vm873 = vmand %vm837, %vm855
        %vm874 = vmand %vm838, %vm856
        %vm875 = vmand %vm839, %vm857
        %vm876 = vmand %vm840, %vm858
        %vm877 = vmand %vm841, %vm859
        %vm878 = vmand %vm860, %vm822
        %vm879 = vmand %vm860, %vm823
        %vm880 = vmand %vm861, %vm822
        %vm881 = vmand %vm861, %vm823
        %vm882 = vmand %vm862, %vm822
        %vm883 = vmand %vm862, %vm823
        %vm884 = vmand %vm863, %vm822
        %vm885 = vmand %vm863, %vm823
        %vm886 = vmand %vm864, %vm822
        %vm887 = vmand %vm864, %vm823
        %vm888 = vmand %vm865, %vm822
        %vm889 = vmand %vm865, %vm823
        %vm890 = vmand %vm866, %vm822
        %vm891 = vmand %vm866, %vm823
        %vm892 = vmand %vm867, %vm822
        %vm893 = vmand %vm867, %vm823
        %vm894 = vmand %vm868, %vm822
        %vm895 = vmand %vm868, %vm823
        %vm896 = vmand %vm869, %vm822
        %vm897 = vmand %vm869, %vm823
        %vm898 = vmand %vm870, %vm822
        %vm899 = vmand %vm870, %vm823
        %vm900 = vmand %vm871, %vm822
        %vm901 = vmand %vm871, %vm823
        %vm902 = vmand %vm872, %vm822
        %vm903 = vmand %vm872, %vm823
        %vm904 = vmand %vm873, %vm822
        %vm905 = vmand %vm873, %vm823
        %vm906 = vmand %vm874, %vm822
        %vm907 = vmand %vm874, %vm823
        %vm908 = vmand %vm875, %vm822
        %vm909 = vmand %vm875, %vm823
        %vm910 = vmand %vm876, %vm822
        %vm911 = vmand %vm876, %vm823
        %vm912 = vmand %vm877, %vm822
        %vm913 = vmand %vm877, %vm823
        %v914 = vsel %vm878, 1, 0
        %v915 = vsel %vm879, 1, 0
        %v916 = vsel %vm880, 1, 0
        %v917 = vsel %vm881, 1, 0
        %v918 = vsel %vm882, 1, 0
        %v919 = vsel %vm883, 1, 0
        %v920 = vsel %vm884, 1, 0
        %v921 = vsel %vm885, 1, 0
        %v922 = vsel %vm886, 1, 0
        %v923 = vsel %vm887, 1, 0
        %v924 = vsel %vm888, 1, 0
        %v925 = vsel %vm889, 1, 0
        %v926 = vsel %vm890, 1, 0
        %v927 = vsel %vm891, 1, 0
        %v928 = vsel %vm892, 1, 0
        %v929 = vsel %vm893, 1, 0
        %v930 = vsel %vm894, 1, 0
        %v931 = vsel %vm895, 1, 0
        %v932 = vsel %vm896, 1, 0
        %v933 = vsel %vm897, 1, 0
        %v934 = vsel %vm898, 1, 0
        %v935 = vsel %vm899, 1, 0
        %v936 = vsel %vm900, 1, 0
        %v937 = vsel %vm901, 1, 0
        %v938 = vsel %vm902, 1, 0
        %v939 = vsel %vm903, 1, 0
        %v940 = vsel %vm904, 1, 0
        %v941 = vsel %vm905, 1, 0
        %v942 = vsel %vm906, 1, 0
        %v943 = vsel %vm907, 1, 0
        %v944 = vsel %vm908, 1, 0
        %v945 = vsel %vm909, 1, 0
        %v946 = vsel %vm910, 1, 0
        %v947 = vsel %vm911, 1, 0
        %v948 = vsel %vm912, 1, 0
        %v949 = vsel %vm913, 1, 0
        %vm950 = vcmp.eq.s32.totalorder %v914, 1
        %vm951 = vcmp.eq.s32.totalorder %v915, 1
        %vm952 = vcmp.eq.s32.totalorder %v916, 1
        %vm953 = vcmp.eq.s32.totalorder %v917, 1
        %vm954 = vcmp.eq.s32.totalorder %v918, 1
        %vm955 = vcmp.eq.s32.totalorder %v919, 1
        %vm956 = vcmp.eq.s32.totalorder %v920, 1
        %vm957 = vcmp.eq.s32.totalorder %v921, 1
        %vm958 = vcmp.eq.s32.totalorder %v922, 1
        %vm959 = vcmp.eq.s32.totalorder %v923, 1
        %vm960 = vcmp.eq.s32.totalorder %v924, 1
        %vm961 = vcmp.eq.s32.totalorder %v925, 1
        %vm962 = vcmp.eq.s32.totalorder %v926, 1
        %vm963 = vcmp.eq.s32.totalorder %v927, 1
        %vm964 = vcmp.eq.s32.totalorder %v928, 1
        %vm965 = vcmp.eq.s32.totalorder %v929, 1
        %vm966 = vcmp.eq.s32.totalorder %v930, 1
        %vm967 = vcmp.eq.s32.totalorder %v931, 1
        %vm968 = vcmp.eq.s32.totalorder %v932, 1
        %vm969 = vcmp.eq.s32.totalorder %v933, 1
        %vm970 = vcmp.eq.s32.totalorder %v934, 1
        %vm971 = vcmp.eq.s32.totalorder %v935, 1
        %vm972 = vcmp.eq.s32.totalorder %v936, 1
        %vm973 = vcmp.eq.s32.totalorder %v937, 1
        %vm974 = vcmp.eq.s32.totalorder %v938, 1
        %vm975 = vcmp.eq.s32.totalorder %v939, 1
        %vm976 = vcmp.eq.s32.totalorder %v940, 1
        %vm977 = vcmp.eq.s32.totalorder %v941, 1
        %vm978 = vcmp.eq.s32.totalorder %v942, 1
        %vm979 = vcmp.eq.s32.totalorder %v943, 1
        %vm980 = vcmp.eq.s32.totalorder %v944, 1
        %vm981 = vcmp.eq.s32.totalorder %v945, 1
        %vm982 = vcmp.eq.s32.totalorder %v946, 1
        %vm983 = vcmp.eq.s32.totalorder %v947, 1
        %vm984 = vcmp.eq.s32.totalorder %v948, 1
        %vm985 = vcmp.eq.s32.totalorder %v949, 1
        %v986 = vsel %vm950, %v765, 0.0
        %v987 = vsel %vm951, %v766, 0.0
        %v988 = vsel %vm952, %v767, 0.0
        %v989 = vsel %vm953, %v768, 0.0
        %v990 = vsel %vm954, %v769, 0.0
        %v991 = vsel %vm955, %v770, 0.0
        %v992 = vsel %vm956, %v771, 0.0
        %v993 = vsel %vm957, %v772, 0.0
        %v994 = vsel %vm958, %v773, 0.0
        %v995 = vsel %vm959, %v774, 0.0
        %v996 = vsel %vm960, %v775, 0.0
        %v997 = vsel %vm961, %v776, 0.0
        %v998 = vsel %vm962, %v777, 0.0
        %v999 = vsel %vm963, %v778, 0.0
        %v1000 = vsel %vm964, %v779, 0.0
        %v1001 = vsel %vm965, %v780, 0.0
        %v1002 = vsel %vm966, %v781, 0.0
        %v1003 = vsel %vm967, %v782, 0.0
        %v1004 = vsel %vm968, %v783, 0.0
        %v1005 = vsel %vm969, %v784, 0.0
        %v1006 = vsel %vm970, %v785, 0.0
        %v1007 = vsel %vm971, %v786, 0.0
        %v1008 = vsel %vm972, %v787, 0.0
        %v1009 = vsel %vm973, %v788, 0.0
        %v1010 = vsel %vm974, %v789, 0.0
        %v1011 = vsel %vm975, %v790, 0.0
        %v1012 = vsel %vm976, %v791, 0.0
        %v1013 = vsel %vm977, %v792, 0.0
        %v1014 = vsel %vm978, %v793, 0.0
        %v1015 = vsel %vm979, %v794, 0.0
        %v1016 = vsel %vm980, %v795, 0.0
        %v1017 = vsel %vm981, %v796, 0.0
        %v1018 = vsel %vm982, %v797, 0.0
        %v1019 = vsel %vm983, %v798, 0.0
        %v1020 = vsel %vm984, %v799, 0.0
        %v1021 = vsel %vm985, %v800, 0.0
        %vm1022 = vcmp.eq.s32.totalorder %v820, 0
        %vm1023 = vcmp.eq.s32.totalorder %v821, 0
        %v1024 = vrot.slane %v986, 7
        %v1025 = vrot.slane %v988, 7
        %v1026 = vrot.slane %v990, 7
        %v1027 = vrot.slane %v992, 7
        %v1028 = vrot.slane %v994, 7
        %v1029 = vrot.slane %v996, 7
        %v1030 = vrot.slane %v998, 7
        %v1031 = vrot.slane %v1000, 7
        %v1032 = vrot.slane %v1002, 7
        %v1033 = vrot.slane %v1004, 7
        %v1034 = vrot.slane %v1006, 7
        %v1035 = vrot.slane %v1008, 7
        %v1036 = vrot.slane %v1010, 7
        %v1037 = vrot.slane %v1012, 7
        %v1038 = vrot.slane %v1014, 7
        %v1039 = vrot.slane %v1016, 7
        %v1040 = vrot.slane %v1018, 7
        %v1041 = vrot.slane %v1020, 7
        %v1042 = vrot.slane %v987, 7
        %v1043 = vrot.slane %v989, 7
        %v1044 = vrot.slane %v991, 7
        %v1045 = vrot.slane %v993, 7
        %v1046 = vrot.slane %v995, 7
        %v1047 = vrot.slane %v997, 7
        %v1048 = vrot.slane %v999, 7
        %v1049 = vrot.slane %v1001, 7
        %v1050 = vrot.slane %v1003, 7
        %v1051 = vrot.slane %v1005, 7
        %v1052 = vrot.slane %v1007, 7
        %v1053 = vrot.slane %v1009, 7
        %v1054 = vrot.slane %v1011, 7
        %v1055 = vrot.slane %v1013, 7
        %v1056 = vrot.slane %v1015, 7
        %v1057 = vrot.slane %v1017, 7
        %v1058 = vrot.slane %v1019, 7
        %v1059 = vrot.slane %v1021, 7
        %vm1060 = vcmp.lt.s32.totalorder %v820, 1
        %v1061 = vsel %vm1060, %v1024, %v1042
        %v1062 = vsel %vm1060, %v1025, %v1043
        %v1063 = vsel %vm1060, %v1026, %v1044
        %v1064 = vsel %vm1060, %v1027, %v1045
        %v1065 = vsel %vm1060, %v1028, %v1046
        %v1066 = vsel %vm1060, %v1029, %v1047
        %v1067 = vsel %vm1060, %v1030, %v1048
        %v1068 = vsel %vm1060, %v1031, %v1049
        %v1069 = vsel %vm1060, %v1032, %v1050
        %v1070 = vsel %vm1060, %v1033, %v1051
        %v1071 = vsel %vm1060, %v1034, %v1052
        %v1072 = vsel %vm1060, %v1035, %v1053
        %v1073 = vsel %vm1060, %v1036, %v1054
        %v1074 = vsel %vm1060, %v1037, %v1055
        %v1075 = vsel %vm1060, %v1038, %v1056
        %v1076 = vsel %vm1060, %v1039, %v1057
        %v1077 = vsel %vm1060, %v1040, %v1058
        %v1078 = vsel %vm1060, %v1041, %v1059
        %v1079 = vsel %vm1060, %v1042, %v1024
        %v1080 = vsel %vm1060, %v1043, %v1025
        %v1081 = vsel %vm1060, %v1044, %v1026
        %v1082 = vsel %vm1060, %v1045, %v1027
        %v1083 = vsel %vm1060, %v1046, %v1028
        %v1084 = vsel %vm1060, %v1047, %v1029
        %v1085 = vsel %vm1060, %v1048, %v1030
        %v1086 = vsel %vm1060, %v1049, %v1031
        %v1087 = vsel %vm1060, %v1050, %v1032
        %v1088 = vsel %vm1060, %v1051, %v1033
        %v1089 = vsel %vm1060, %v1052, %v1034
        %v1090 = vsel %vm1060, %v1053, %v1035
        %v1091 = vsel %vm1060, %v1054, %v1036
        %v1092 = vsel %vm1060, %v1055, %v1037
        %v1093 = vsel %vm1060, %v1056, %v1038
        %v1094 = vsel %vm1060, %v1057, %v1039
        %v1095 = vsel %vm1060, %v1058, %v1040
        %v1096 = vsel %vm1060, %v1059, %v1041
        %v1097 = vsel %vm1022, 1, 0
        %v1098 = vsel %vm1023, 1, 0
        %vm1099 = vcmp.eq.s32.totalorder %v1097, 1
        %vm1100 = vcmp.eq.s32.totalorder %v1098, 1
        %v1101 = vsel %vm1099, 0.0, %v1079
        %v1102 = vsel %vm1100, 0.0, %v1061
        %v1103 = vsel %vm1099, 0.0, %v1080
        %v1104 = vsel %vm1100, 0.0, %v1062
        %v1105 = vsel %vm1099, 0.0, %v1081
        %v1106 = vsel %vm1100, 0.0, %v1063
        %v1107 = vsel %vm1099, 0.0, %v1082
        %v1108 = vsel %vm1100, 0.0, %v1064
        %v1109 = vsel %vm1099, 0.0, %v1083
        %v1110 = vsel %vm1100, 0.0, %v1065
        %v1111 = vsel %vm1099, 0.0, %v1084
        %v1112 = vsel %vm1100, 0.0, %v1066
        %v1113 = vsel %vm1099, 0.0, %v1085
        %v1114 = vsel %vm1100, 0.0, %v1067
        %v1115 = vsel %vm1099, 0.0, %v1086
        %v1116 = vsel %vm1100, 0.0, %v1068
        %v1117 = vsel %vm1099, 0.0, %v1087
        %v1118 = vsel %vm1100, 0.0, %v1069
        %v1119 = vsel %vm1099, 0.0, %v1088
        %v1120 = vsel %vm1100, 0.0, %v1070
        %v1121 = vsel %vm1099, 0.0, %v1089
        %v1122 = vsel %vm1100, 0.0, %v1071
        %v1123 = vsel %vm1099, 0.0, %v1090
        %v1124 = vsel %vm1100, 0.0, %v1072
        %v1125 = vsel %vm1099, 0.0, %v1091
        %v1126 = vsel %vm1100, 0.0, %v1073
        %v1127 = vsel %vm1099, 0.0, %v1092
        %v1128 = vsel %vm1100, 0.0, %v1074
        %v1129 = vsel %vm1099, 0.0, %v1093
        %v1130 = vsel %vm1100, 0.0, %v1075
        %v1131 = vsel %vm1099, 0.0, %v1094
        %v1132 = vsel %vm1100, 0.0, %v1076
        %v1133 = vsel %vm1099, 0.0, %v1095
        %v1134 = vsel %vm1100, 0.0, %v1077
        %v1135 = vsel %vm1099, 0.0, %v1096
        %v1136 = vsel %vm1100, 0.0, %v1078
        %vm1137 = vcmp.eq.s32.totalorder %v820, 15
        %vm1138 = vcmp.eq.s32.totalorder %v821, 15
        %v1139 = vrot.slane %v986, 1
        %v1140 = vrot.slane %v988, 1
        %v1141 = vrot.slane %v990, 1
        %v1142 = vrot.slane %v992, 1
        %v1143 = vrot.slane %v994, 1
        %v1144 = vrot.slane %v996, 1
        %v1145 = vrot.slane %v998, 1
        %v1146 = vrot.slane %v1000, 1
        %v1147 = vrot.slane %v1002, 1
        %v1148 = vrot.slane %v1004, 1
        %v1149 = vrot.slane %v1006, 1
        %v1150 = vrot.slane %v1008, 1
        %v1151 = vrot.slane %v1010, 1
        %v1152 = vrot.slane %v1012, 1
        %v1153 = vrot.slane %v1014, 1
        %v1154 = vrot.slane %v1016, 1
        %v1155 = vrot.slane %v1018, 1
        %v1156 = vrot.slane %v1020, 1
        %v1157 = vrot.slane %v987, 1
        %v1158 = vrot.slane %v989, 1
        %v1159 = vrot.slane %v991, 1
        %v1160 = vrot.slane %v993, 1
        %v1161 = vrot.slane %v995, 1
        %v1162 = vrot.slane %v997, 1
        %v1163 = vrot.slane %v999, 1
        %v1164 = vrot.slane %v1001, 1
        %v1165 = vrot.slane %v1003, 1
        %v1166 = vrot.slane %v1005, 1
        %v1167 = vrot.slane %v1007, 1
        %v1168 = vrot.slane %v1009, 1
        %v1169 = vrot.slane %v1011, 1
        %v1170 = vrot.slane %v1013, 1
        %v1171 = vrot.slane %v1015, 1
        %v1172 = vrot.slane %v1017, 1
        %v1173 = vrot.slane %v1019, 1
        %v1174 = vrot.slane %v1021, 1
        %vm1175 = vcmp.lt.s32.totalorder %v820, 7
        %v1176 = vsel %vm1175, %v1139, %v1157
        %v1177 = vsel %vm1175, %v1140, %v1158
        %v1178 = vsel %vm1175, %v1141, %v1159
        %v1179 = vsel %vm1175, %v1142, %v1160
        %v1180 = vsel %vm1175, %v1143, %v1161
        %v1181 = vsel %vm1175, %v1144, %v1162
        %v1182 = vsel %vm1175, %v1145, %v1163
        %v1183 = vsel %vm1175, %v1146, %v1164
        %v1184 = vsel %vm1175, %v1147, %v1165
        %v1185 = vsel %vm1175, %v1148, %v1166
        %v1186 = vsel %vm1175, %v1149, %v1167
        %v1187 = vsel %vm1175, %v1150, %v1168
        %v1188 = vsel %vm1175, %v1151, %v1169
        %v1189 = vsel %vm1175, %v1152, %v1170
        %v1190 = vsel %vm1175, %v1153, %v1171
        %v1191 = vsel %vm1175, %v1154, %v1172
        %v1192 = vsel %vm1175, %v1155, %v1173
        %v1193 = vsel %vm1175, %v1156, %v1174
        %v1194 = vsel %vm1175, %v1157, %v1139
        %v1195 = vsel %vm1175, %v1158, %v1140
        %v1196 = vsel %vm1175, %v1159, %v1141
        %v1197 = vsel %vm1175, %v1160, %v1142
        %v1198 = vsel %vm1175, %v1161, %v1143
        %v1199 = vsel %vm1175, %v1162, %v1144
        %v1200 = vsel %vm1175, %v1163, %v1145
        %v1201 = vsel %vm1175, %v1164, %v1146
        %v1202 = vsel %vm1175, %v1165, %v1147
        %v1203 = vsel %vm1175, %v1166, %v1148
        %v1204 = vsel %vm1175, %v1167, %v1149
        %v1205 = vsel %vm1175, %v1168, %v1150
        %v1206 = vsel %vm1175, %v1169, %v1151
        %v1207 = vsel %vm1175, %v1170, %v1152
        %v1208 = vsel %vm1175, %v1171, %v1153
        %v1209 = vsel %vm1175, %v1172, %v1154
        %v1210 = vsel %vm1175, %v1173, %v1155
        %v1211 = vsel %vm1175, %v1174, %v1156
        %v1212 = vsel %vm1137, 1, 0
        %v1213 = vsel %vm1138, 1, 0
        %vm1214 = vcmp.eq.s32.totalorder %v1212, 1
        %vm1215 = vcmp.eq.s32.totalorder %v1213, 1
        %v1216 = vsel %vm1214, 0.0, %v1176
        %v1217 = vsel %vm1215, 0.0, %v1194
        %v1218 = vsel %vm1214, 0.0, %v1177
        %v1219 = vsel %vm1215, 0.0, %v1195
        %v1220 = vsel %vm1214, 0.0, %v1178
        %v1221 = vsel %vm1215, 0.0, %v1196
        %v1222 = vsel %vm1214, 0.0, %v1179
        %v1223 = vsel %vm1215, 0.0, %v1197
        %v1224 = vsel %vm1214, 0.0, %v1180
        %v1225 = vsel %vm1215, 0.0, %v1198
        %v1226 = vsel %vm1214, 0.0, %v1181
        %v1227 = vsel %vm1215, 0.0, %v1199
        %v1228 = vsel %vm1214, 0.0, %v1182
        %v1229 = vsel %vm1215, 0.0, %v1200
        %v1230 = vsel %vm1214, 0.0, %v1183
        %v1231 = vsel %vm1215, 0.0, %v1201
        %v1232 = vsel %vm1214, 0.0, %v1184
        %v1233 = vsel %vm1215, 0.0, %v1202
        %v1234 = vsel %vm1214, 0.0, %v1185
        %v1235 = vsel %vm1215, 0.0, %v1203
        %v1236 = vsel %vm1214, 0.0, %v1186
        %v1237 = vsel %vm1215, 0.0, %v1204
        %v1238 = vsel %vm1214, 0.0, %v1187
        %v1239 = vsel %vm1215, 0.0, %v1205
        %v1240 = vsel %vm1214, 0.0, %v1188
        %v1241 = vsel %vm1215, 0.0, %v1206
        %v1242 = vsel %vm1214, 0.0, %v1189
        %v1243 = vsel %vm1215, 0.0, %v1207
        %v1244 = vsel %vm1214, 0.0, %v1190
        %v1245 = vsel %vm1215, 0.0, %v1208
        %v1246 = vsel %vm1214, 0.0, %v1191
        %v1247 = vsel %vm1215, 0.0, %v1209
        %v1248 = vsel %vm1214, 0.0, %v1192
        %v1249 = vsel %vm1215, 0.0, %v1210
        %v1250 = vsel %vm1214, 0.0, %v1193
        %v1251 = vsel %vm1215, 0.0, %v1211
        %v1252 = vpack.c.bf16 %v1102, %v1101
        %v1253 = vpack.c.bf16 %v1104, %v1103
        %v1254 = vpack.c.bf16 %v1106, %v1105
        %v1255 = vpack.c.bf16 %v1108, %v1107
        %v1256 = vpack.c.bf16 %v1110, %v1109
        %v1257 = vpack.c.bf16 %v1112, %v1111
        %v1258 = vpack.c.bf16 %v1114, %v1113
        %v1259 = vpack.c.bf16 %v1116, %v1115
        %v1260 = vpack.c.bf16 %v1118, %v1117
        %v1261 = vpack.c.bf16 %v1120, %v1119
        %v1262 = vpack.c.bf16 %v1122, %v1121
        %v1263 = vpack.c.bf16 %v1124, %v1123
        %v1264 = vpack.c.bf16 %v1126, %v1125
        %v1265 = vpack.c.bf16 %v1128, %v1127
        %v1266 = vpack.c.bf16 %v1130, %v1129
        %v1267 = vpack.c.bf16 %v1132, %v1131
        %v1268 = vpack.c.bf16 %v1134, %v1133
        %v1269 = vpack.c.bf16 %v1136, %v1135
        %v1270 = vpack.c.bf16 %v987, %v986
        %v1271 = vpack.c.bf16 %v989, %v988
        %v1272 = vpack.c.bf16 %v991, %v990
        %v1273 = vpack.c.bf16 %v993, %v992
        %v1274 = vpack.c.bf16 %v995, %v994
        %v1275 = vpack.c.bf16 %v997, %v996
        %v1276 = vpack.c.bf16 %v999, %v998
        %v1277 = vpack.c.bf16 %v1001, %v1000
        %v1278 = vpack.c.bf16 %v1003, %v1002
        %v1279 = vpack.c.bf16 %v1005, %v1004
        %v1280 = vpack.c.bf16 %v1007, %v1006
        %v1281 = vpack.c.bf16 %v1009, %v1008
        %v1282 = vpack.c.bf16 %v1011, %v1010
        %v1283 = vpack.c.bf16 %v1013, %v1012
        %v1284 = vpack.c.bf16 %v1015, %v1014
        %v1285 = vpack.c.bf16 %v1017, %v1016
        %v1286 = vpack.c.bf16 %v1019, %v1018
        %v1287 = vpack.c.bf16 %v1021, %v1020
        %v1288 = vpack.c.bf16 %v1217, %v1216
        %v1289 = vpack.c.bf16 %v1219, %v1218
        %v1290 = vpack.c.bf16 %v1221, %v1220
        %v1291 = vpack.c.bf16 %v1223, %v1222
        %v1292 = vpack.c.bf16 %v1225, %v1224
        %v1293 = vpack.c.bf16 %v1227, %v1226
        %v1294 = vpack.c.bf16 %v1229, %v1228
        %v1295 = vpack.c.bf16 %v1231, %v1230
        %v1296 = vpack.c.bf16 %v1233, %v1232
        %v1297 = vpack.c.bf16 %v1235, %v1234
        %v1298 = vpack.c.bf16 %v1237, %v1236
        %v1299 = vpack.c.bf16 %v1239, %v1238
        %v1300 = vpack.c.bf16 %v1241, %v1240
        %v1301 = vpack.c.bf16 %v1243, %v1242
        %v1302 = vpack.c.bf16 %v1245, %v1244
        %v1303 = vpack.c.bf16 %v1247, %v1246
        %v1304 = vpack.c.bf16 %v1249, %v1248
        %v1305 = vpack.c.bf16 %v1251, %v1250
        %v1306 = vld [vmem:[#allocation7] sm:$0xf]
        %v1307 = vld [vmem:[#allocation7 + $0x4] sm:$0xf]
        %v1308 = vld [vmem:[#allocation7 + $0x8] sm:$0xf]
        %v1309 = vld [vmem:[#allocation7 + $0xc] sm:$0xf]
        %v1310 = vld [vmem:[#allocation7 + $0x10] sm:$0xf]
        %v1311 = vld [vmem:[#allocation7 + $0x14] sm:$0xf]
        %v1312 = vld [vmem:[#allocation7 + $0x18] sm:$0xf]
        %v1313 = vld [vmem:[#allocation7 + $0x1c] sm:$0xf]
        %v1314 = vld [vmem:[#allocation7 + $0x20] sm:$0xf]
        %v1315 = vld [vmem:[#allocation7 + $0x24] sm:$0xf]
        %v1316 = vld [vmem:[#allocation7 + $0x28] sm:$0xf]
        %v1317 = vld [vmem:[#allocation7 + $0x2c] sm:$0xf]
        %v1318 = vld [vmem:[#allocation7 + $0x30] sm:$0xf]
        %v1319 = vld [vmem:[#allocation7 + $0x34] sm:$0xf]
        %v1320 = vld [vmem:[#allocation7 + $0x38] sm:$0xf]
        %v1321 = vld [vmem:[#allocation7 + $0x3c] sm:$0xf]
        %v1322 = vld [vmem:[#allocation7 + $0x40] sm:$0xf]
        %v1323 = vld [vmem:[#allocation7 + $0x44] sm:$0xf]
        %v1324 = vld [vmem:[#allocation7 + $0x48] sm:$0xf]
        %v1325 = vld [vmem:[#allocation7 + $0x4c] sm:$0xf]
        %v1326 = vld [vmem:[#allocation7 + $0x50] sm:$0xf]
        %v1327 = vld [vmem:[#allocation7 + $0x54] sm:$0xf]
        %v1328 = vld [vmem:[#allocation7 + $0x58] sm:$0xf]
        %v1329 = vld [vmem:[#allocation7 + $0x5c] sm:$0xf]
        %v1330 = vld [vmem:[#allocation7 + $0x60] sm:$0xf]
        %v1331 = vld [vmem:[#allocation7 + $0x64] sm:$0xf]
        %v1332 = vld [vmem:[#allocation7 + $0x68] sm:$0xf]
        %v1333 = vld [vmem:[#allocation7 + $0x6c] sm:$0xf]
        %v1334 = vld [vmem:[#allocation7 + $0x70] sm:$0xf]
        %v1335 = vld [vmem:[#allocation7 + $0x74] sm:$0xf]
        %v1336 = vld [vmem:[#allocation7 + $0x78] sm:$0xf]
        %v1337 = vld [vmem:[#allocation7 + $0x7c] sm:$0xf]
        %v1338 = vld [vmem:[#allocation7 + $0x80] sm:$0xf]
        %v1339 = vld [vmem:[#allocation7 + $0x84] sm:$0xf]
        %v1340 = vld [vmem:[#allocation7 + $0x88] sm:$0xf]
        %v1341 = vld [vmem:[#allocation7 + $0x8c] sm:$0xf]
        %v1342 = vld [vmem:[#allocation7 + $0x90] sm:$0xf]
        %v1343 = vld [vmem:[#allocation7 + $0x94] sm:$0xf]
        %v1344 = vld [vmem:[#allocation7 + $0x98] sm:$0xf]
        %v1345 = vld [vmem:[#allocation7 + $0x9c] sm:$0xf]
        %v1346 = vld [vmem:[#allocation7 + $0xa0] sm:$0xf]
        %v1347 = vld [vmem:[#allocation7 + $0xa4] sm:$0xf]
        %v1348 = vld [vmem:[#allocation7 + $0xa8] sm:$0xf]
        %v1349 = vld [vmem:[#allocation7 + $0xac] sm:$0xf]
        %v1350 = vld [vmem:[#allocation7 + $0xb0] sm:$0xf]
        %v1351 = vld [vmem:[#allocation7 + $0xb4] sm:$0xf]
        %v1352 = vld [vmem:[#allocation7 + $0xb8] sm:$0xf]
        %v1353 = vld [vmem:[#allocation7 + $0xbc] sm:$0xf]
        %s1354 = scalar_lea.vmem [#allocation7], 192
        %v1355 = vld [vmem:[%s1354] sm:$0xf]
        %v1356 = vld [vmem:[%s1354 + $0x4] sm:$0xf]
        %v1357 = vld [vmem:[%s1354 + $0x8] sm:$0xf]
        %v1358 = vld [vmem:[%s1354 + $0xc] sm:$0xf]
        %v1359 = vld [vmem:[%s1354 + $0x10] sm:$0xf]
        %v1360 = vld [vmem:[%s1354 + $0x14] sm:$0xf]
        %v1361 = vld [vmem:[%s1354 + $0x18] sm:$0xf]
        %v1362 = vld [vmem:[%s1354 + $0x1c] sm:$0xf]
        %v1363 = vld [vmem:[%s1354 + $0x20] sm:$0xf]
        %v1364 = vld [vmem:[%s1354 + $0x24] sm:$0xf]
        %v1365 = vld [vmem:[%s1354 + $0x28] sm:$0xf]
        %v1366 = vld [vmem:[%s1354 + $0x2c] sm:$0xf]
        %v1367 = vld [vmem:[%s1354 + $0x30] sm:$0xf]
        %v1368 = vld [vmem:[%s1354 + $0x34] sm:$0xf]
        %v1369 = vld [vmem:[%s1354 + $0x38] sm:$0xf]
        %v1370 = vld [vmem:[%s1354 + $0x3c] sm:$0xf]
        %v1371 = vld [vmem:[%s1354 + $0x40] sm:$0xf]
        %v1372 = vld [vmem:[%s1354 + $0x44] sm:$0xf]
        %v1373 = vld [vmem:[%s1354 + $0x48] sm:$0xf]
        %v1374 = vld [vmem:[%s1354 + $0x4c] sm:$0xf]
        %v1375 = vld [vmem:[%s1354 + $0x50] sm:$0xf]
        %v1376 = vld [vmem:[%s1354 + $0x54] sm:$0xf]
        %v1377 = vld [vmem:[%s1354 + $0x58] sm:$0xf]
        %v1378 = vld [vmem:[%s1354 + $0x5c] sm:$0xf]
        %v1379 = vld [vmem:[%s1354 + $0x60] sm:$0xf]
        %v1380 = vld [vmem:[%s1354 + $0x64] sm:$0xf]
        %v1381 = vld [vmem:[%s1354 + $0x68] sm:$0xf]
        %v1382 = vld [vmem:[%s1354 + $0x6c] sm:$0xf]
        %v1383 = vld [vmem:[%s1354 + $0x70] sm:$0xf]
        %v1384 = vld [vmem:[%s1354 + $0x74] sm:$0xf]
        %v1385 = vld [vmem:[%s1354 + $0x78] sm:$0xf]
        %v1386 = vld [vmem:[%s1354 + $0x7c] sm:$0xf]
        %v1387 = vld [vmem:[%s1354 + $0x80] sm:$0xf]
        %v1388 = vld [vmem:[%s1354 + $0x84] sm:$0xf]
        %v1389 = vld [vmem:[%s1354 + $0x88] sm:$0xf]
        %v1390 = vld [vmem:[%s1354 + $0x8c] sm:$0xf]
        %v1391 = vld [vmem:[%s1354 + $0x90] sm:$0xf]
        %v1392 = vld [vmem:[%s1354 + $0x94] sm:$0xf]
        %v1393 = vld [vmem:[%s1354 + $0x98] sm:$0xf]
        %v1394 = vld [vmem:[%s1354 + $0x9c] sm:$0xf]
        %v1395 = vld [vmem:[%s1354 + $0xa0] sm:$0xf]
        %v1396 = vld [vmem:[%s1354 + $0xa4] sm:$0xf]
        %v1397 = vld [vmem:[%s1354 + $0xa8] sm:$0xf]
        %v1398 = vld [vmem:[%s1354 + $0xac] sm:$0xf]
        %v1399 = vld [vmem:[%s1354 + $0xb0] sm:$0xf]
        %v1400 = vld [vmem:[%s1354 + $0xb4] sm:$0xf]
        %v1401 = vld [vmem:[%s1354 + $0xb8] sm:$0xf]
        %v1402 = vld [vmem:[%s1354 + $0xbc] sm:$0xf]
        %v1451 = vunpack.c.l.b16 %v1355
        %v1452 = vunpack.c.l.b16 %v1356
        %v1453 = vunpack.c.l.b16 %v1357
        %v1454 = vunpack.c.l.b16 %v1358
        %v1455 = vunpack.c.l.b16 %v1359
        %v1456 = vunpack.c.l.b16 %v1360
        %v1457 = vunpack.c.l.b16 %v1361
        %v1458 = vunpack.c.l.b16 %v1362
        %v1459 = vunpack.c.l.b16 %v1363
        %v1460 = vunpack.c.l.b16 %v1364
        %v1461 = vunpack.c.l.b16 %v1365
        %v1462 = vunpack.c.l.b16 %v1366
        %v1463 = vunpack.c.l.b16 %v1367
        %v1464 = vunpack.c.l.b16 %v1368
        %v1465 = vunpack.c.l.b16 %v1369
        %v1466 = vunpack.c.l.b16 %v1370
        %v1467 = vunpack.c.l.b16 %v1371
        %v1468 = vunpack.c.l.b16 %v1372
        %v1469 = vunpack.c.l.b16 %v1373
        %v1470 = vunpack.c.l.b16 %v1374
        %v1471 = vunpack.c.l.b16 %v1375
        %v1472 = vunpack.c.l.b16 %v1376
        %v1473 = vunpack.c.l.b16 %v1377
        %v1474 = vunpack.c.l.b16 %v1378
        %v1475 = vunpack.c.l.b16 %v1379
        %v1476 = vunpack.c.l.b16 %v1380
        %v1477 = vunpack.c.l.b16 %v1381
        %v1478 = vunpack.c.l.b16 %v1382
        %v1479 = vunpack.c.l.b16 %v1383
        %v1480 = vunpack.c.l.b16 %v1384
        %v1481 = vunpack.c.l.b16 %v1385
        %v1482 = vunpack.c.l.b16 %v1386
        %v1483 = vunpack.c.l.b16 %v1387
        %v1484 = vunpack.c.l.b16 %v1388
        %v1485 = vunpack.c.l.b16 %v1389
        %v1486 = vunpack.c.l.b16 %v1390
        %v1487 = vunpack.c.l.b16 %v1391
        %v1488 = vunpack.c.l.b16 %v1392
        %v1489 = vunpack.c.l.b16 %v1393
        %v1490 = vunpack.c.l.b16 %v1394
        %v1491 = vunpack.c.l.b16 %v1395
        %v1492 = vunpack.c.l.b16 %v1396
        %v1493 = vunpack.c.l.b16 %v1397
        %v1494 = vunpack.c.l.b16 %v1398
        %v1495 = vunpack.c.l.b16 %v1399
        %v1496 = vunpack.c.l.b16 %v1400
        %v1497 = vunpack.c.l.b16 %v1401
        %v1498 = vunpack.c.l.b16 %v1402
        %v1499 = vpack.c.b16 %v1452, %v1451
        %v1500 = vpack.c.b16 %v1454, %v1453
        %v1501 = vpack.c.b16 %v1456, %v1455
        %v1502 = vpack.c.b16 %v1458, %v1457
        %v1503 = vpack.c.b16 %v1460, %v1459
        %v1504 = vpack.c.b16 %v1462, %v1461
        %v1505 = vpack.c.b16 %v1464, %v1463
        %v1506 = vpack.c.b16 %v1466, %v1465
        %v1507 = vpack.c.b16 %v1468, %v1467
        %v1508 = vpack.c.b16 %v1470, %v1469
        %v1509 = vpack.c.b16 %v1472, %v1471
        %v1510 = vpack.c.b16 %v1474, %v1473
        %v1511 = vpack.c.b16 %v1476, %v1475
        %v1512 = vpack.c.b16 %v1478, %v1477
        %v1513 = vpack.c.b16 %v1480, %v1479
        %v1514 = vpack.c.b16 %v1482, %v1481
        %v1515 = vpack.c.b16 %v1484, %v1483
        %v1516 = vpack.c.b16 %v1486, %v1485
        %v1517 = vpack.c.b16 %v1488, %v1487
        %v1518 = vpack.c.b16 %v1490, %v1489
        %v1519 = vpack.c.b16 %v1492, %v1491
        %v1520 = vpack.c.b16 %v1494, %v1493
        %v1521 = vpack.c.b16 %v1496, %v1495
        %v1522 = vpack.c.b16 %v1498, %v1497
        %1547 = vmatprep.subr.bf16.mxu0 0
        %1548 = vmatpush1.bf16.msra.mxu0 %v1499
        %1549 = vmatprep.subr.bf16.mxu0 0
        %1550 = vmatpush1.bf16.msra.mxu0 %v1500
        %1551 = vmatprep.subr.bf16.mxu0 0
        %1552 = vmatpush1.bf16.msra.mxu0 %v1501
        %1553 = vmatprep.subr.bf16.mxu0 0
        %1554 = vmatpush1.bf16.msra.mxu0 %v1502
        %1555 = vmatprep.subr.bf16.mxu0 0
        %1556 = vmatpush1.bf16.msra.mxu0 %v1503
        %1557 = vmatprep.subr.bf16.mxu0 0
        %1558 = vmatpush1.bf16.msra.mxu0 %v1504
        %1559 = vmatprep.subr.bf16.mxu0 0
        %1560 = vmatpush1.bf16.msra.mxu0 %v1505
        %1561 = vmatprep.subr.bf16.mxu0 0
        %1562 = vmatpush1.bf16.msra.mxu0 %v1506
        %1563 = vmatprep.subr.bf16.mxu0 0
        %1564 = vmatpush1.bf16.msra.mxu0 %v1507
        %1565 = vmatprep.subr.bf16.mxu0 0
        %1566 = vmatpush1.bf16.msra.mxu0 %v1508
        %1567 = vmatprep.subr.bf16.mxu0 0
        %1568 = vmatpush1.bf16.msra.mxu0 %v1509
        %1569 = vmatprep.subr.bf16.mxu0 0
        %1570 = vmatpush1.bf16.msra.mxu0 %v1510
        %1571 = vmatprep.subr.bf16.mxu0 0
        %1572 = vmatpush1.bf16.msra.mxu0 %v1511
        %1573 = vmatprep.subr.bf16.mxu0 0
        %1574 = vmatpush1.bf16.msra.mxu0 %v1512
        %1575 = vmatprep.subr.bf16.mxu0 0
        %1576 = vmatpush1.bf16.msra.mxu0 %v1513
        %1577 = vmatprep.subr.bf16.mxu0 0
        %1578 = vmatpush1.bf16.msra.mxu0 %v1514
        %1579 = vmatprep.mubr.bf16.mxu0 %v1271
        %1580 = vmatmul.mubr.bf16.gmra.mrb[0].mxu0 %v1253
        %v1581 = vpop.f32.mrb[0].mxu0
        %v1582 = vadd.f32 0.0, %v1581
        %v1583 = vpop.f32.mrb[0].mxu0
        %v1584 = vpop.f32.mrb[0].mxu0
        %v1585 = vadd.f32 0.0, %v1584
        %v1586 = vpop.f32.mrb[0].mxu0
        %1587 = vmatprep.mubr.bf16.mxu0 %v1272
        %1588 = vmatmul.mubr.bf16.gmra.mrb[0].mxu0 %v1254
        %v1589 = vpop.f32.mrb[0].mxu0
        %v1590 = vadd.f32 0.0, %v1589
        %v1591 = vpop.f32.mrb[0].mxu0
        %v1592 = vpop.f32.mrb[0].mxu0
        %v1593 = vadd.f32 0.0, %v1592
        %v1594 = vpop.f32.mrb[0].mxu0
        %1595 = vmatprep.mubr.bf16.mxu0 %v1273
        %1596 = vmatmul.mubr.bf16.gmra.mrb[0].mxu0 %v1255
        %v1597 = vpop.f32.mrb[0].mxu0
        %v1598 = vadd.f32 0.0, %v1597
        %v1599 = vpop.f32.mrb[0].mxu0
        %v1600 = vpop.f32.mrb[0].mxu0
        %v1601 = vadd.f32 0.0, %v1600
        %v1602 = vpop.f32.mrb[0].mxu0
        %1603 = vmatprep.mubr.bf16.mxu0 %v1274
        %1604 = vmatmul.mubr.bf16.gmra.mrb[0].mxu0 %v1256
        %v1605 = vpop.f32.mrb[0].mxu0
        %v1606 = vadd.f32 0.0, %v1605
        %v1607 = vpop.f32.mrb[0].mxu0
        %v1608 = vpop.f32.mrb[0].mxu0
        %v1609 = vadd.f32 0.0, %v1608
        %v1610 = vpop.f32.mrb[0].mxu0
        %1611 = vmatprep.mubr.bf16.mxu0 %v1275
        %1612 = vmatmul.mubr.bf16.gmra.mrb[0].mxu0 %v1257
        %v1613 = vpop.f32.mrb[0].mxu0
        %v1614 = vadd.f32 0.0, %v1613
        %v1615 = vpop.f32.mrb[0].mxu0
        %v1616 = vpop.f32.mrb[0].mxu0
        %v1617 = vadd.f32 0.0, %v1616
        %v1618 = vpop.f32.mrb[0].mxu0
        %1619 = vmatprep.mubr.bf16.mxu0 %v1276
        %1620 = vmatmul.mubr.bf16.gmra.mrb[0].mxu0 %v1258
        %v1621 = vpop.f32.mrb[0].mxu0
        %v1622 = vadd.f32 0.0, %v1621
        %v1623 = vpop.f32.mrb[0].mxu0
        %v1624 = vpop.f32.mrb[0].mxu0
        %v1625 = vadd.f32 0.0, %v1624
        %v1626 = vpop.f32.mrb[0].mxu0
        %1627 = vmatprep.mubr.bf16.mxu0 %v1277
        %1628 = vmatmul.mubr.bf16.gmra.mrb[0].mxu0 %v1259
        %v1629 = vpop.f32.mrb[0].mxu0
        %v1630 = vadd.f32 0.0, %v1629
        %v1631 = vpop.f32.mrb[0].mxu0
        %v1632 = vpop.f32.mrb[0].mxu0
        %v1633 = vadd.f32 0.0, %v1632
        %v1634 = vpop.f32.mrb[0].mxu0
        %1635 = vmatprep.mubr.bf16.mxu0 %v1278
        %1636 = vmatmul.mubr.bf16.gmra.mrb[0].mxu0 %v1260
        %v1637 = vpop.f32.mrb[0].mxu0
        %v1638 = vadd.f32 0.0, %v1637
        %v1639 = vpop.f32.mrb[0].mxu0
        %v1640 = vpop.f32.mrb[0].mxu0
        %v1641 = vadd.f32 0.0, %v1640
        %v1642 = vpop.f32.mrb[0].mxu0
        %1643 = vmatprep.mubr.bf16.mxu0 %v1279
        %1644 = vmatmul.mubr.bf16.gmra.mrb[0].mxu0 %v1261
        %v1645 = vpop.f32.mrb[0].mxu0
        %v1646 = vadd.f32 0.0, %v1645
        %v1647 = vpop.f32.mrb[0].mxu0
        %v1648 = vpop.f32.mrb[0].mxu0
        %v1649 = vadd.f32 0.0, %v1648
        %v1650 = vpop.f32.mrb[0].mxu0
        %1651 = vmatprep.mubr.bf16.mxu0 %v1280
        %1652 = vmatmul.mubr.bf16.gmra.mrb[0].mxu0 %v1262
        %v1653 = vpop.f32.mrb[0].mxu0
        %v1654 = vadd.f32 0.0, %v1653
        %v1655 = vpop.f32.mrb[0].mxu0
        %v1656 = vpop.f32.mrb[0].mxu0
        %v1657 = vadd.f32 0.0, %v1656
        %v1658 = vpop.f32.mrb[0].mxu0
        %1659 = vmatprep.mubr.bf16.mxu0 %v1281
        %1660 = vmatmul.mubr.bf16.gmra.mrb[0].mxu0 %v1263
        %v1661 = vpop.f32.mrb[0].mxu0
        %v1662 = vadd.f32 0.0, %v1661
        %v1663 = vpop.f32.mrb[0].mxu0
        %v1664 = vpop.f32.mrb[0].mxu0
        %v1665 = vadd.f32 0.0, %v1664
        %v1666 = vpop.f32.mrb[0].mxu0
        %1667 = vmatprep.mubr.bf16.mxu0 %v1282
        %1668 = vmatmul.mubr.bf16.gmra.mrb[0].mxu0 %v1264
        %v1669 = vpop.f32.mrb[0].mxu0
        %v1670 = vadd.f32 0.0, %v1669
        %v1671 = vpop.f32.mrb[0].mxu0
        %v1672 = vpop.f32.mrb[0].mxu0
        %v1673 = vadd.f32 0.0, %v1672
        %v1674 = vpop.f32.mrb[0].mxu0
        %1675 = vmatprep.mubr.bf16.mxu0 %v1283
        %1676 = vmatmul.mubr.bf16.gmra.mrb[0].mxu0 %v1265
        %v1677 = vpop.f32.mrb[0].mxu0
        %v1678 = vadd.f32 0.0, %v1677
        %v1679 = vpop.f32.mrb[0].mxu0
        %v1680 = vpop.f32.mrb[0].mxu0
        %v1681 = vadd.f32 0.0, %v1680
        %v1682 = vpop.f32.mrb[0].mxu0
        %1683 = vmatprep.mubr.bf16.mxu0 %v1284
        %1684 = vmatmul.mubr.bf16.gmra.mrb[0].mxu0 %v1266
        %v1685 = vpop.f32.mrb[0].mxu0
        %v1686 = vadd.f32 0.0, %v1685
        %v1687 = vpop.f32.mrb[0].mxu0
        %v1688 = vpop.f32.mrb[0].mxu0
        %v1689 = vadd.f32 0.0, %v1688
        %v1690 = vpop.f32.mrb[0].mxu0
        %1691 = vmatprep.mubr.bf16.mxu0 %v1285
        %1692 = vmatmul.mubr.bf16.gmra.mrb[0].mxu0 %v1267
        %v1693 = vpop.f32.mrb[0].mxu0
        %v1694 = vadd.f32 0.0, %v1693
        %v1695 = vpop.f32.mrb[0].mxu0
        %v1696 = vpop.f32.mrb[0].mxu0
        %v1697 = vadd.f32 0.0, %v1696
        %v1698 = vpop.f32.mrb[0].mxu0
        %1699 = vmatprep.mubr.bf16.mxu0 %v1286
        %1700 = vmatmul.mubr.bf16.gmra.mrb[0].mxu0 %v1268
        %v1701 = vpop.f32.mrb[0].mxu0
        %v1702 = vadd.f32 0.0, %v1701
        %v1703 = vpop.f32.mrb[0].mxu0
        %v1704 = vpop.f32.mrb[0].mxu0
        %v1705 = vadd.f32 0.0, %v1704
        %v1706 = vpop.f32.mrb[0].mxu0
        %1707 = vdwg.mxu0
        %1708 = vmatprep.subr.bf16.mxu0 0
        %1709 = vmatpush1.bf16.msra.mxu0 %v1515
        %1710 = vmatprep.subr.bf16.mxu0 0
        %1711 = vmatpush1.bf16.msra.mxu0 %v1516
        %1712 = vmatprep.subr.bf16.mxu0 0
        %1713 = vmatpush1.bf16.msra.mxu0 %v1517
        %1714 = vmatprep.subr.bf16.mxu0 0
        %1715 = vmatpush1.bf16.msra.mxu0 %v1518
        %1716 = vmatprep.subr.bf16.mxu0 0
        %1717 = vmatpush1.bf16.msra.mxu0 %v1519
        %1718 = vmatprep.subr.bf16.mxu0 0
        %1719 = vmatpush1.bf16.msra.mxu0 %v1520
        %1720 = vmatprep.subr.bf16.mxu0 0
        %1721 = vmatpush1.bf16.msra.mxu0 %v1521
        %1722 = vmatprep.subr.bf16.mxu0 0
        %1723 = vmatpush1.bf16.msra.mxu0 %v1522
        %1724 = vmatprep.subr.bf16.mxu0 0
        %1725 = vmatpush1.bf16.msra.mxu0 0
        %1726 = vmatprep.subr.bf16.mxu0 0
        %1727 = vmatpush1.bf16.msra.mxu0 0
        %1728 = vmatprep.subr.bf16.mxu0 0
        %1729 = vmatpush1.bf16.msra.mxu0 0
        %1730 = vmatprep.subr.bf16.mxu0 0
        %1731 = vmatpush1.bf16.msra.mxu0 0
        %1732 = vmatprep.subr.bf16.mxu0 0
        %1733 = vmatpush1.bf16.msra.mxu0 0
        %1734 = vmatprep.subr.bf16.mxu0 0
        %1735 = vmatpush1.bf16.msra.mxu0 0
        %1736 = vmatprep.subr.bf16.mxu0 0
        %1737 = vmatpush1.bf16.msra.mxu0 0
        %1738 = vmatprep.subr.bf16.mxu0 0
        %1739 = vmatpush1.bf16.msra.mxu0 0
        %1740 = vmatprep.mubr.bf16.mxu0 0
        %1741 = vmatmul.mubr.bf16.gmra.mrb[0].mxu0 %v1289
        %v1742 = vpop.f32.mrb[0].mxu0
        %v1743 = vadd.f32 %v1582, %v1742
        %v1744 = vpop.f32.mrb[0].mxu0
        %v1745 = vpop.f32.mrb[0].mxu0
        %v1746 = vadd.f32 %v1585, %v1745
        %v1747 = vpop.f32.mrb[0].mxu0
        %1748 = vmatprep.mubr.bf16.mxu0 0
        %1749 = vmatmul.mubr.bf16.gmra.mrb[0].mxu0 %v1290
        %v1750 = vpop.f32.mrb[0].mxu0
        %v1751 = vadd.f32 %v1590, %v1750
        %v1752 = vpop.f32.mrb[0].mxu0
        %v1753 = vpop.f32.mrb[0].mxu0
        %v1754 = vadd.f32 %v1593, %v1753
        %v1755 = vpop.f32.mrb[0].mxu0
        %1756 = vmatprep.mubr.bf16.mxu0 0
        %1757 = vmatmul.mubr.bf16.gmra.mrb[0].mxu0 %v1291
        %v1758 = vpop.f32.mrb[0].mxu0
        %v1759 = vadd.f32 %v1598, %v1758
        %v1760 = vpop.f32.mrb[0].mxu0
        %v1761 = vpop.f32.mrb[0].mxu0
        %v1762 = vadd.f32 %v1601, %v1761
        %v1763 = vpop.f32.mrb[0].mxu0
        %1764 = vmatprep.mubr.bf16.mxu0 0
        %1765 = vmatmul.mubr.bf16.gmra.mrb[0].mxu0 %v1292
        %v1766 = vpop.f32.mrb[0].mxu0
        %v1767 = vadd.f32 %v1606, %v1766
        %v1768 = vpop.f32.mrb[0].mxu0
        %v1769 = vpop.f32.mrb[0].mxu0
        %v1770 = vadd.f32 %v1609, %v1769
        %v1771 = vpop.f32.mrb[0].mxu0
        %1772 = vmatprep.mubr.bf16.mxu0 0
        %1773 = vmatmul.mubr.bf16.gmra.mrb[0].mxu0 %v1293
        %v1774 = vpop.f32.mrb[0].mxu0
        %v1775 = vadd.f32 %v1614, %v1774
        %v1776 = vpop.f32.mrb[0].mxu0
        %v1777 = vpop.f32.mrb[0].mxu0
        %v1778 = vadd.f32 %v1617, %v1777
        %v1779 = vpop.f32.mrb[0].mxu0
        %1780 = vmatprep.mubr.bf16.mxu0 0
        %1781 = vmatmul.mubr.bf16.gmra.mrb[0].mxu0 %v1294
        %v1782 = vpop.f32.mrb[0].mxu0
        %v1783 = vadd.f32 %v1622, %v1782
        %v1784 = vpop.f32.mrb[0].mxu0
        %v1785 = vpop.f32.mrb[0].mxu0
        %v1786 = vadd.f32 %v1625, %v1785
        %v1787 = vpop.f32.mrb[0].mxu0
        %1788 = vmatprep.mubr.bf16.mxu0 0
        %1789 = vmatmul.mubr.bf16.gmra.mrb[0].mxu0 %v1295
        %v1790 = vpop.f32.mrb[0].mxu0
        %v1791 = vadd.f32 %v1630, %v1790
        %v1792 = vpop.f32.mrb[0].mxu0
        %v1793 = vpop.f32.mrb[0].mxu0
        %v1794 = vadd.f32 %v1633, %v1793
        %v1795 = vpop.f32.mrb[0].mxu0
        %1796 = vmatprep.mubr.bf16.mxu0 0
        %1797 = vmatmul.mubr.bf16.gmra.mrb[0].mxu0 %v1296
        %v1798 = vpop.f32.mrb[0].mxu0
        %v1799 = vadd.f32 %v1638, %v1798
        %v1800 = vpop.f32.mrb[0].mxu0
        %v1801 = vpop.f32.mrb[0].mxu0
        %v1802 = vadd.f32 %v1641, %v1801
        %v1803 = vpop.f32.mrb[0].mxu0
        %1804 = vmatprep.mubr.bf16.mxu0 0
        %1805 = vmatmul.mubr.bf16.gmra.mrb[0].mxu0 %v1297
        %v1806 = vpop.f32.mrb[0].mxu0
        %v1807 = vadd.f32 %v1646, %v1806
        %v1808 = vpop.f32.mrb[0].mxu0
        %v1809 = vpop.f32.mrb[0].mxu0
        %v1810 = vadd.f32 %v1649, %v1809
        %v1811 = vpop.f32.mrb[0].mxu0
        %1812 = vmatprep.mubr.bf16.mxu0 0
        %1813 = vmatmul.mubr.bf16.gmra.mrb[0].mxu0 %v1298
        %v1814 = vpop.f32.mrb[0].mxu0
        %v1815 = vadd.f32 %v1654, %v1814
        %v1816 = vpop.f32.mrb[0].mxu0
        %v1817 = vpop.f32.mrb[0].mxu0
        %v1818 = vadd.f32 %v1657, %v1817
        %v1819 = vpop.f32.mrb[0].mxu0
        %1820 = vmatprep.mubr.bf16.mxu0 0
        %1821 = vmatmul.mubr.bf16.gmra.mrb[0].mxu0 %v1299
        %v1822 = vpop.f32.mrb[0].mxu0
        %v1823 = vadd.f32 %v1662, %v1822
        %v1824 = vpop.f32.mrb[0].mxu0
        %v1825 = vpop.f32.mrb[0].mxu0
        %v1826 = vadd.f32 %v1665, %v1825
        %v1827 = vpop.f32.mrb[0].mxu0
        %1828 = vmatprep.mubr.bf16.mxu0 0
        %1829 = vmatmul.mubr.bf16.gmra.mrb[0].mxu0 %v1300
        %v1830 = vpop.f32.mrb[0].mxu0
        %v1831 = vadd.f32 %v1670, %v1830
        %v1832 = vpop.f32.mrb[0].mxu0
        %v1833 = vpop.f32.mrb[0].mxu0
        %v1834 = vadd.f32 %v1673, %v1833
        %v1835 = vpop.f32.mrb[0].mxu0
        %1836 = vmatprep.mubr.bf16.mxu0 0
        %1837 = vmatmul.mubr.bf16.gmra.mrb[0].mxu0 %v1301
        %v1838 = vpop.f32.mrb[0].mxu0
        %v1839 = vadd.f32 %v1678, %v1838
        %v1840 = vpop.f32.mrb[0].mxu0
        %v1841 = vpop.f32.mrb[0].mxu0
        %v1842 = vadd.f32 %v1681, %v1841
        %v1843 = vpop.f32.mrb[0].mxu0
        %1844 = vmatprep.mubr.bf16.mxu0 0
        %1845 = vmatmul.mubr.bf16.gmra.mrb[0].mxu0 %v1302
        %v1846 = vpop.f32.mrb[0].mxu0
        %v1847 = vadd.f32 %v1686, %v1846
        %v1848 = vpop.f32.mrb[0].mxu0
        %v1849 = vpop.f32.mrb[0].mxu0
        %v1850 = vadd.f32 %v1689, %v1849
        %v1851 = vpop.f32.mrb[0].mxu0
        %1852 = vmatprep.mubr.bf16.mxu0 0
        %1853 = vmatmul.mubr.bf16.gmra.mrb[0].mxu0 %v1303
        %v1854 = vpop.f32.mrb[0].mxu0
        %v1855 = vadd.f32 %v1694, %v1854
        %v1856 = vpop.f32.mrb[0].mxu0
        %v1857 = vpop.f32.mrb[0].mxu0
        %v1858 = vadd.f32 %v1697, %v1857
        %v1859 = vpop.f32.mrb[0].mxu0
        %1860 = vmatprep.mubr.bf16.mxu0 0
        %1861 = vmatmul.mubr.bf16.gmra.mrb[0].mxu0 %v1304
        %v1862 = vpop.f32.mrb[0].mxu0
        %v1863 = vadd.f32 %v1702, %v1862
        %v1864 = vpop.f32.mrb[0].mxu0
        %v1865 = vpop.f32.mrb[0].mxu0
        %v1866 = vadd.f32 %v1705, %v1865
        %v1867 = vpop.f32.mrb[0].mxu0
        %1868 = vdwg.mxu0
        %v1917 = vunpack.c.l.b16 %v1306
        %v1918 = vunpack.c.l.b16 %v1307
        %v1919 = vunpack.c.l.b16 %v1308
        %v1920 = vunpack.c.l.b16 %v1309
        %v1921 = vunpack.c.l.b16 %v1310
        %v1922 = vunpack.c.l.b16 %v1311
        %v1923 = vunpack.c.l.b16 %v1312
        %v1924 = vunpack.c.l.b16 %v1313
        %v1925 = vunpack.c.l.b16 %v1314
        %v1926 = vunpack.c.l.b16 %v1315
        %v1927 = vunpack.c.l.b16 %v1316
        %v1928 = vunpack.c.l.b16 %v1317
        %v1929 = vunpack.c.l.b16 %v1318
        %v1930 = vunpack.c.l.b16 %v1319
        %v1931 = vunpack.c.l.b16 %v1320
        %v1932 = vunpack.c.l.b16 %v1321
        %v1933 = vunpack.c.l.b16 %v1322
        %v1934 = vunpack.c.l.b16 %v1323
        %v1935 = vunpack.c.l.b16 %v1324
        %v1936 = vunpack.c.l.b16 %v1325
        %v1937 = vunpack.c.l.b16 %v1326
        %v1938 = vunpack.c.l.b16 %v1327
        %v1939 = vunpack.c.l.b16 %v1328
        %v1940 = vunpack.c.l.b16 %v1329
        %v1941 = vunpack.c.l.b16 %v1330
        %v1942 = vunpack.c.l.b16 %v1331
        %v1943 = vunpack.c.l.b16 %v1332
        %v1944 = vunpack.c.l.b16 %v1333
        %v1945 = vunpack.c.l.b16 %v1334
        %v1946 = vunpack.c.l.b16 %v1335
        %v1947 = vunpack.c.l.b16 %v1336
        %v1948 = vunpack.c.l.b16 %v1337
        %v1949 = vunpack.c.l.b16 %v1338
        %v1950 = vunpack.c.l.b16 %v1339
        %v1951 = vunpack.c.l.b16 %v1340
        %v1952 = vunpack.c.l.b16 %v1341
        %v1953 = vunpack.c.l.b16 %v1342
        %v1954 = vunpack.c.l.b16 %v1343
        %v1955 = vunpack.c.l.b16 %v1344
        %v1956 = vunpack.c.l.b16 %v1345
        %v1957 = vunpack.c.l.b16 %v1346
        %v1958 = vunpack.c.l.b16 %v1347
        %v1959 = vunpack.c.l.b16 %v1348
        %v1960 = vunpack.c.l.b16 %v1349
        %v1961 = vunpack.c.l.b16 %v1350
        %v1962 = vunpack.c.l.b16 %v1351
        %v1963 = vunpack.c.l.b16 %v1352
        %v1964 = vunpack.c.l.b16 %v1353
        %v1965 = vpack.c.b16 %v1918, %v1917
        %v1966 = vpack.c.b16 %v1920, %v1919
        %v1967 = vpack.c.b16 %v1922, %v1921
        %v1968 = vpack.c.b16 %v1924, %v1923
        %v1969 = vpack.c.b16 %v1926, %v1925
        %v1970 = vpack.c.b16 %v1928, %v1927
        %v1971 = vpack.c.b16 %v1930, %v1929
        %v1972 = vpack.c.b16 %v1932, %v1931
        %v1973 = vpack.c.b16 %v1934, %v1933
        %v1974 = vpack.c.b16 %v1936, %v1935
        %v1975 = vpack.c.b16 %v1938, %v1937
        %v1976 = vpack.c.b16 %v1940, %v1939
        %v1977 = vpack.c.b16 %v1942, %v1941
        %v1978 = vpack.c.b16 %v1944, %v1943
        %v1979 = vpack.c.b16 %v1946, %v1945
        %v1980 = vpack.c.b16 %v1948, %v1947
        %v1981 = vpack.c.b16 %v1950, %v1949
        %v1982 = vpack.c.b16 %v1952, %v1951
        %v1983 = vpack.c.b16 %v1954, %v1953
        %v1984 = vpack.c.b16 %v1956, %v1955
        %v1985 = vpack.c.b16 %v1958, %v1957
        %v1986 = vpack.c.b16 %v1960, %v1959
        %v1987 = vpack.c.b16 %v1962, %v1961
        %v1988 = vpack.c.b16 %v1964, %v1963
        %2013 = vmatprep.subr.bf16.mxu0 0
        %2014 = vmatpush1.bf16.msra.mxu0 %v1965
        %2015 = vmatprep.subr.bf16.mxu0 0
        %2016 = vmatpush1.bf16.msra.mxu0 %v1966
        %2017 = vmatprep.subr.bf16.mxu0 0
        %2018 = vmatpush1.bf16.msra.mxu0 %v1967
        %2019 = vmatprep.subr.bf16.mxu0 0
        %2020 = vmatpush1.bf16.msra.mxu0 %v1968
        %2021 = vmatprep.subr.bf16.mxu0 0
        %2022 = vmatpush1.bf16.msra.mxu0 %v1969
        %2023 = vmatprep.subr.bf16.mxu0 0
        %2024 = vmatpush1.bf16.msra.mxu0 %v1970
        %2025 = vmatprep.subr.bf16.mxu0 0
        %2026 = vmatpush1.bf16.msra.mxu0 %v1971
        %2027 = vmatprep.subr.bf16.mxu0 0
        %2028 = vmatpush1.bf16.msra.mxu0 %v1972
        %2029 = vmatprep.subr.bf16.mxu0 0
        %2030 = vmatpush1.bf16.msra.mxu0 %v1973
        %2031 = vmatprep.subr.bf16.mxu0 0
        %2032 = vmatpush1.bf16.msra.mxu0 %v1974
        %2033 = vmatprep.subr.bf16.mxu0 0
        %2034 = vmatpush1.bf16.msra.mxu0 %v1975
        %2035 = vmatprep.subr.bf16.mxu0 0
        %2036 = vmatpush1.bf16.msra.mxu0 %v1976
        %2037 = vmatprep.subr.bf16.mxu0 0
        %2038 = vmatpush1.bf16.msra.mxu0 %v1977
        %2039 = vmatprep.subr.bf16.mxu0 0
        %2040 = vmatpush1.bf16.msra.mxu0 %v1978
        %2041 = vmatprep.subr.bf16.mxu0 0
        %2042 = vmatpush1.bf16.msra.mxu0 %v1979
        %2043 = vmatprep.subr.bf16.mxu0 0
        %2044 = vmatpush1.bf16.msra.mxu0 %v1980
        %2045 = vmatprep.mubr.bf16.mxu0 %v1270
        %2046 = vmatmul.mubr.bf16.gmra.mrb[0].mxu0 %v1252
        %v2047 = vpop.f32.mrb[0].mxu0
        %v2048 = vadd.f32 %v1743, %v2047
        %v2049 = vpop.f32.mrb[0].mxu0
        %v2050 = vpop.f32.mrb[0].mxu0
        %v2051 = vadd.f32 %v1746, %v2050
        %v2052 = vpop.f32.mrb[0].mxu0
        %2053 = vmatprep.mubr.bf16.mxu0 %v1271
        %2054 = vmatmul.mubr.bf16.gmra.mrb[0].mxu0 %v1253
        %v2055 = vpop.f32.mrb[0].mxu0
        %v2056 = vadd.f32 %v1751, %v2055
        %v2057 = vpop.f32.mrb[0].mxu0
        %v2058 = vpop.f32.mrb[0].mxu0
        %v2059 = vadd.f32 %v1754, %v2058
        %v2060 = vpop.f32.mrb[0].mxu0
        %2061 = vmatprep.mubr.bf16.mxu0 %v1272
        %2062 = vmatmul.mubr.bf16.gmra.mrb[0].mxu0 %v1254
        %v2063 = vpop.f32.mrb[0].mxu0
        %v2064 = vadd.f32 %v1759, %v2063
        %v2065 = vpop.f32.mrb[0].mxu0
        %v2066 = vpop.f32.mrb[0].mxu0
        %v2067 = vadd.f32 %v1762, %v2066
        %v2068 = vpop.f32.mrb[0].mxu0
        %2069 = vmatprep.mubr.bf16.mxu0 %v1273
        %2070 = vmatmul.mubr.bf16.gmra.mrb[0].mxu0 %v1255
        %v2071 = vpop.f32.mrb[0].mxu0
        %v2072 = vadd.f32 %v1767, %v2071
        %v2073 = vpop.f32.mrb[0].mxu0
        %v2074 = vpop.f32.mrb[0].mxu0
        %v2075 = vadd.f32 %v1770, %v2074
        %v2076 = vpop.f32.mrb[0].mxu0
        %2077 = vmatprep.mubr.bf16.mxu0 %v1274
        %2078 = vmatmul.mubr.bf16.gmra.mrb[0].mxu0 %v1256
        %v2079 = vpop.f32.mrb[0].mxu0
        %v2080 = vadd.f32 %v1775, %v2079
        %v2081 = vpop.f32.mrb[0].mxu0
        %v2082 = vpop.f32.mrb[0].mxu0
        %v2083 = vadd.f32 %v1778, %v2082
        %v2084 = vpop.f32.mrb[0].mxu0
        %2085 = vmatprep.mubr.bf16.mxu0 %v1275
        %2086 = vmatmul.mubr.bf16.gmra.mrb[0].mxu0 %v1257
        %v2087 = vpop.f32.mrb[0].mxu0
        %v2088 = vadd.f32 %v1783, %v2087
        %v2089 = vpop.f32.mrb[0].mxu0
        %v2090 = vpop.f32.mrb[0].mxu0
        %v2091 = vadd.f32 %v1786, %v2090
        %v2092 = vpop.f32.mrb[0].mxu0
        %2093 = vmatprep.mubr.bf16.mxu0 %v1276
        %2094 = vmatmul.mubr.bf16.gmra.mrb[0].mxu0 %v1258
        %v2095 = vpop.f32.mrb[0].mxu0
        %v2096 = vadd.f32 %v1791, %v2095
        %v2097 = vpop.f32.mrb[0].mxu0
        %v2098 = vpop.f32.mrb[0].mxu0
        %v2099 = vadd.f32 %v1794, %v2098
        %v2100 = vpop.f32.mrb[0].mxu0
        %2101 = vmatprep.mubr.bf16.mxu0 %v1277
        %2102 = vmatmul.mubr.bf16.gmra.mrb[0].mxu0 %v1259
        %v2103 = vpop.f32.mrb[0].mxu0
        %v2104 = vadd.f32 %v1799, %v2103
        %v2105 = vpop.f32.mrb[0].mxu0
        %v2106 = vpop.f32.mrb[0].mxu0
        %v2107 = vadd.f32 %v1802, %v2106
        %v2108 = vpop.f32.mrb[0].mxu0
        %2109 = vmatprep.mubr.bf16.mxu0 %v1278
        %2110 = vmatmul.mubr.bf16.gmra.mrb[0].mxu0 %v1260
        %v2111 = vpop.f32.mrb[0].mxu0
        %v2112 = vadd.f32 %v1807, %v2111
        %v2113 = vpop.f32.mrb[0].mxu0
        %v2114 = vpop.f32.mrb[0].mxu0
        %v2115 = vadd.f32 %v1810, %v2114
        %v2116 = vpop.f32.mrb[0].mxu0
        %2117 = vmatprep.mubr.bf16.mxu0 %v1279
        %2118 = vmatmul.mubr.bf16.gmra.mrb[0].mxu0 %v1261
        %v2119 = vpop.f32.mrb[0].mxu0
        %v2120 = vadd.f32 %v1815, %v2119
        %v2121 = vpop.f32.mrb[0].mxu0
        %v2122 = vpop.f32.mrb[0].mxu0
        %v2123 = vadd.f32 %v1818, %v2122
        %v2124 = vpop.f32.mrb[0].mxu0
        %2125 = vmatprep.mubr.bf16.mxu0 %v1280
        %2126 = vmatmul.mubr.bf16.gmra.mrb[0].mxu0 %v1262
        %v2127 = vpop.f32.mrb[0].mxu0
        %v2128 = vadd.f32 %v1823, %v2127
        %v2129 = vpop.f32.mrb[0].mxu0
        %v2130 = vpop.f32.mrb[0].mxu0
        %v2131 = vadd.f32 %v1826, %v2130
        %v2132 = vpop.f32.mrb[0].mxu0
        %2133 = vmatprep.mubr.bf16.mxu0 %v1281
        %2134 = vmatmul.mubr.bf16.gmra.mrb[0].mxu0 %v1263
        %v2135 = vpop.f32.mrb[0].mxu0
        %v2136 = vadd.f32 %v1831, %v2135
        %v2137 = vpop.f32.mrb[0].mxu0
        %v2138 = vpop.f32.mrb[0].mxu0
        %v2139 = vadd.f32 %v1834, %v2138
        %v2140 = vpop.f32.mrb[0].mxu0
        %2141 = vmatprep.mubr.bf16.mxu0 %v1282
        %2142 = vmatmul.mubr.bf16.gmra.mrb[0].mxu0 %v1264
        %v2143 = vpop.f32.mrb[0].mxu0
        %v2144 = vadd.f32 %v1839, %v2143
        %v2145 = vpop.f32.mrb[0].mxu0
        %v2146 = vpop.f32.mrb[0].mxu0
        %v2147 = vadd.f32 %v1842, %v2146
        %v2148 = vpop.f32.mrb[0].mxu0
        %2149 = vmatprep.mubr.bf16.mxu0 %v1283
        %2150 = vmatmul.mubr.bf16.gmra.mrb[0].mxu0 %v1265
        %v2151 = vpop.f32.mrb[0].mxu0
        %v2152 = vadd.f32 %v1847, %v2151
        %v2153 = vpop.f32.mrb[0].mxu0
        %v2154 = vpop.f32.mrb[0].mxu0
        %v2155 = vadd.f32 %v1850, %v2154
        %v2156 = vpop.f32.mrb[0].mxu0
        %2157 = vmatprep.mubr.bf16.mxu0 %v1284
        %2158 = vmatmul.mubr.bf16.gmra.mrb[0].mxu0 %v1266
        %v2159 = vpop.f32.mrb[0].mxu0
        %v2160 = vadd.f32 %v1855, %v2159
        %v2161 = vpop.f32.mrb[0].mxu0
        %v2162 = vpop.f32.mrb[0].mxu0
        %v2163 = vadd.f32 %v1858, %v2162
        %v2164 = vpop.f32.mrb[0].mxu0
        %2165 = vmatprep.mubr.bf16.mxu0 %v1285
        %2166 = vmatmul.mubr.bf16.gmra.mrb[0].mxu0 %v1267
        %v2167 = vpop.f32.mrb[0].mxu0
        %v2168 = vadd.f32 %v1863, %v2167
        %v2169 = vpop.f32.mrb[0].mxu0
        %v2170 = vpop.f32.mrb[0].mxu0
        %v2171 = vadd.f32 %v1866, %v2170
        %v2172 = vpop.f32.mrb[0].mxu0
        %2173 = vdwg.mxu0
        %2174 = vmatprep.subr.bf16.mxu0 0
        %2175 = vmatpush1.bf16.msra.mxu0 %v1981
        %2176 = vmatprep.subr.bf16.mxu0 0
        %2177 = vmatpush1.bf16.msra.mxu0 %v1982
        %2178 = vmatprep.subr.bf16.mxu0 0
        %2179 = vmatpush1.bf16.msra.mxu0 %v1983
        %2180 = vmatprep.subr.bf16.mxu0 0
        %2181 = vmatpush1.bf16.msra.mxu0 %v1984
        %2182 = vmatprep.subr.bf16.mxu0 0
        %2183 = vmatpush1.bf16.msra.mxu0 %v1985
        %2184 = vmatprep.subr.bf16.mxu0 0
        %2185 = vmatpush1.bf16.msra.mxu0 %v1986
        %2186 = vmatprep.subr.bf16.mxu0 0
        %2187 = vmatpush1.bf16.msra.mxu0 %v1987
        %2188 = vmatprep.subr.bf16.mxu0 0
        %2189 = vmatpush1.bf16.msra.mxu0 %v1988
        %2190 = vmatprep.subr.bf16.mxu0 0
        %2191 = vmatpush1.bf16.msra.mxu0 0
        %2192 = vmatprep.subr.bf16.mxu0 0
        %2193 = vmatpush1.bf16.msra.mxu0 0
        %2194 = vmatprep.subr.bf16.mxu0 0
        %2195 = vmatpush1.bf16.msra.mxu0 0
        %2196 = vmatprep.subr.bf16.mxu0 0
        %2197 = vmatpush1.bf16.msra.mxu0 0
        %2198 = vmatprep.subr.bf16.mxu0 0
        %2199 = vmatpush1.bf16.msra.mxu0 0
        %2200 = vmatprep.subr.bf16.mxu0 0
        %2201 = vmatpush1.bf16.msra.mxu0 0
        %2202 = vmatprep.subr.bf16.mxu0 0
        %2203 = vmatpush1.bf16.msra.mxu0 0
        %2204 = vmatprep.subr.bf16.mxu0 0
        %2205 = vmatpush1.bf16.msra.mxu0 0
        %2206 = vmatprep.mubr.bf16.mxu0 0
        %2207 = vmatmul.mubr.bf16.gmra.mrb[0].mxu0 %v1288
        %v2208 = vpop.f32.mrb[0].mxu0
        %v2209 = vadd.f32 %v2048, %v2208
        %v2210 = vpop.f32.mrb[0].mxu0
        %v2211 = vpop.f32.mrb[0].mxu0
        %v2212 = vadd.f32 %v2051, %v2211
        %v2213 = vpop.f32.mrb[0].mxu0
        %2214 = vmatprep.mubr.bf16.mxu0 0
        %2215 = vmatmul.mubr.bf16.gmra.mrb[0].mxu0 %v1289
        %v2216 = vpop.f32.mrb[0].mxu0
        %v2217 = vadd.f32 %v2056, %v2216
        %v2218 = vpop.f32.mrb[0].mxu0
        %v2219 = vpop.f32.mrb[0].mxu0
        %v2220 = vadd.f32 %v2059, %v2219
        %v2221 = vpop.f32.mrb[0].mxu0
        %2222 = vmatprep.mubr.bf16.mxu0 0
        %2223 = vmatmul.mubr.bf16.gmra.mrb[0].mxu0 %v1290
        %v2224 = vpop.f32.mrb[0].mxu0
        %v2225 = vadd.f32 %v2064, %v2224
        %v2226 = vpop.f32.mrb[0].mxu0
        %v2227 = vpop.f32.mrb[0].mxu0
        %v2228 = vadd.f32 %v2067, %v2227
        %v2229 = vpop.f32.mrb[0].mxu0
        %2230 = vmatprep.mubr.bf16.mxu0 0
        %2231 = vmatmul.mubr.bf16.gmra.mrb[0].mxu0 %v1291
        %v2232 = vpop.f32.mrb[0].mxu0
        %v2233 = vadd.f32 %v2072, %v2232
        %v2234 = vpop.f32.mrb[0].mxu0
        %v2235 = vpop.f32.mrb[0].mxu0
        %v2236 = vadd.f32 %v2075, %v2235
        %v2237 = vpop.f32.mrb[0].mxu0
        %2238 = vmatprep.mubr.bf16.mxu0 0
        %2239 = vmatmul.mubr.bf16.gmra.mrb[0].mxu0 %v1292
        %v2240 = vpop.f32.mrb[0].mxu0
        %v2241 = vadd.f32 %v2080, %v2240
        %v2242 = vpop.f32.mrb[0].mxu0
        %v2243 = vpop.f32.mrb[0].mxu0
        %v2244 = vadd.f32 %v2083, %v2243
        %v2245 = vpop.f32.mrb[0].mxu0
        %2246 = vmatprep.mubr.bf16.mxu0 0
        %2247 = vmatmul.mubr.bf16.gmra.mrb[0].mxu0 %v1293
        %v2248 = vpop.f32.mrb[0].mxu0
        %v2249 = vadd.f32 %v2088, %v2248
        %v2250 = vpop.f32.mrb[0].mxu0
        %v2251 = vpop.f32.mrb[0].mxu0
        %v2252 = vadd.f32 %v2091, %v2251
        %v2253 = vpop.f32.mrb[0].mxu0
        %2254 = vmatprep.mubr.bf16.mxu0 0
        %2255 = vmatmul.mubr.bf16.gmra.mrb[0].mxu0 %v1294
        %v2256 = vpop.f32.mrb[0].mxu0
        %v2257 = vadd.f32 %v2096, %v2256
        %v2258 = vpop.f32.mrb[0].mxu0
        %v2259 = vpop.f32.mrb[0].mxu0
        %v2260 = vadd.f32 %v2099, %v2259
        %v2261 = vpop.f32.mrb[0].mxu0
        %2262 = vmatprep.mubr.bf16.mxu0 0
        %2263 = vmatmul.mubr.bf16.gmra.mrb[0].mxu0 %v1295
        %v2264 = vpop.f32.mrb[0].mxu0
        %v2265 = vadd.f32 %v2104, %v2264
        %v2266 = vpop.f32.mrb[0].mxu0
        %v2267 = vpop.f32.mrb[0].mxu0
        %v2268 = vadd.f32 %v2107, %v2267
        %v2269 = vpop.f32.mrb[0].mxu0
        %2270 = vmatprep.mubr.bf16.mxu0 0
        %2271 = vmatmul.mubr.bf16.gmra.mrb[0].mxu0 %v1296
        %v2272 = vpop.f32.mrb[0].mxu0
        %v2273 = vadd.f32 %v2112, %v2272
        %v2274 = vpop.f32.mrb[0].mxu0
        %v2275 = vpop.f32.mrb[0].mxu0
        %v2276 = vadd.f32 %v2115, %v2275
        %v2277 = vpop.f32.mrb[0].mxu0
        %2278 = vmatprep.mubr.bf16.mxu0 0
        %2279 = vmatmul.mubr.bf16.gmra.mrb[0].mxu0 %v1297
        %v2280 = vpop.f32.mrb[0].mxu0
        %v2281 = vadd.f32 %v2120, %v2280
        %v2282 = vpop.f32.mrb[0].mxu0
        %v2283 = vpop.f32.mrb[0].mxu0
        %v2284 = vadd.f32 %v2123, %v2283
        %v2285 = vpop.f32.mrb[0].mxu0
        %2286 = vmatprep.mubr.bf16.mxu0 0
        %2287 = vmatmul.mubr.bf16.gmra.mrb[0].mxu0 %v1298
        %v2288 = vpop.f32.mrb[0].mxu0
        %v2289 = vadd.f32 %v2128, %v2288
        %v2290 = vpop.f32.mrb[0].mxu0
        %v2291 = vpop.f32.mrb[0].mxu0
        %v2292 = vadd.f32 %v2131, %v2291
        %v2293 = vpop.f32.mrb[0].mxu0
        %2294 = vmatprep.mubr.bf16.mxu0 0
        %2295 = vmatmul.mubr.bf16.gmra.mrb[0].mxu0 %v1299
        %v2296 = vpop.f32.mrb[0].mxu0
        %v2297 = vadd.f32 %v2136, %v2296
        %v2298 = vpop.f32.mrb[0].mxu0
        %v2299 = vpop.f32.mrb[0].mxu0
        %v2300 = vadd.f32 %v2139, %v2299
        %v2301 = vpop.f32.mrb[0].mxu0
        %2302 = vmatprep.mubr.bf16.mxu0 0
        %2303 = vmatmul.mubr.bf16.gmra.mrb[0].mxu0 %v1300
        %v2304 = vpop.f32.mrb[0].mxu0
        %v2305 = vadd.f32 %v2144, %v2304
        %v2306 = vpop.f32.mrb[0].mxu0
        %v2307 = vpop.f32.mrb[0].mxu0
        %v2308 = vadd.f32 %v2147, %v2307
        %v2309 = vpop.f32.mrb[0].mxu0
        %2310 = vmatprep.mubr.bf16.mxu0 0
        %2311 = vmatmul.mubr.bf16.gmra.mrb[0].mxu0 %v1301
        %v2312 = vpop.f32.mrb[0].mxu0
        %v2313 = vadd.f32 %v2152, %v2312
        %v2314 = vpop.f32.mrb[0].mxu0
        %v2315 = vpop.f32.mrb[0].mxu0
        %v2316 = vadd.f32 %v2155, %v2315
        %v2317 = vpop.f32.mrb[0].mxu0
        %2318 = vmatprep.mubr.bf16.mxu0 0
        %2319 = vmatmul.mubr.bf16.gmra.mrb[0].mxu0 %v1302
        %v2320 = vpop.f32.mrb[0].mxu0
        %v2321 = vadd.f32 %v2160, %v2320
        %v2322 = vpop.f32.mrb[0].mxu0
        %v2323 = vpop.f32.mrb[0].mxu0
        %v2324 = vadd.f32 %v2163, %v2323
        %v2325 = vpop.f32.mrb[0].mxu0
        %2326 = vmatprep.mubr.bf16.mxu0 0
        %2327 = vmatmul.mubr.bf16.gmra.mrb[0].mxu0 %v1303
        %v2328 = vpop.f32.mrb[0].mxu0
        %v2329 = vadd.f32 %v2168, %v2328
        %v2330 = vpop.f32.mrb[0].mxu0
        %v2331 = vpop.f32.mrb[0].mxu0
        %v2332 = vadd.f32 %v2171, %v2331
        %v2333 = vpop.f32.mrb[0].mxu0
        %2334 = vdwg.mxu0
        %s2335 = scalar_lea.vmem [#allocation7], 384
        %v2336 = vld [vmem:[%s2335] sm:$0xf]
        %v2337 = vld [vmem:[%s2335 + $0x4] sm:$0xf]
        %v2338 = vld [vmem:[%s2335 + $0x8] sm:$0xf]
        %v2339 = vld [vmem:[%s2335 + $0xc] sm:$0xf]
        %v2340 = vld [vmem:[%s2335 + $0x10] sm:$0xf]
        %v2341 = vld [vmem:[%s2335 + $0x14] sm:$0xf]
        %v2342 = vld [vmem:[%s2335 + $0x18] sm:$0xf]
        %v2343 = vld [vmem:[%s2335 + $0x1c] sm:$0xf]
        %v2344 = vld [vmem:[%s2335 + $0x20] sm:$0xf]
        %v2345 = vld [vmem:[%s2335 + $0x24] sm:$0xf]
        %v2346 = vld [vmem:[%s2335 + $0x28] sm:$0xf]
        %v2347 = vld [vmem:[%s2335 + $0x2c] sm:$0xf]
        %v2348 = vld [vmem:[%s2335 + $0x30] sm:$0xf]
        %v2349 = vld [vmem:[%s2335 + $0x34] sm:$0xf]
        %v2350 = vld [vmem:[%s2335 + $0x38] sm:$0xf]
        %v2351 = vld [vmem:[%s2335 + $0x3c] sm:$0xf]
        %v2352 = vld [vmem:[%s2335 + $0x40] sm:$0xf]
        %v2353 = vld [vmem:[%s2335 + $0x44] sm:$0xf]
        %v2354 = vld [vmem:[%s2335 + $0x48] sm:$0xf]
        %v2355 = vld [vmem:[%s2335 + $0x4c] sm:$0xf]
        %v2356 = vld [vmem:[%s2335 + $0x50] sm:$0xf]
        %v2357 = vld [vmem:[%s2335 + $0x54] sm:$0xf]
        %v2358 = vld [vmem:[%s2335 + $0x58] sm:$0xf]
        %v2359 = vld [vmem:[%s2335 + $0x5c] sm:$0xf]
        %v2360 = vld [vmem:[%s2335 + $0x60] sm:$0xf]
        %v2361 = vld [vmem:[%s2335 + $0x64] sm:$0xf]
        %v2362 = vld [vmem:[%s2335 + $0x68] sm:$0xf]
        %v2363 = vld [vmem:[%s2335 + $0x6c] sm:$0xf]
        %v2364 = vld [vmem:[%s2335 + $0x70] sm:$0xf]
        %v2365 = vld [vmem:[%s2335 + $0x74] sm:$0xf]
        %v2366 = vld [vmem:[%s2335 + $0x78] sm:$0xf]
        %v2367 = vld [vmem:[%s2335 + $0x7c] sm:$0xf]
        %v2368 = vld [vmem:[%s2335 + $0x80] sm:$0xf]
        %v2369 = vld [vmem:[%s2335 + $0x84] sm:$0xf]
        %v2370 = vld [vmem:[%s2335 + $0x88] sm:$0xf]
        %v2371 = vld [vmem:[%s2335 + $0x8c] sm:$0xf]
        %v2372 = vld [vmem:[%s2335 + $0x90] sm:$0xf]
        %v2373 = vld [vmem:[%s2335 + $0x94] sm:$0xf]
        %v2374 = vld [vmem:[%s2335 + $0x98] sm:$0xf]
        %v2375 = vld [vmem:[%s2335 + $0x9c] sm:$0xf]
        %v2376 = vld [vmem:[%s2335 + $0xa0] sm:$0xf]
        %v2377 = vld [vmem:[%s2335 + $0xa4] sm:$0xf]
        %v2378 = vld [vmem:[%s2335 + $0xa8] sm:$0xf]
        %v2379 = vld [vmem:[%s2335 + $0xac] sm:$0xf]
        %v2380 = vld [vmem:[%s2335 + $0xb0] sm:$0xf]
        %v2381 = vld [vmem:[%s2335 + $0xb4] sm:$0xf]
        %v2382 = vld [vmem:[%s2335 + $0xb8] sm:$0xf]
        %v2383 = vld [vmem:[%s2335 + $0xbc] sm:$0xf]
        %v2432 = vunpack.c.l.b16 %v2336
        %v2433 = vunpack.c.l.b16 %v2337
        %v2434 = vunpack.c.l.b16 %v2338
        %v2435 = vunpack.c.l.b16 %v2339
        %v2436 = vunpack.c.l.b16 %v2340
        %v2437 = vunpack.c.l.b16 %v2341
        %v2438 = vunpack.c.l.b16 %v2342
        %v2439 = vunpack.c.l.b16 %v2343
        %v2440 = vunpack.c.l.b16 %v2344
        %v2441 = vunpack.c.l.b16 %v2345
        %v2442 = vunpack.c.l.b16 %v2346
        %v2443 = vunpack.c.l.b16 %v2347
        %v2444 = vunpack.c.l.b16 %v2348
        %v2445 = vunpack.c.l.b16 %v2349
        %v2446 = vunpack.c.l.b16 %v2350
        %v2447 = vunpack.c.l.b16 %v2351
        %v2448 = vunpack.c.l.b16 %v2352
        %v2449 = vunpack.c.l.b16 %v2353
        %v2450 = vunpack.c.l.b16 %v2354
        %v2451 = vunpack.c.l.b16 %v2355
        %v2452 = vunpack.c.l.b16 %v2356
        %v2453 = vunpack.c.l.b16 %v2357
        %v2454 = vunpack.c.l.b16 %v2358
        %v2455 = vunpack.c.l.b16 %v2359
        %v2456 = vunpack.c.l.b16 %v2360
        %v2457 = vunpack.c.l.b16 %v2361
        %v2458 = vunpack.c.l.b16 %v2362
        %v2459 = vunpack.c.l.b16 %v2363
        %v2460 = vunpack.c.l.b16 %v2364
        %v2461 = vunpack.c.l.b16 %v2365
        %v2462 = vunpack.c.l.b16 %v2366
        %v2463 = vunpack.c.l.b16 %v2367
        %v2464 = vunpack.c.l.b16 %v2368
        %v2465 = vunpack.c.l.b16 %v2369
        %v2466 = vunpack.c.l.b16 %v2370
        %v2467 = vunpack.c.l.b16 %v2371
        %v2468 = vunpack.c.l.b16 %v2372
        %v2469 = vunpack.c.l.b16 %v2373
        %v2470 = vunpack.c.l.b16 %v2374
        %v2471 = vunpack.c.l.b16 %v2375
        %v2472 = vunpack.c.l.b16 %v2376
        %v2473 = vunpack.c.l.b16 %v2377
        %v2474 = vunpack.c.l.b16 %v2378
        %v2475 = vunpack.c.l.b16 %v2379
        %v2476 = vunpack.c.l.b16 %v2380
        %v2477 = vunpack.c.l.b16 %v2381
        %v2478 = vunpack.c.l.b16 %v2382
        %v2479 = vunpack.c.l.b16 %v2383
        %v2480 = vpack.c.b16 %v2433, %v2432
        %v2481 = vpack.c.b16 %v2435, %v2434
        %v2482 = vpack.c.b16 %v2437, %v2436
        %v2483 = vpack.c.b16 %v2439, %v2438
        %v2484 = vpack.c.b16 %v2441, %v2440
        %v2485 = vpack.c.b16 %v2443, %v2442
        %v2486 = vpack.c.b16 %v2445, %v2444
        %v2487 = vpack.c.b16 %v2447, %v2446
        %v2488 = vpack.c.b16 %v2449, %v2448
        %v2489 = vpack.c.b16 %v2451, %v2450
        %v2490 = vpack.c.b16 %v2453, %v2452
        %v2491 = vpack.c.b16 %v2455, %v2454
        %v2492 = vpack.c.b16 %v2457, %v2456
        %v2493 = vpack.c.b16 %v2459, %v2458
        %v2494 = vpack.c.b16 %v2461, %v2460
        %v2495 = vpack.c.b16 %v2463, %v2462
        %v2496 = vpack.c.b16 %v2465, %v2464
        %v2497 = vpack.c.b16 %v2467, %v2466
        %v2498 = vpack.c.b16 %v2469, %v2468
        %v2499 = vpack.c.b16 %v2471, %v2470
        %v2500 = vpack.c.b16 %v2473, %v2472
        %v2501 = vpack.c.b16 %v2475, %v2474
        %v2502 = vpack.c.b16 %v2477, %v2476
        %v2503 = vpack.c.b16 %v2479, %v2478
        %2528 = vmatprep.subr.bf16.mxu0 0
        %2529 = vmatpush1.bf16.msra.mxu0 %v2480
        %2530 = vmatprep.subr.bf16.mxu0 0
        %2531 = vmatpush1.bf16.msra.mxu0 %v2481
        %2532 = vmatprep.subr.bf16.mxu0 0
        %2533 = vmatpush1.bf16.msra.mxu0 %v2482
        %2534 = vmatprep.subr.bf16.mxu0 0
        %2535 = vmatpush1.bf16.msra.mxu0 %v2483
        %2536 = vmatprep.subr.bf16.mxu0 0
        %2537 = vmatpush1.bf16.msra.mxu0 %v2484
        %2538 = vmatprep.subr.bf16.mxu0 0
        %2539 = vmatpush1.bf16.msra.mxu0 %v2485
        %2540 = vmatprep.subr.bf16.mxu0 0
        %2541 = vmatpush1.bf16.msra.mxu0 %v2486
        %2542 = vmatprep.subr.bf16.mxu0 0
        %2543 = vmatpush1.bf16.msra.mxu0 %v2487
        %2544 = vmatprep.subr.bf16.mxu0 0
        %2545 = vmatpush1.bf16.msra.mxu0 %v2488
        %2546 = vmatprep.subr.bf16.mxu0 0
        %2547 = vmatpush1.bf16.msra.mxu0 %v2489
        %2548 = vmatprep.subr.bf16.mxu0 0
        %2549 = vmatpush1.bf16.msra.mxu0 %v2490
        %2550 = vmatprep.subr.bf16.mxu0 0
        %2551 = vmatpush1.bf16.msra.mxu0 %v2491
        %2552 = vmatprep.subr.bf16.mxu0 0
        %2553 = vmatpush1.bf16.msra.mxu0 %v2492
        %2554 = vmatprep.subr.bf16.mxu0 0
        %2555 = vmatpush1.bf16.msra.mxu0 %v2493
        %2556 = vmatprep.subr.bf16.mxu0 0
        %2557 = vmatpush1.bf16.msra.mxu0 %v2494
        %2558 = vmatprep.subr.bf16.mxu0 0
        %2559 = vmatpush1.bf16.msra.mxu0 %v2495
        %2560 = vmatprep.mubr.bf16.mxu0 %v1272
        %2561 = vmatmul.mubr.bf16.gmra.mrb[0].mxu0 %v1254
        %v2562 = vpop.f32.mrb[0].mxu0
        %v2563 = vadd.f32 0.0, %v2562
        %v2564 = vpop.f32.mrb[0].mxu0
        %v2565 = vpop.f32.mrb[0].mxu0
        %v2566 = vadd.f32 0.0, %v2565
        %v2567 = vpop.f32.mrb[0].mxu0
        %2568 = vmatprep.mubr.bf16.mxu0 %v1273
        %2569 = vmatmul.mubr.bf16.gmra.mrb[0].mxu0 %v1255
        %v2570 = vpop.f32.mrb[0].mxu0
        %v2571 = vadd.f32 0.0, %v2570
        %v2572 = vpop.f32.mrb[0].mxu0
        %v2573 = vpop.f32.mrb[0].mxu0
        %v2574 = vadd.f32 0.0, %v2573
        %v2575 = vpop.f32.mrb[0].mxu0
        %2576 = vmatprep.mubr.bf16.mxu0 %v1274
        %2577 = vmatmul.mubr.bf16.gmra.mrb[0].mxu0 %v1256
        %v2578 = vpop.f32.mrb[0].mxu0
        %v2579 = vadd.f32 0.0, %v2578
        %v2580 = vpop.f32.mrb[0].mxu0
        %v2581 = vpop.f32.mrb[0].mxu0
        %v2582 = vadd.f32 0.0, %v2581
        %v2583 = vpop.f32.mrb[0].mxu0
        %2584 = vmatprep.mubr.bf16.mxu0 %v1275
        %2585 = vmatmul.mubr.bf16.gmra.mrb[0].mxu0 %v1257
        %v2586 = vpop.f32.mrb[0].mxu0
        %v2587 = vadd.f32 0.0, %v2586
        %v2588 = vpop.f32.mrb[0].mxu0
        %v2589 = vpop.f32.mrb[0].mxu0
        %v2590 = vadd.f32 0.0, %v2589
        %v2591 = vpop.f32.mrb[0].mxu0
        %2592 = vmatprep.mubr.bf16.mxu0 %v1276
        %2593 = vmatmul.mubr.bf16.gmra.mrb[0].mxu0 %v1258
        %v2594 = vpop.f32.mrb[0].mxu0
        %v2595 = vadd.f32 0.0, %v2594
        %v2596 = vpop.f32.mrb[0].mxu0
        %v2597 = vpop.f32.mrb[0].mxu0
        %v2598 = vadd.f32 0.0, %v2597
        %v2599 = vpop.f32.mrb[0].mxu0
        %2600 = vmatprep.mubr.bf16.mxu0 %v1277
        %2601 = vmatmul.mubr.bf16.gmra.mrb[0].mxu0 %v1259
        %v2602 = vpop.f32.mrb[0].mxu0
        %v2603 = vadd.f32 0.0, %v2602
        %v2604 = vpop.f32.mrb[0].mxu0
        %v2605 = vpop.f32.mrb[0].mxu0
        %v2606 = vadd.f32 0.0, %v2605
        %v2607 = vpop.f32.mrb[0].mxu0
        %2608 = vmatprep.mubr.bf16.mxu0 %v1278
        %2609 = vmatmul.mubr.bf16.gmra.mrb[0].mxu0 %v1260
        %v2610 = vpop.f32.mrb[0].mxu0
        %v2611 = vadd.f32 0.0, %v2610
        %v2612 = vpop.f32.mrb[0].mxu0
        %v2613 = vpop.f32.mrb[0].mxu0
        %v2614 = vadd.f32 0.0, %v2613
        %v2615 = vpop.f32.mrb[0].mxu0
        %2616 = vmatprep.mubr.bf16.mxu0 %v1279
        %2617 = vmatmul.mubr.bf16.gmra.mrb[0].mxu0 %v1261
        %v2618 = vpop.f32.mrb[0].mxu0
        %v2619 = vadd.f32 0.0, %v2618
        %v2620 = vpop.f32.mrb[0].mxu0
        %v2621 = vpop.f32.mrb[0].mxu0
        %v2622 = vadd.f32 0.0, %v2621
        %v2623 = vpop.f32.mrb[0].mxu0
        %2624 = vmatprep.mubr.bf16.mxu0 %v1280
        %2625 = vmatmul.mubr.bf16.gmra.mrb[0].mxu0 %v1262
        %v2626 = vpop.f32.mrb[0].mxu0
        %v2627 = vadd.f32 0.0, %v2626
        %v2628 = vpop.f32.mrb[0].mxu0
        %v2629 = vpop.f32.mrb[0].mxu0
        %v2630 = vadd.f32 0.0, %v2629
        %v2631 = vpop.f32.mrb[0].mxu0
        %2632 = vmatprep.mubr.bf16.mxu0 %v1281
        %2633 = vmatmul.mubr.bf16.gmra.mrb[0].mxu0 %v1263
        %v2634 = vpop.f32.mrb[0].mxu0
        %v2635 = vadd.f32 0.0, %v2634
        %v2636 = vpop.f32.mrb[0].mxu0
        %v2637 = vpop.f32.mrb[0].mxu0
        %v2638 = vadd.f32 0.0, %v2637
        %v2639 = vpop.f32.mrb[0].mxu0
        %2640 = vmatprep.mubr.bf16.mxu0 %v1282
        %2641 = vmatmul.mubr.bf16.gmra.mrb[0].mxu0 %v1264
        %v2642 = vpop.f32.mrb[0].mxu0
        %v2643 = vadd.f32 0.0, %v2642
        %v2644 = vpop.f32.mrb[0].mxu0
        %v2645 = vpop.f32.mrb[0].mxu0
        %v2646 = vadd.f32 0.0, %v2645
        %v2647 = vpop.f32.mrb[0].mxu0
        %2648 = vmatprep.mubr.bf16.mxu0 %v1283
        %2649 = vmatmul.mubr.bf16.gmra.mrb[0].mxu0 %v1265
        %v2650 = vpop.f32.mrb[0].mxu0
        %v2651 = vadd.f32 0.0, %v2650
        %v2652 = vpop.f32.mrb[0].mxu0
        %v2653 = vpop.f32.mrb[0].mxu0
        %v2654 = vadd.f32 0.0, %v2653
        %v2655 = vpop.f32.mrb[0].mxu0
        %2656 = vmatprep.mubr.bf16.mxu0 %v1284
        %2657 = vmatmul.mubr.bf16.gmra.mrb[0].mxu0 %v1266
        %v2658 = vpop.f32.mrb[0].mxu0
        %v2659 = vadd.f32 0.0, %v2658
        %v2660 = vpop.f32.mrb[0].mxu0
        %v2661 = vpop.f32.mrb[0].mxu0
        %v2662 = vadd.f32 0.0, %v2661
        %v2663 = vpop.f32.mrb[0].mxu0
        %2664 = vmatprep.mubr.bf16.mxu0 %v1285
        %2665 = vmatmul.mubr.bf16.gmra.mrb[0].mxu0 %v1267
        %v2666 = vpop.f32.mrb[0].mxu0
        %v2667 = vadd.f32 0.0, %v2666
        %v2668 = vpop.f32.mrb[0].mxu0
        %v2669 = vpop.f32.mrb[0].mxu0
        %v2670 = vadd.f32 0.0, %v2669
        %v2671 = vpop.f32.mrb[0].mxu0
        %2672 = vmatprep.mubr.bf16.mxu0 %v1286
        %2673 = vmatmul.mubr.bf16.gmra.mrb[0].mxu0 %v1268
        %v2674 = vpop.f32.mrb[0].mxu0
        %v2675 = vadd.f32 0.0, %v2674
        %v2676 = vpop.f32.mrb[0].mxu0
        %v2677 = vpop.f32.mrb[0].mxu0
        %v2678 = vadd.f32 0.0, %v2677
        %v2679 = vpop.f32.mrb[0].mxu0
        %2680 = vmatprep.mubr.bf16.mxu0 %v1287
        %2681 = vmatmul.mubr.bf16.gmra.mrb[0].mxu0 %v1269
        %v2682 = vpop.f32.mrb[0].mxu0
        %v2683 = vadd.f32 0.0, %v2682
        %v2684 = vpop.f32.mrb[0].mxu0
        %v2685 = vpop.f32.mrb[0].mxu0
        %v2686 = vadd.f32 0.0, %v2685
        %v2687 = vpop.f32.mrb[0].mxu0
        %2688 = vdwg.mxu0
        %2689 = vmatprep.subr.bf16.mxu0 0
        %2690 = vmatpush1.bf16.msra.mxu0 %v2496
        %2691 = vmatprep.subr.bf16.mxu0 0
        %2692 = vmatpush1.bf16.msra.mxu0 %v2497
        %2693 = vmatprep.subr.bf16.mxu0 0
        %2694 = vmatpush1.bf16.msra.mxu0 %v2498
        %2695 = vmatprep.subr.bf16.mxu0 0
        %2696 = vmatpush1.bf16.msra.mxu0 %v2499
        %2697 = vmatprep.subr.bf16.mxu0 0
        %2698 = vmatpush1.bf16.msra.mxu0 %v2500
        %2699 = vmatprep.subr.bf16.mxu0 0
        %2700 = vmatpush1.bf16.msra.mxu0 %v2501
        %2701 = vmatprep.subr.bf16.mxu0 0
        %2702 = vmatpush1.bf16.msra.mxu0 %v2502
        %2703 = vmatprep.subr.bf16.mxu0 0
        %2704 = vmatpush1.bf16.msra.mxu0 %v2503
        %2705 = vmatprep.subr.bf16.mxu0 0
        %2706 = vmatpush1.bf16.msra.mxu0 0
        %2707 = vmatprep.subr.bf16.mxu0 0
        %2708 = vmatpush1.bf16.msra.mxu0 0
        %2709 = vmatprep.subr.bf16.mxu0 0
        %2710 = vmatpush1.bf16.msra.mxu0 0
        %2711 = vmatprep.subr.bf16.mxu0 0
        %2712 = vmatpush1.bf16.msra.mxu0 0
        %2713 = vmatprep.subr.bf16.mxu0 0
        %2714 = vmatpush1.bf16.msra.mxu0 0
        %2715 = vmatprep.subr.bf16.mxu0 0
        %2716 = vmatpush1.bf16.msra.mxu0 0
        %2717 = vmatprep.subr.bf16.mxu0 0
        %2718 = vmatpush1.bf16.msra.mxu0 0
        %2719 = vmatprep.subr.bf16.mxu0 0
        %2720 = vmatpush1.bf16.msra.mxu0 0
        %2721 = vmatprep.mubr.bf16.mxu0 0
        %2722 = vmatmul.mubr.bf16.gmra.mrb[0].mxu0 %v1290
        %v2723 = vpop.f32.mrb[0].mxu0
        %v2724 = vadd.f32 %v2563, %v2723
        %v2725 = vpop.f32.mrb[0].mxu0
        %v2726 = vpop.f32.mrb[0].mxu0
        %v2727 = vadd.f32 %v2566, %v2726
        %v2728 = vpop.f32.mrb[0].mxu0
        %2729 = vmatprep.mubr.bf16.mxu0 0
        %2730 = vmatmul.mubr.bf16.gmra.mrb[0].mxu0 %v1291
        %v2731 = vpop.f32.mrb[0].mxu0
        %v2732 = vadd.f32 %v2571, %v2731
        %v2733 = vpop.f32.mrb[0].mxu0
        %v2734 = vpop.f32.mrb[0].mxu0
        %v2735 = vadd.f32 %v2574, %v2734
        %v2736 = vpop.f32.mrb[0].mxu0
        %2737 = vmatprep.mubr.bf16.mxu0 0
        %2738 = vmatmul.mubr.bf16.gmra.mrb[0].mxu0 %v1292
        %v2739 = vpop.f32.mrb[0].mxu0
        %v2740 = vadd.f32 %v2579, %v2739
        %v2741 = vpop.f32.mrb[0].mxu0
        %v2742 = vpop.f32.mrb[0].mxu0
        %v2743 = vadd.f32 %v2582, %v2742
        %v2744 = vpop.f32.mrb[0].mxu0
        %2745 = vmatprep.mubr.bf16.mxu0 0
        %2746 = vmatmul.mubr.bf16.gmra.mrb[0].mxu0 %v1293
        %v2747 = vpop.f32.mrb[0].mxu0
        %v2748 = vadd.f32 %v2587, %v2747
        %v2749 = vpop.f32.mrb[0].mxu0
        %v2750 = vpop.f32.mrb[0].mxu0
        %v2751 = vadd.f32 %v2590, %v2750
        %v2752 = vpop.f32.mrb[0].mxu0
        %2753 = vmatprep.mubr.bf16.mxu0 0
        %2754 = vmatmul.mubr.bf16.gmra.mrb[0].mxu0 %v1294
        %v2755 = vpop.f32.mrb[0].mxu0
        %v2756 = vadd.f32 %v2595, %v2755
        %v2757 = vpop.f32.mrb[0].mxu0
        %v2758 = vpop.f32.mrb[0].mxu0
        %v2759 = vadd.f32 %v2598, %v2758
        %v2760 = vpop.f32.mrb[0].mxu0
        %2761 = vmatprep.mubr.bf16.mxu0 0
        %2762 = vmatmul.mubr.bf16.gmra.mrb[0].mxu0 %v1295
        %v2763 = vpop.f32.mrb[0].mxu0
        %v2764 = vadd.f32 %v2603, %v2763
        %v2765 = vpop.f32.mrb[0].mxu0
        %v2766 = vpop.f32.mrb[0].mxu0
        %v2767 = vadd.f32 %v2606, %v2766
        %v2768 = vpop.f32.mrb[0].mxu0
        %2769 = vmatprep.mubr.bf16.mxu0 0
        %2770 = vmatmul.mubr.bf16.gmra.mrb[0].mxu0 %v1296
        %v2771 = vpop.f32.mrb[0].mxu0
        %v2772 = vadd.f32 %v2611, %v2771
        %v2773 = vpop.f32.mrb[0].mxu0
        %v2774 = vpop.f32.mrb[0].mxu0
        %v2775 = vadd.f32 %v2614, %v2774
        %v2776 = vpop.f32.mrb[0].mxu0
        %2777 = vmatprep.mubr.bf16.mxu0 0
        %2778 = vmatmul.mubr.bf16.gmra.mrb[0].mxu0 %v1297
        %v2779 = vpop.f32.mrb[0].mxu0
        %v2780 = vadd.f32 %v2619, %v2779
        %v2781 = vpop.f32.mrb[0].mxu0
        %v2782 = vpop.f32.mrb[0].mxu0
        %v2783 = vadd.f32 %v2622, %v2782
        %v2784 = vpop.f32.mrb[0].mxu0
        %2785 = vmatprep.mubr.bf16.mxu0 0
        %2786 = vmatmul.mubr.bf16.gmra.mrb[0].mxu0 %v1298
        %v2787 = vpop.f32.mrb[0].mxu0
        %v2788 = vadd.f32 %v2627, %v2787
        %v2789 = vpop.f32.mrb[0].mxu0
        %v2790 = vpop.f32.mrb[0].mxu0
        %v2791 = vadd.f32 %v2630, %v2790
        %v2792 = vpop.f32.mrb[0].mxu0
        %2793 = vmatprep.mubr.bf16.mxu0 0
        %2794 = vmatmul.mubr.bf16.gmra.mrb[0].mxu0 %v1299
        %v2795 = vpop.f32.mrb[0].mxu0
        %v2796 = vadd.f32 %v2635, %v2795
        %v2797 = vpop.f32.mrb[0].mxu0
        %v2798 = vpop.f32.mrb[0].mxu0
        %v2799 = vadd.f32 %v2638, %v2798
        %v2800 = vpop.f32.mrb[0].mxu0
        %2801 = vmatprep.mubr.bf16.mxu0 0
        %2802 = vmatmul.mubr.bf16.gmra.mrb[0].mxu0 %v1300
        %v2803 = vpop.f32.mrb[0].mxu0
        %v2804 = vadd.f32 %v2643, %v2803
        %v2805 = vpop.f32.mrb[0].mxu0
        %v2806 = vpop.f32.mrb[0].mxu0
        %v2807 = vadd.f32 %v2646, %v2806
        %v2808 = vpop.f32.mrb[0].mxu0
        %2809 = vmatprep.mubr.bf16.mxu0 0
        %2810 = vmatmul.mubr.bf16.gmra.mrb[0].mxu0 %v1301
        %v2811 = vpop.f32.mrb[0].mxu0
        %v2812 = vadd.f32 %v2651, %v2811
        %v2813 = vpop.f32.mrb[0].mxu0
        %v2814 = vpop.f32.mrb[0].mxu0
        %v2815 = vadd.f32 %v2654, %v2814
        %v2816 = vpop.f32.mrb[0].mxu0
        %2817 = vmatprep.mubr.bf16.mxu0 0
        %2818 = vmatmul.mubr.bf16.gmra.mrb[0].mxu0 %v1302
        %v2819 = vpop.f32.mrb[0].mxu0
        %v2820 = vadd.f32 %v2659, %v2819
        %v2821 = vpop.f32.mrb[0].mxu0
        %v2822 = vpop.f32.mrb[0].mxu0
        %v2823 = vadd.f32 %v2662, %v2822
        %v2824 = vpop.f32.mrb[0].mxu0
        %2825 = vmatprep.mubr.bf16.mxu0 0
        %2826 = vmatmul.mubr.bf16.gmra.mrb[0].mxu0 %v1303
        %v2827 = vpop.f32.mrb[0].mxu0
        %v2828 = vadd.f32 %v2667, %v2827
        %v2829 = vpop.f32.mrb[0].mxu0
        %v2830 = vpop.f32.mrb[0].mxu0
        %v2831 = vadd.f32 %v2670, %v2830
        %v2832 = vpop.f32.mrb[0].mxu0
        %2833 = vmatprep.mubr.bf16.mxu0 0
        %2834 = vmatmul.mubr.bf16.gmra.mrb[0].mxu0 %v1304
        %v2835 = vpop.f32.mrb[0].mxu0
        %v2836 = vadd.f32 %v2675, %v2835
        %v2837 = vpop.f32.mrb[0].mxu0
        %v2838 = vpop.f32.mrb[0].mxu0
        %v2839 = vadd.f32 %v2678, %v2838
        %v2840 = vpop.f32.mrb[0].mxu0
        %2841 = vmatprep.mubr.bf16.mxu0 0
        %2842 = vmatmul.mubr.bf16.gmra.mrb[0].mxu0 %v1305
        %v2843 = vpop.f32.mrb[0].mxu0
        %v2844 = vadd.f32 %v2683, %v2843
        %v2845 = vpop.f32.mrb[0].mxu0
        %v2846 = vpop.f32.mrb[0].mxu0
        %v2847 = vadd.f32 %v2686, %v2846
        %v2848 = vpop.f32.mrb[0].mxu0
        %2849 = vdwg.mxu0
        %v2850 = vadd.f32 %v2209, %v2724
        %v2851 = vadd.f32 %v2212, %v2727
        %v2852 = vadd.f32 %v2217, %v2732
        %v2853 = vadd.f32 %v2220, %v2735
        %v2854 = vadd.f32 %v2225, %v2740
        %v2855 = vadd.f32 %v2228, %v2743
        %v2856 = vadd.f32 %v2233, %v2748
        %v2857 = vadd.f32 %v2236, %v2751
        %v2858 = vadd.f32 %v2241, %v2756
        %v2859 = vadd.f32 %v2244, %v2759
        %v2860 = vadd.f32 %v2249, %v2764
        %v2861 = vadd.f32 %v2252, %v2767
        %v2862 = vadd.f32 %v2257, %v2772
        %v2863 = vadd.f32 %v2260, %v2775
        %v2864 = vadd.f32 %v2265, %v2780
        %v2865 = vadd.f32 %v2268, %v2783
        %v2866 = vadd.f32 %v2273, %v2788
        %v2867 = vadd.f32 %v2276, %v2791
        %v2868 = vadd.f32 %v2281, %v2796
        %v2869 = vadd.f32 %v2284, %v2799
        %v2870 = vadd.f32 %v2289, %v2804
        %v2871 = vadd.f32 %v2292, %v2807
        %v2872 = vadd.f32 %v2297, %v2812
        %v2873 = vadd.f32 %v2300, %v2815
        %v2874 = vadd.f32 %v2305, %v2820
        %v2875 = vadd.f32 %v2308, %v2823
        %v2876 = vadd.f32 %v2313, %v2828
        %v2877 = vadd.f32 %v2316, %v2831
        %v2878 = vadd.f32 %v2321, %v2836
        %v2879 = vadd.f32 %v2324, %v2839
        %v2880 = vadd.f32 %v2329, %v2844
        %v2881 = vadd.f32 %v2332, %v2847
        %v2882 = vld [vmem:[%s4] sm:$0x1]
        %v2884 = vlaneseq
        %v2885 = vshrl.u32 %v2884, 7
        %v2886 = vsub.s32 0, %v2885
        %v2887 = vrot.slane %v2882, %v2886
        %v2889 = vadd.f32 %v2850, %v2887
        %v2890 = vadd.f32 %v2851, %v2887
        %v2891 = vadd.f32 %v2852, %v2887
        %v2892 = vadd.f32 %v2853, %v2887
        %v2893 = vadd.f32 %v2854, %v2887
        %v2894 = vadd.f32 %v2855, %v2887
        %v2895 = vadd.f32 %v2856, %v2887
        %v2896 = vadd.f32 %v2857, %v2887
        %v2897 = vadd.f32 %v2858, %v2887
        %v2898 = vadd.f32 %v2859, %v2887
        %v2899 = vadd.f32 %v2860, %v2887
        %v2900 = vadd.f32 %v2861, %v2887
        %v2901 = vadd.f32 %v2862, %v2887
        %v2902 = vadd.f32 %v2863, %v2887
        %v2903 = vadd.f32 %v2864, %v2887
        %v2904 = vadd.f32 %v2865, %v2887
        %v2905 = vadd.f32 %v2866, %v2887
        %v2906 = vadd.f32 %v2867, %v2887
        %v2907 = vadd.f32 %v2868, %v2887
        %v2908 = vadd.f32 %v2869, %v2887
        %v2909 = vadd.f32 %v2870, %v2887
        %v2910 = vadd.f32 %v2871, %v2887
        %v2911 = vadd.f32 %v2872, %v2887
        %v2912 = vadd.f32 %v2873, %v2887
        %v2913 = vadd.f32 %v2874, %v2887
        %v2914 = vadd.f32 %v2875, %v2887
        %v2915 = vadd.f32 %v2876, %v2887
        %v2916 = vadd.f32 %v2877, %v2887
        %v2917 = vadd.f32 %v2878, %v2887
        %v2918 = vadd.f32 %v2879, %v2887
        %v2919 = vadd.f32 %v2880, %v2887
        %v2920 = vadd.f32 %v2881, %v2887
        %v2921 = vmax.f32 %v2889, 0.0
        %v2922 = vmax.f32 %v2890, 0.0
        %v2923 = vmax.f32 %v2891, 0.0
        %v2924 = vmax.f32 %v2892, 0.0
        %v2925 = vmax.f32 %v2893, 0.0
        %v2926 = vmax.f32 %v2894, 0.0
        %v2927 = vmax.f32 %v2895, 0.0
        %v2928 = vmax.f32 %v2896, 0.0
        %v2929 = vmax.f32 %v2897, 0.0
        %v2930 = vmax.f32 %v2898, 0.0
        %v2931 = vmax.f32 %v2899, 0.0
        %v2932 = vmax.f32 %v2900, 0.0
        %v2933 = vmax.f32 %v2901, 0.0
        %v2934 = vmax.f32 %v2902, 0.0
        %v2935 = vmax.f32 %v2903, 0.0
        %v2936 = vmax.f32 %v2904, 0.0
        %v2937 = vmax.f32 %v2905, 0.0
        %v2938 = vmax.f32 %v2906, 0.0
        %v2939 = vmax.f32 %v2907, 0.0
        %v2940 = vmax.f32 %v2908, 0.0
        %v2941 = vmax.f32 %v2909, 0.0
        %v2942 = vmax.f32 %v2910, 0.0
        %v2943 = vmax.f32 %v2911, 0.0
        %v2944 = vmax.f32 %v2912, 0.0
        %v2945 = vmax.f32 %v2913, 0.0
        %v2946 = vmax.f32 %v2914, 0.0
        %v2947 = vmax.f32 %v2915, 0.0
        %v2948 = vmax.f32 %v2916, 0.0
        %v2949 = vmax.f32 %v2917, 0.0
        %v2950 = vmax.f32 %v2918, 0.0
        %v2951 = vmax.f32 %v2919, 0.0
        %v2952 = vmax.f32 %v2920, 0.0
        %v2953 = vpack.c.bf16 %v2922, %v2921
        %v2954 = vpack.c.bf16 %v2924, %v2923
        %v2955 = vpack.c.bf16 %v2926, %v2925
        %v2956 = vpack.c.bf16 %v2928, %v2927
        %v2957 = vpack.c.bf16 %v2930, %v2929
        %v2958 = vpack.c.bf16 %v2932, %v2931
        %v2959 = vpack.c.bf16 %v2934, %v2933
        %v2960 = vpack.c.bf16 %v2936, %v2935
        %v2961 = vpack.c.bf16 %v2938, %v2937
        %v2962 = vpack.c.bf16 %v2940, %v2939
        %v2963 = vpack.c.bf16 %v2942, %v2941
        %v2964 = vpack.c.bf16 %v2944, %v2943
        %v2965 = vpack.c.bf16 %v2946, %v2945
        %v2966 = vpack.c.bf16 %v2948, %v2947
        %v2967 = vpack.c.bf16 %v2950, %v2949
        %v2968 = vpack.c.bf16 %v2952, %v2951
        %v2969 = vld [vmem:[#allocation8] sm:$0xf]
        %v2970 = vld [vmem:[#allocation8 + $0x4] sm:$0xf]
        %v2971 = vld [vmem:[#allocation8 + $0x8] sm:$0xf]
        %v2972 = vld [vmem:[#allocation8 + $0xc] sm:$0xf]
        %v2973 = vld [vmem:[#allocation8 + $0x10] sm:$0xf]
        %v2974 = vld [vmem:[#allocation8 + $0x14] sm:$0xf]
        %v2975 = vld [vmem:[#allocation8 + $0x18] sm:$0xf]
        %v2976 = vld [vmem:[#allocation8 + $0x1c] sm:$0xf]
        %v2977 = vld [vmem:[#allocation8 + $0x20] sm:$0xf]
        %v2978 = vld [vmem:[#allocation8 + $0x24] sm:$0xf]
        %v2979 = vld [vmem:[#allocation8 + $0x28] sm:$0xf]
        %v2980 = vld [vmem:[#allocation8 + $0x2c] sm:$0xf]
        %v2981 = vld [vmem:[#allocation8 + $0x30] sm:$0xf]
        %v2982 = vld [vmem:[#allocation8 + $0x34] sm:$0xf]
        %v2983 = vld [vmem:[#allocation8 + $0x38] sm:$0xf]
        %v2984 = vld [vmem:[#allocation8 + $0x3c] sm:$0xf]
        %v2985 = vld [vmem:[%s6] sm:$0x1]
        %v2987 = vlaneseq
        %v2988 = vshrl.u32 %v2987, 7
        %v2989 = vsub.s32 0, %v2988
        %v2990 = vrot.slane %v2985, %v2989
        %v3008 = vunpack.c.l.b16 %v2969
        %v3009 = vunpack.c.l.b16 %v2970
        %v3010 = vunpack.c.l.b16 %v2971
        %v3011 = vunpack.c.l.b16 %v2972
        %v3012 = vunpack.c.l.b16 %v2973
        %v3013 = vunpack.c.l.b16 %v2974
        %v3014 = vunpack.c.l.b16 %v2975
        %v3015 = vunpack.c.l.b16 %v2976
        %v3016 = vunpack.c.l.b16 %v2977
        %v3017 = vunpack.c.l.b16 %v2978
        %v3018 = vunpack.c.l.b16 %v2979
        %v3019 = vunpack.c.l.b16 %v2980
        %v3020 = vunpack.c.l.b16 %v2981
        %v3021 = vunpack.c.l.b16 %v2982
        %v3022 = vunpack.c.l.b16 %v2983
        %v3023 = vunpack.c.l.b16 %v2984
        %v3024 = vpack.c.b16 %v3009, %v3008
        %v3025 = vpack.c.b16 %v3011, %v3010
        %v3026 = vpack.c.b16 %v3013, %v3012
        %v3027 = vpack.c.b16 %v3015, %v3014
        %v3028 = vpack.c.b16 %v3017, %v3016
        %v3029 = vpack.c.b16 %v3019, %v3018
        %v3030 = vpack.c.b16 %v3021, %v3020
        %v3031 = vpack.c.b16 %v3023, %v3022
        %3040 = vmatprep.subr.bf16.mxu0 0
        %3041 = vmatpush1.bf16.msra.mxu0 %v3024
        %3042 = vmatprep.subr.bf16.mxu0 0
        %3043 = vmatpush1.bf16.msra.mxu0 %v3025
        %3044 = vmatprep.subr.bf16.mxu0 0
        %3045 = vmatpush1.bf16.msra.mxu0 %v3026
        %3046 = vmatprep.subr.bf16.mxu0 0
        %3047 = vmatpush1.bf16.msra.mxu0 %v3027
        %3048 = vmatprep.subr.bf16.mxu0 0
        %3049 = vmatpush1.bf16.msra.mxu0 %v3028
        %3050 = vmatprep.subr.bf16.mxu0 0
        %3051 = vmatpush1.bf16.msra.mxu0 %v3029
        %3052 = vmatprep.subr.bf16.mxu0 0
        %3053 = vmatpush1.bf16.msra.mxu0 %v3030
        %3054 = vmatprep.subr.bf16.mxu0 0
        %3055 = vmatpush1.bf16.msra.mxu0 %v3031
        %3056 = vmatprep.subr.bf16.mxu0 0
        %3057 = vmatpush1.bf16.msra.mxu0 0
        %3058 = vmatprep.subr.bf16.mxu0 0
        %3059 = vmatpush1.bf16.msra.mxu0 0
        %3060 = vmatprep.subr.bf16.mxu0 0
        %3061 = vmatpush1.bf16.msra.mxu0 0
        %3062 = vmatprep.subr.bf16.mxu0 0
        %3063 = vmatpush1.bf16.msra.mxu0 0
        %3064 = vmatprep.subr.bf16.mxu0 0
        %3065 = vmatpush1.bf16.msra.mxu0 0
        %3066 = vmatprep.subr.bf16.mxu0 0
        %3067 = vmatpush1.bf16.msra.mxu0 0
        %3068 = vmatprep.subr.bf16.mxu0 0
        %3069 = vmatpush1.bf16.msra.mxu0 0
        %3070 = vmatprep.subr.bf16.mxu0 0
        %3071 = vmatpush1.bf16.msra.mxu0 0
        %3072 = vmatprep.mubr.bf16.mxu0 0
        %3073 = vmatmul.mubr.bf16.gmra.mrb[0].mxu0 %v2953
        %v3074 = vpop.f32.mrb[0].mxu0
        %v3075 = vadd.f32 %v2990, %v3074
        %v3076 = vpop.f32.mrb[0].mxu0
        %v3077 = vpop.f32.mrb[0].mxu0
        %v3078 = vadd.f32 %v2990, %v3077
        %v3079 = vpop.f32.mrb[0].mxu0
        %3080 = vmatprep.mubr.bf16.mxu0 0
        %3081 = vmatmul.mubr.bf16.gmra.mrb[0].mxu0 %v2954
        %v3082 = vpop.f32.mrb[0].mxu0
        %v3083 = vadd.f32 %v2990, %v3082
        %v3084 = vpop.f32.mrb[0].mxu0
        %v3085 = vpop.f32.mrb[0].mxu0
        %v3086 = vadd.f32 %v2990, %v3085
        %v3087 = vpop.f32.mrb[0].mxu0
        %3088 = vmatprep.mubr.bf16.mxu0 0
        %3089 = vmatmul.mubr.bf16.gmra.mrb[0].mxu0 %v2955
        %v3090 = vpop.f32.mrb[0].mxu0
        %v3091 = vadd.f32 %v2990, %v3090
        %v3092 = vpop.f32.mrb[0].mxu0
        %v3093 = vpop.f32.mrb[0].mxu0
        %v3094 = vadd.f32 %v2990, %v3093
        %v3095 = vpop.f32.mrb[0].mxu0
        %3096 = vmatprep.mubr.bf16.mxu0 0
        %3097 = vmatmul.mubr.bf16.gmra.mrb[0].mxu0 %v2956
        %v3098 = vpop.f32.mrb[0].mxu0
        %v3099 = vadd.f32 %v2990, %v3098
        %v3100 = vpop.f32.mrb[0].mxu0
        %v3101 = vpop.f32.mrb[0].mxu0
        %v3102 = vadd.f32 %v2990, %v3101
        %v3103 = vpop.f32.mrb[0].mxu0
        %3104 = vmatprep.mubr.bf16.mxu0 0
        %3105 = vmatmul.mubr.bf16.gmra.mrb[0].mxu0 %v2957
        %v3106 = vpop.f32.mrb[0].mxu0
        %v3107 = vadd.f32 %v2990, %v3106
        %v3108 = vpop.f32.mrb[0].mxu0
        %v3109 = vpop.f32.mrb[0].mxu0
        %v3110 = vadd.f32 %v2990, %v3109
        %v3111 = vpop.f32.mrb[0].mxu0
        %3112 = vmatprep.mubr.bf16.mxu0 0
        %3113 = vmatmul.mubr.bf16.gmra.mrb[0].mxu0 %v2958
        %v3114 = vpop.f32.mrb[0].mxu0
        %v3115 = vadd.f32 %v2990, %v3114
        %v3116 = vpop.f32.mrb[0].mxu0
        %v3117 = vpop.f32.mrb[0].mxu0
        %v3118 = vadd.f32 %v2990, %v3117
        %v3119 = vpop.f32.mrb[0].mxu0
        %3120 = vmatprep.mubr.bf16.mxu0 0
        %3121 = vmatmul.mubr.bf16.gmra.mrb[0].mxu0 %v2959
        %v3122 = vpop.f32.mrb[0].mxu0
        %v3123 = vadd.f32 %v2990, %v3122
        %v3124 = vpop.f32.mrb[0].mxu0
        %v3125 = vpop.f32.mrb[0].mxu0
        %v3126 = vadd.f32 %v2990, %v3125
        %v3127 = vpop.f32.mrb[0].mxu0
        %3128 = vmatprep.mubr.bf16.mxu0 0
        %3129 = vmatmul.mubr.bf16.gmra.mrb[0].mxu0 %v2960
        %v3130 = vpop.f32.mrb[0].mxu0
        %v3131 = vadd.f32 %v2990, %v3130
        %v3132 = vpop.f32.mrb[0].mxu0
        %v3133 = vpop.f32.mrb[0].mxu0
        %v3134 = vadd.f32 %v2990, %v3133
        %v3135 = vpop.f32.mrb[0].mxu0
        %3136 = vmatprep.mubr.bf16.mxu0 0
        %3137 = vmatmul.mubr.bf16.gmra.mrb[0].mxu0 %v2961
        %v3138 = vpop.f32.mrb[0].mxu0
        %v3139 = vadd.f32 %v2990, %v3138
        %v3140 = vpop.f32.mrb[0].mxu0
        %v3141 = vpop.f32.mrb[0].mxu0
        %v3142 = vadd.f32 %v2990, %v3141
        %v3143 = vpop.f32.mrb[0].mxu0
        %3144 = vmatprep.mubr.bf16.mxu0 0
        %3145 = vmatmul.mubr.bf16.gmra.mrb[0].mxu0 %v2962
        %v3146 = vpop.f32.mrb[0].mxu0
        %v3147 = vadd.f32 %v2990, %v3146
        %v3148 = vpop.f32.mrb[0].mxu0
        %v3149 = vpop.f32.mrb[0].mxu0
        %v3150 = vadd.f32 %v2990, %v3149
        %v3151 = vpop.f32.mrb[0].mxu0
        %3152 = vmatprep.mubr.bf16.mxu0 0
        %3153 = vmatmul.mubr.bf16.gmra.mrb[0].mxu0 %v2963
        %v3154 = vpop.f32.mrb[0].mxu0
        %v3155 = vadd.f32 %v2990, %v3154
        %v3156 = vpop.f32.mrb[0].mxu0
        %v3157 = vpop.f32.mrb[0].mxu0
        %v3158 = vadd.f32 %v2990, %v3157
        %v3159 = vpop.f32.mrb[0].mxu0
        %3160 = vmatprep.mubr.bf16.mxu0 0
        %3161 = vmatmul.mubr.bf16.gmra.mrb[0].mxu0 %v2964
        %v3162 = vpop.f32.mrb[0].mxu0
        %v3163 = vadd.f32 %v2990, %v3162
        %v3164 = vpop.f32.mrb[0].mxu0
        %v3165 = vpop.f32.mrb[0].mxu0
        %v3166 = vadd.f32 %v2990, %v3165
        %v3167 = vpop.f32.mrb[0].mxu0
        %3168 = vmatprep.mubr.bf16.mxu0 0
        %3169 = vmatmul.mubr.bf16.gmra.mrb[0].mxu0 %v2965
        %v3170 = vpop.f32.mrb[0].mxu0
        %v3171 = vadd.f32 %v2990, %v3170
        %v3172 = vpop.f32.mrb[0].mxu0
        %v3173 = vpop.f32.mrb[0].mxu0
        %v3174 = vadd.f32 %v2990, %v3173
        %v3175 = vpop.f32.mrb[0].mxu0
        %3176 = vmatprep.mubr.bf16.mxu0 0
        %3177 = vmatmul.mubr.bf16.gmra.mrb[0].mxu0 %v2966
        %v3178 = vpop.f32.mrb[0].mxu0
        %v3179 = vadd.f32 %v2990, %v3178
        %v3180 = vpop.f32.mrb[0].mxu0
        %v3181 = vpop.f32.mrb[0].mxu0
        %v3182 = vadd.f32 %v2990, %v3181
        %v3183 = vpop.f32.mrb[0].mxu0
        %3184 = vmatprep.mubr.bf16.mxu0 0
        %3185 = vmatmul.mubr.bf16.gmra.mrb[0].mxu0 %v2967
        %v3186 = vpop.f32.mrb[0].mxu0
        %v3187 = vadd.f32 %v2990, %v3186
        %v3188 = vpop.f32.mrb[0].mxu0
        %v3189 = vpop.f32.mrb[0].mxu0
        %v3190 = vadd.f32 %v2990, %v3189
        %v3191 = vpop.f32.mrb[0].mxu0
        %3192 = vmatprep.mubr.bf16.mxu0 0
        %3193 = vmatmul.mubr.bf16.gmra.mrb[0].mxu0 %v2968
        %v3194 = vpop.f32.mrb[0].mxu0
        %v3195 = vadd.f32 %v2990, %v3194
        %v3196 = vpop.f32.mrb[0].mxu0
        %v3197 = vpop.f32.mrb[0].mxu0
        %v3198 = vadd.f32 %v2990, %v3197
        %v3199 = vpop.f32.mrb[0].mxu0
        %3200 = vdwg.mxu0
        %v3201 = vunpack.c.l.bf16 %v369
        %v3202 = vunpack.c.l.bf16 %v370
        %v3203 = vunpack.c.l.bf16 %v371
        %v3204 = vunpack.c.l.bf16 %v372
        %v3205 = vunpack.c.l.bf16 %v373
        %v3206 = vunpack.c.l.bf16 %v374
        %v3207 = vunpack.c.l.bf16 %v375
        %v3208 = vunpack.c.l.bf16 %v376
        %v3209 = vunpack.c.l.bf16 %v377
        %v3210 = vunpack.c.l.bf16 %v378
        %v3211 = vunpack.c.l.bf16 %v379
        %v3212 = vunpack.c.l.bf16 %v380
        %v3213 = vunpack.c.l.bf16 %v381
        %v3214 = vunpack.c.l.bf16 %v382
        %v3215 = vunpack.c.l.bf16 %v383
        %v3216 = vunpack.c.l.bf16 %v384
        %v3217 = vunpack.c.l.bf16 %v385
        %v3218 = vunpack.c.l.bf16 %v386
        %v3219 = vunpack.c.l.bf16 %v387
        %v3220 = vunpack.c.l.bf16 %v388
        %v3221 = vunpack.c.l.bf16 %v389
        %v3222 = vunpack.c.l.bf16 %v390
        %v3223 = vunpack.c.l.bf16 %v391
        %v3224 = vunpack.c.l.bf16 %v392
        %v3225 = vunpack.c.l.bf16 %v393
        %v3226 = vunpack.c.l.bf16 %v394
        %v3227 = vunpack.c.l.bf16 %v395
        %v3228 = vunpack.c.l.bf16 %v396
        %v3229 = vunpack.c.l.bf16 %v397
        %v3230 = vunpack.c.l.bf16 %v398
        %v3231 = vunpack.c.l.bf16 %v399
        %v3232 = vunpack.c.l.bf16 %v400
        %v3233 = vadd.f32 %v3075, %v3201
        %v3234 = vadd.f32 %v3078, %v3202
        %v3235 = vadd.f32 %v3083, %v3203
        %v3236 = vadd.f32 %v3086, %v3204
        %v3237 = vadd.f32 %v3091, %v3205
        %v3238 = vadd.f32 %v3094, %v3206
        %v3239 = vadd.f32 %v3099, %v3207
        %v3240 = vadd.f32 %v3102, %v3208
        %v3241 = vadd.f32 %v3107, %v3209
        %v3242 = vadd.f32 %v3110, %v3210
        %v3243 = vadd.f32 %v3115, %v3211
        %v3244 = vadd.f32 %v3118, %v3212
        %v3245 = vadd.f32 %v3123, %v3213
        %v3246 = vadd.f32 %v3126, %v3214
        %v3247 = vadd.f32 %v3131, %v3215
        %v3248 = vadd.f32 %v3134, %v3216
        %v3249 = vadd.f32 %v3139, %v3217
        %v3250 = vadd.f32 %v3142, %v3218
        %v3251 = vadd.f32 %v3147, %v3219
        %v3252 = vadd.f32 %v3150, %v3220
        %v3253 = vadd.f32 %v3155, %v3221
        %v3254 = vadd.f32 %v3158, %v3222
        %v3255 = vadd.f32 %v3163, %v3223
        %v3256 = vadd.f32 %v3166, %v3224
        %v3257 = vadd.f32 %v3171, %v3225
        %v3258 = vadd.f32 %v3174, %v3226
        %v3259 = vadd.f32 %v3179, %v3227
        %v3260 = vadd.f32 %v3182, %v3228
        %v3261 = vadd.f32 %v3187, %v3229
        %v3262 = vadd.f32 %v3190, %v3230
        %v3263 = vadd.f32 %v3195, %v3231
        %v3264 = vadd.f32 %v3198, %v3232
        %v3265 = vmax.f32 %v3233, 0.0
        %v3266 = vmax.f32 %v3234, 0.0
        %v3267 = vmax.f32 %v3235, 0.0
        %v3268 = vmax.f32 %v3236, 0.0
        %v3269 = vmax.f32 %v3237, 0.0
        %v3270 = vmax.f32 %v3238, 0.0
        %v3271 = vmax.f32 %v3239, 0.0
        %v3272 = vmax.f32 %v3240, 0.0
        %v3273 = vmax.f32 %v3241, 0.0
        %v3274 = vmax.f32 %v3242, 0.0
        %v3275 = vmax.f32 %v3243, 0.0
        %v3276 = vmax.f32 %v3244, 0.0
        %v3277 = vmax.f32 %v3245, 0.0
        %v3278 = vmax.f32 %v3246, 0.0
        %v3279 = vmax.f32 %v3247, 0.0
        %v3280 = vmax.f32 %v3248, 0.0
        %v3281 = vmax.f32 %v3249, 0.0
        %v3282 = vmax.f32 %v3250, 0.0
        %v3283 = vmax.f32 %v3251, 0.0
        %v3284 = vmax.f32 %v3252, 0.0
        %v3285 = vmax.f32 %v3253, 0.0
        %v3286 = vmax.f32 %v3254, 0.0
        %v3287 = vmax.f32 %v3255, 0.0
        %v3288 = vmax.f32 %v3256, 0.0
        %v3289 = vmax.f32 %v3257, 0.0
        %v3290 = vmax.f32 %v3258, 0.0
        %v3291 = vmax.f32 %v3259, 0.0
        %v3292 = vmax.f32 %v3260, 0.0
        %v3293 = vmax.f32 %v3261, 0.0
        %v3294 = vmax.f32 %v3262, 0.0
        %v3295 = vmax.f32 %v3263, 0.0
        %v3296 = vmax.f32 %v3264, 0.0
        %v3297 = vsel %vm822, 1, 0
        %v3298 = vsel %vm823, 1, 0
        %vm3299 = vcmp.eq.s32.totalorder %v3297, 1
        %vm3300 = vcmp.eq.s32.totalorder %v3298, 1
        %v3301 = vsel %vm3299, %v3265, 0.0
        %v3302 = vsel %vm3300, %v3266, 0.0
        %v3303 = vsel %vm3299, %v3267, 0.0
        %v3304 = vsel %vm3300, %v3268, 0.0
        %v3305 = vsel %vm3299, %v3269, 0.0
        %v3306 = vsel %vm3300, %v3270, 0.0
        %v3307 = vsel %vm3299, %v3271, 0.0
        %v3308 = vsel %vm3300, %v3272, 0.0
        %v3309 = vsel %vm3299, %v3273, 0.0
        %v3310 = vsel %vm3300, %v3274, 0.0
        %v3311 = vsel %vm3299, %v3275, 0.0
        %v3312 = vsel %vm3300, %v3276, 0.0
        %v3313 = vsel %vm3299, %v3277, 0.0
        %v3314 = vsel %vm3300, %v3278, 0.0
        %v3315 = vsel %vm3299, %v3279, 0.0
        %v3316 = vsel %vm3300, %v3280, 0.0
        %v3317 = vsel %vm3299, %v3281, 0.0
        %v3318 = vsel %vm3300, %v3282, 0.0
        %v3319 = vsel %vm3299, %v3283, 0.0
        %v3320 = vsel %vm3300, %v3284, 0.0
        %v3321 = vsel %vm3299, %v3285, 0.0
        %v3322 = vsel %vm3300, %v3286, 0.0
        %v3323 = vsel %vm3299, %v3287, 0.0
        %v3324 = vsel %vm3300, %v3288, 0.0
        %v3325 = vsel %vm3299, %v3289, 0.0
        %v3326 = vsel %vm3300, %v3290, 0.0
        %v3327 = vsel %vm3299, %v3291, 0.0
        %v3328 = vsel %vm3300, %v3292, 0.0
        %v3329 = vsel %vm3299, %v3293, 0.0
        %v3330 = vsel %vm3300, %v3294, 0.0
        %v3331 = vsel %vm3299, %v3295, 0.0
        %v3332 = vsel %vm3300, %v3296, 0.0
        %v3333 = vpack.c.bf16 %v3302, %v3301
        %v3334 = vpack.c.bf16 %v3304, %v3303
        %v3335 = vpack.c.bf16 %v3306, %v3305
        %v3336 = vpack.c.bf16 %v3308, %v3307
        %v3337 = vpack.c.bf16 %v3310, %v3309
        %v3338 = vpack.c.bf16 %v3312, %v3311
        %v3339 = vpack.c.bf16 %v3314, %v3313
        %v3340 = vpack.c.bf16 %v3316, %v3315
        %v3341 = vpack.c.bf16 %v3318, %v3317
        %v3342 = vpack.c.bf16 %v3320, %v3319
        %v3343 = vpack.c.bf16 %v3322, %v3321
        %v3344 = vpack.c.bf16 %v3324, %v3323
        %v3345 = vpack.c.bf16 %v3326, %v3325
        %v3346 = vpack.c.bf16 %v3328, %v3327
        %v3347 = vpack.c.bf16 %v3330, %v3329
        %v3348 = vpack.c.bf16 %v3332, %v3331
        %v3365 = vunpack.c.l.b16 %v3333
        %v3366 = vunpack.c.h.b16 %v3333
        %v3367 = vunpack.c.l.b16 %v3334
        %v3368 = vunpack.c.h.b16 %v3334
        %v3369 = vunpack.c.l.b16 %v3335
        %v3370 = vunpack.c.h.b16 %v3335
        %v3371 = vunpack.c.l.b16 %v3336
        %v3372 = vunpack.c.h.b16 %v3336
        %v3373 = vunpack.c.l.b16 %v3337
        %v3374 = vunpack.c.h.b16 %v3337
        %v3375 = vunpack.c.l.b16 %v3338
        %v3376 = vunpack.c.h.b16 %v3338
        %v3377 = vunpack.c.l.b16 %v3339
        %v3378 = vunpack.c.h.b16 %v3339
        %v3379 = vunpack.c.l.b16 %v3340
        %v3380 = vunpack.c.h.b16 %v3340
        %v3381 = vunpack.c.l.b16 %v3341
        %v3382 = vunpack.c.h.b16 %v3341
        %v3383 = vunpack.c.l.b16 %v3342
        %v3384 = vunpack.c.h.b16 %v3342
        %v3385 = vunpack.c.l.b16 %v3343
        %v3386 = vunpack.c.h.b16 %v3343
        %v3387 = vunpack.c.l.b16 %v3344
        %v3388 = vunpack.c.h.b16 %v3344
        %v3389 = vunpack.c.l.b16 %v3345
        %v3390 = vunpack.c.h.b16 %v3345
        %v3391 = vunpack.c.l.b16 %v3346
        %v3392 = vunpack.c.h.b16 %v3346
        %v3393 = vunpack.c.l.b16 %v3347
        %v3394 = vunpack.c.h.b16 %v3347
        %v3395 = vunpack.c.l.b16 %v3348
        %v3396 = vunpack.c.h.b16 %v3348
        %v3397 = vpack.c.b16 %v3365, %v3365
        %v3398 = vpack.c.b16 %v3366, %v3366
        %v3399 = vpack.c.b16 %v3367, %v3367
        %v3400 = vpack.c.b16 %v3368, %v3368
        %v3401 = vpack.c.b16 %v3369, %v3369
        %v3402 = vpack.c.b16 %v3370, %v3370
        %v3403 = vpack.c.b16 %v3371, %v3371
        %v3404 = vpack.c.b16 %v3372, %v3372
        %v3405 = vpack.c.b16 %v3373, %v3373
        %v3406 = vpack.c.b16 %v3374, %v3374
        %v3407 = vpack.c.b16 %v3375, %v3375
        %v3408 = vpack.c.b16 %v3376, %v3376
        %v3409 = vpack.c.b16 %v3377, %v3377
        %v3410 = vpack.c.b16 %v3378, %v3378
        %v3411 = vpack.c.b16 %v3379, %v3379
        %v3412 = vpack.c.b16 %v3380, %v3380
        %v3413 = vpack.c.b16 %v3381, %v3381
        %v3414 = vpack.c.b16 %v3382, %v3382
        %v3415 = vpack.c.b16 %v3383, %v3383
        %v3416 = vpack.c.b16 %v3384, %v3384
        %v3417 = vpack.c.b16 %v3385, %v3385
        %v3418 = vpack.c.b16 %v3386, %v3386
        %v3419 = vpack.c.b16 %v3387, %v3387
        %v3420 = vpack.c.b16 %v3388, %v3388
        %v3421 = vpack.c.b16 %v3389, %v3389
        %v3422 = vpack.c.b16 %v3390, %v3390
        %v3423 = vpack.c.b16 %v3391, %v3391
        %v3424 = vpack.c.b16 %v3392, %v3392
        %v3425 = vpack.c.b16 %v3393, %v3393
        %v3426 = vpack.c.b16 %v3394, %v3394
        %v3427 = vpack.c.b16 %v3395, %v3395
        %v3428 = vpack.c.b16 %v3396, %v3396
        %3461 = vst [vmem:[%s354] sm:$0xf] %v3397
        %3462 = vst [vmem:[%s354 + $0x4] sm:$0xf] %v3398
        %3463 = vst [vmem:[%s354 + $0x8] sm:$0xf] %v3399
        %3464 = vst [vmem:[%s354 + $0xc] sm:$0xf] %v3400
        %3465 = vst [vmem:[%s354 + $0x10] sm:$0xf] %v3401
        %3466 = vst [vmem:[%s354 + $0x14] sm:$0xf] %v3402
        %3467 = vst [vmem:[%s354 + $0x18] sm:$0xf] %v3403
        %3468 = vst [vmem:[%s354 + $0x1c] sm:$0xf] %v3404
        %3469 = vst [vmem:[%s354 + $0x20] sm:$0xf] %v3405
        %3470 = vst [vmem:[%s354 + $0x24] sm:$0xf] %v3406
        %3471 = vst [vmem:[%s354 + $0x28] sm:$0xf] %v3407
        %3472 = vst [vmem:[%s354 + $0x2c] sm:$0xf] %v3408
        %3473 = vst [vmem:[%s354 + $0x30] sm:$0xf] %v3409
        %3474 = vst [vmem:[%s354 + $0x34] sm:$0xf] %v3410
        %3475 = vst [vmem:[%s354 + $0x38] sm:$0xf] %v3411
        %3476 = vst [vmem:[%s354 + $0x3c] sm:$0xf] %v3412
        %3477 = vst [vmem:[%s354 + $0x40] sm:$0xf] %v3413
        %3478 = vst [vmem:[%s354 + $0x44] sm:$0xf] %v3414
        %3479 = vst [vmem:[%s354 + $0x48] sm:$0xf] %v3415
        %3480 = vst [vmem:[%s354 + $0x4c] sm:$0xf] %v3416
        %3481 = vst [vmem:[%s354 + $0x50] sm:$0xf] %v3417
        %3482 = vst [vmem:[%s354 + $0x54] sm:$0xf] %v3418
        %3483 = vst [vmem:[%s354 + $0x58] sm:$0xf] %v3419
        %3484 = vst [vmem:[%s354 + $0x5c] sm:$0xf] %v3420
        %3485 = vst [vmem:[%s354 + $0x60] sm:$0xf] %v3421
        %3486 = vst [vmem:[%s354 + $0x64] sm:$0xf] %v3422
        %3487 = vst [vmem:[%s354 + $0x68] sm:$0xf] %v3423
        %3488 = vst [vmem:[%s354 + $0x6c] sm:$0xf] %v3424
        %3489 = vst [vmem:[%s354 + $0x70] sm:$0xf] %v3425
        %3490 = vst [vmem:[%s354 + $0x74] sm:$0xf] %v3426
        %3491 = vst [vmem:[%s354 + $0x78] sm:$0xf] %v3427
        %3492 = vst [vmem:[%s354 + $0x7c] sm:$0xf] %v3428
        %s3493 = sand.u32 %s200, 1
        %s3494 = scalar_lea.sflag [#allocation4], %s3493
        %s3495 = sand.u32 %s200, 1
        %s3496 = smul.addr %s3495, 128
        %s3497 = scalar_lea.vmem [#allocation10], %s3496
        // Predicated region
        $region65: #{bottleneck_padded.1} parent=47 // pred_check
          %p3498 = pneg %p210
        $region66: #{bottleneck_padded.1} parent=47 // pred_check_branch
          %3500 = sbr.rel (%p3498) target = $region68
        $region67: #{bottleneck_padded.1} parent=47 // pred_region
          %s3501 = smul.u32 16, %s31
          %s3503 = ssub.s32 2048, 2048
          %3504 = vsyncadd %s3494, %s3503
          %s3505 = smul.addr %s3501, 2
          %s3506 = smul.addr %s30, 32
          %s3507 = sadd.s32 %s3505, %s3506
          %s3508 = smul.addr %s3507, 64
          %s3509 = scalar_lea.hbm %s7, %s3508
          %s3510 = sshll.u32 %s3497, 4
          %s3511 = int_to_ptr.vmem [resolvable:$true] %s3510
          %3516 = dma.vmem_to_hbm [thread:$0]  %s3511, 2048, %s3509, %s3494, 64, 64, 4
        $region68: #{bottleneck_padded.1} parent=47 // pred_fallthru
          _
      $region48: #{bottleneck_padded.1} parent=5 // pred_fallthru
        _
      %p3517 = scmp.le.s32.totalorder 2, %s21
      // Predicated region
      $region69: #{bottleneck_padded.1} parent=5 // pred_check
        %p3518 = pneg %p3517
      $region70: #{bottleneck_padded.1} parent=5 // pred_check_branch
        %3520 = sbr.rel (%p3518) target = $region72
      $region71: #{bottleneck_padded.1} parent=5 // pred_region
        %s3521 = ssub.s32 %s21, 2
        // Predicated region
        $region73: #{bottleneck_padded.1} parent=71 // pred_check
          %p3522 = pneg %p216
        $region74: #{bottleneck_padded.1} parent=71 // pred_check_branch
          %3524 = sbr.rel (%p3522) target = $region76
        $region75: #{bottleneck_padded.1} parent=71 // pred_region
          %s3525 = sand.u32 %s201, 1
          %s3526 = scalar_lea.sflag [#allocation4], %s3525
          %s3527 = sand.u32 %s201, 1
          %s3528 = smul.addr %s3527, 128
          %s3529 = scalar_lea.vmem [#allocation10], %s3528
          %3530 = dma.done %s3526, 2048
        $region76: #{bottleneck_padded.1} parent=71 // pred_fallthru
          _
      $region72: #{bottleneck_padded.1} parent=5 // pred_fallthru
        _
    $region6: #{bottleneck_padded.1} parent=1 // loop_footer
      %s25 = sadd.s32 1, %s21
    $region7: #{bottleneck_padded.1} parent=1 // loop_footer_branch
      %20 = sbr.rel target = $region3
    $region8: #{bottleneck_padded.1} parent=1 // loop_exit
      _
    %3531 = vsyncpa [#allocation3], 1
    %s3532 = scalar_lea.sflag [#allocation3], 1
    %3533 = vsyncpa %s3532, 1
    %3534 = vsyncpa [#allocation6], 1
    %3535 = vsyncpa [#allocation9], 1
    %3536 = vsyncpa [#allocation4], 1
    %s3537 = scalar_lea.sflag [#allocation4], 1
    %3538 = vsyncpa %s3537, 1

</llo_original>
